<compile_context>
chip_gen: v7x
topology: tpu7x:2x2x1
jax: 0.10.0
libtpu: 0.0.40
codegen_flags: <defaults>
</compile_context>

<pallas_src>
import functools

import jax
import jax.numpy as jnp
from jax.experimental import pallas as pl
from jax.experimental.pallas import tpu as pltpu

_BN_EPS = 1e-5
_BN_SCALE = float(1.0 / (1.0 + _BN_EPS) ** 0.5)
_LEAKY_SLOPE = 0.01


# ---------------------------------------------------------------------------
# Pallas kernels: single-shot GEMM (full-K block) with fused bias + activation
# ---------------------------------------------------------------------------
def _activation(y, act):
    if act == "leaky_relu":
        return jnp.where(y >= 0.0, y, _LEAKY_SLOPE * y)
    if act == "sigmoid":
        return 1.0 / (1.0 + jnp.exp(-y))      # exp lands on EUP; exact recip
    return y


def _gemm_kernel(a_ref, b_ref, bias_ref, o_ref, *, act):
    y = jnp.dot(a_ref[...], b_ref[...], preferred_element_type=jnp.float32)
    y = y + bias_ref[...]
    o_ref[...] = _activation(y, act).astype(o_ref.dtype)


def _gemm2_kernel(a1_ref, a2_ref, b1_ref, b2_ref, bias_ref, o_ref, *, act):
    # Fused skip-connection: concat([a1, a2]) @ [[b1],[b2]] == a1@b1 + a2@b2
    y = jnp.dot(a1_ref[...], b1_ref[...], preferred_element_type=jnp.float32)
    y = y + jnp.dot(a2_ref[...], b2_ref[...], preferred_element_type=jnp.float32)
    y = y + bias_ref[...]
    o_ref[...] = _activation(y, act).astype(o_ref.dtype)


def _round_up(x, m):
    return (x + m - 1) // m * m


def _plan_m(M):
    """Padded M + tile.  Round M only to 8; cap tm at 256 so the big layers
    (M=512) split into >=2 parallel blocks for dual-TC chips."""
    if M <= 256:
        Mp = _round_up(M, 8)
        return Mp, Mp
    Mp = _round_up(M, 256)
    return Mp, 256


def fused_gemm(a, b, bias, *, act, out_dtype):
    """out = act(a @ b + bias); bias per column.  bf16 MXU, f32 accumulate."""
    M, K = a.shape
    Kb, N = b.shape
    assert K == Kb
    Mp, tm = _plan_m(M)
    a = a.astype(jnp.bfloat16)
    if Mp != M:
        a = jnp.pad(a, ((0, Mp - M), (0, 0)))
    out = pl.pallas_call(
        functools.partial(_gemm_kernel, act=act),
        out_shape=jax.ShapeDtypeStruct((Mp, N), out_dtype),
        grid_spec=pltpu.PrefetchScalarGridSpec(
            num_scalar_prefetch=0,
            grid=(Mp // tm,),
            in_specs=[
                pl.BlockSpec((tm, K), lambda i: (i, 0)),
                pl.BlockSpec((K, N), lambda i: (0, 0)),
                pl.BlockSpec((1, N), lambda i: (0, 0)),
            ],
            out_specs=pl.BlockSpec((tm, N), lambda i: (i, 0)),
        ),
        compiler_params=pltpu.CompilerParams(
            dimension_semantics=("parallel",)),
    )(a, b.astype(jnp.bfloat16), bias.reshape(1, N).astype(jnp.float32))
    return out[:M] if Mp != M else out


def fused_gemm2(a1, a2, b1, b2, bias, *, act, out_dtype):
    """out = act(a1 @ b1 + a2 @ b2 + bias)  -- fused channel-concat GEMM."""
    M, K1 = a1.shape
    M2, K2 = a2.shape
    assert M == M2 and b1.shape[0] == K1 and b2.shape[0] == K2
    N = b1.shape[1]
    assert b2.shape[1] == N
    Mp, tm = _plan_m(M)
    a1 = a1.astype(jnp.bfloat16)
    a2 = a2.astype(jnp.bfloat16)
    if Mp != M:
        a1 = jnp.pad(a1, ((0, Mp - M), (0, 0)))
        a2 = jnp.pad(a2, ((0, Mp - M), (0, 0)))
    out = pl.pallas_call(
        functools.partial(_gemm2_kernel, act=act),
        out_shape=jax.ShapeDtypeStruct((Mp, N), out_dtype),
        grid_spec=pltpu.PrefetchScalarGridSpec(
            num_scalar_prefetch=0,
            grid=(Mp // tm,),
            in_specs=[
                pl.BlockSpec((tm, K1), lambda i: (i, 0)),
                pl.BlockSpec((tm, K2), lambda i: (i, 0)),
                pl.BlockSpec((K1, N), lambda i: (0, 0)),
                pl.BlockSpec((K2, N), lambda i: (0, 0)),
                pl.BlockSpec((1, N), lambda i: (0, 0)),
            ],
            out_specs=pl.BlockSpec((tm, N), lambda i: (i, 0)),
        ),
        compiler_params=pltpu.CompilerParams(
            dimension_semantics=("parallel",)),
    )(a1, a2, b1.astype(jnp.bfloat16), b2.astype(jnp.bfloat16),
      bias.reshape(1, N).astype(jnp.float32))
    return out[:M] if Mp != M else out


# ---------------------------------------------------------------------------
# UNet blocks — activations NHWC, BN folded into weights on host
# ---------------------------------------------------------------------------
def down_block(x, w, b, out_dtype=jnp.bfloat16):
    """Conv2d(3x3, s=2, p=1) + BN(eval) + LeakyReLU.  x: (N,H,W,Cin) NHWC."""
    N, H, W, Cin = x.shape
    Cout = w.shape[0]
    Ho, Wo = (H - 1) // 2 + 1, (W - 1) // 2 + 1
    xp = jnp.pad(x, ((0, 0), (1, 1), (1, 1), (0, 0)))
    slices = []
    for dh in range(3):
        for dw in range(3):
            slices.append(xp[:, dh:dh + 2 * (Ho - 1) + 1:2,
                              dw:dw + 2 * (Wo - 1) + 1:2, :])
    patches = jnp.concatenate(slices, axis=-1)          # (N,Ho,Wo,9*Cin)  (dh,dw,ci)
    a = patches.reshape(N * Ho * Wo, 9 * Cin)
    # TODO(synk): move im2col into the kernel (Element-index gather) to avoid
    # materializing the patch matrix in HBM.
    wm = (w * _BN_SCALE).transpose(2, 3, 1, 0).reshape(9 * Cin, Cout)  # BN folded
    bias = b * _BN_SCALE
    y = fused_gemm(a, wm, bias, act="leaky_relu", out_dtype=out_dtype)
    return y.reshape(N, Ho, Wo, Cout)


def up_block(x, w, b, skip=None, is_output_layer=False, out_dtype=jnp.bfloat16):
    """ConvTranspose2d(2x2, s=2) + (Sigmoid | BN(eval)+LeakyReLU).

    x: (N,H,W,C1) NHWC; skip (N,H,W,C2) replaces torch.cat([x, skip], dim=1)
    via a fused two-GEMM accumulation inside the kernel.
    """
    N, H, W, C1 = x.shape
    Cin, Cout = w.shape[0], w.shape[1]
    scale = 1.0 if is_output_layer else _BN_SCALE
    act = "sigmoid" if is_output_layer else "leaky_relu"
    # Columns ordered (di, dj, cout); BN scale folded into weights/bias.
    wm = (w * scale).transpose(0, 2, 3, 1).reshape(Cin, 4 * Cout)
    bias = jnp.tile(b * scale, 4)
    a1 = x.reshape(N * H * W, C1)
    if skip is None:
        assert Cin == C1
        y = fused_gemm(a1, wm, bias, act=act, out_dtype=out_dtype)
    else:
        C2 = skip.shape[-1]
        assert Cin == C1 + C2
        a2 = skip.reshape(N * H * W, C2)
        y = fused_gemm2(a1, a2, wm[:C1], wm[C1:], bias,
                        act=act, out_dtype=out_dtype)
    y = y.reshape(N, H, W, 2, 2, Cout).transpose(0, 1, 3, 2, 4, 5)
    return y.reshape(N, 2 * H, 2 * W, Cout)


# ---------------------------------------------------------------------------
# Parameters (deterministic synthetic init mirroring the module's shapes)
# ---------------------------------------------------------------------------
def init_params(key, n_in, n_out, flc):
    enc_ch = [(n_in, flc), (flc, 2 * flc), (2 * flc, 4 * flc),
              (4 * flc, 8 * flc), (8 * flc, 16 * flc)]
    dec_ch = [(16 * flc, 8 * flc), (16 * flc, 4 * flc), (8 * flc, 2 * flc),
              (4 * flc, flc), (2 * flc, n_out)]
    params = {}
    keys = jax.random.split(key, 4 * (len(enc_ch) + len(dec_ch)))
    ki = iter(range(len(keys)))

    for idx, (cin, cout) in enumerate(enc_ch, 1):
        std = (2.0 / (cin * 9)) ** 0.5                 # kaiming_normal_ (Conv2d)
        w = jax.random.normal(keys[next(ki)], (cout, cin, 3, 3), jnp.float32) * std
        b = jax.random.normal(keys[next(ki)], (cout,), jnp.float32) * 0.05
        params[f"enc{idx}"] = (w, b)

    for idx, (cin, cout) in enumerate(dec_ch, 1):
        std = 1.0 / ((cin * 4) ** 0.5)                 # default-ish ConvTranspose2d init
        w = jax.random.normal(keys[next(ki)], (cin, cout, 2, 2), jnp.float32) * std
        b = jax.random.normal(keys[next(ki)], (cout,), jnp.float32) * 0.05
        params[f"dec{idx}"] = (w, b)
    return params


# ---------------------------------------------------------------------------
# Forward pass (mirrors UNetModel.forward; host I/O stays NCHW like PyTorch)
# ---------------------------------------------------------------------------
def unet_forward(params, x_nchw):
    x = x_nchw.transpose(0, 2, 3, 1).astype(jnp.bfloat16)   # NCHW -> NHWC once
    enc1 = down_block(x, *params["enc1"])
    enc2 = down_block(enc1, *params["enc2"])
    enc3 = down_block(enc2, *params["enc3"])
    enc4 = down_block(enc3, *params["enc4"])
    feat = down_block(enc4, *params["enc5"])
    d1 = up_block(feat, *params["dec1"])
    d2 = up_block(d1, *params["dec2"], skip=enc4)            # fused torch.cat
    d3 = up_block(d2, *params["dec3"], skip=enc3)
    d4 = up_block(d3, *params["dec4"], skip=enc2)
    out = up_block(d4, *params["dec5"], skip=enc1,
                   is_output_layer=True, out_dtype=jnp.float32)
    return out.transpose(0, 3, 1, 2)                         # back to NCHW


if __name__ == "__main__":
    key = jax.random.PRNGKey(0)
    kx, kp = jax.random.split(key)

    n_input_channels, n_output_channels, first_layer_channels = 4, 3, 8
    batch, spatial = 2, 32                    # spatial must be divisible by 2**5

    x = jax.random.normal(kx, (batch, n_input_channels, spatial, spatial),
                          jnp.float32)
    params = init_params(kp, n_input_channels, n_output_channels,
                         first_layer_channels)

    out = jax.jit(unet_forward)(params, x)
    out = jax.block_until_ready(out)

    assert out.shape == (batch, n_output_channels, spatial, spatial), out.shape
    assert bool(jnp.all(jnp.isfinite(out)))
    assert bool(jnp.all((out >= 0.0) & (out <= 1.0)))   # final sigmoid
    print("KERNEL_OK")
</pallas_src>

<mosaic_0001>
module attributes {stable_mosaic.version = 11 : i64} {
  func.func @_gemm_kernel(%arg0: i32, %arg1: memref<256x36xbf16, #tpu.memory_space<vmem>>, %arg2: memref<36x8xbf16, #tpu.memory_space<vmem>>, %arg3: memref<1x8xf32, #tpu.memory_space<vmem>>, %arg4: memref<256x8xbf16, #tpu.memory_space<vmem>>) attributes {dimension_semantics = [#tpu.dimension_semantics<parallel>], iteration_bounds = array<i64: 2>, scalar_prefetch = 0 : i64, scratch_operands = 0 : i64, tpu.core_type = #tpu.core_type<tc>, window_params = [{transform_indices = @transform_0, window_bounds = array<i64: 256, 36>}, {pipeline_mode = #tpu.pipeline_mode<synchronous>, transform_indices = @transform_1, window_bounds = array<i64: 36, 8>}, {pipeline_mode = #tpu.pipeline_mode<synchronous>, transform_indices = @transform_2, window_bounds = array<i64: 1, 8>}, {transform_indices = @transform_3, window_bounds = array<i64: 256, 8>}]} {
    %c0 = arith.constant 0 : index
    %c0_0 = arith.constant 0 : index
    %0 = vector.load %arg1[%c0, %c0_0] : memref<256x36xbf16, #tpu.memory_space<vmem>>, vector<256x36xbf16>
    %c0_1 = arith.constant 0 : index
    %c0_2 = arith.constant 0 : index
    %1 = vector.load %arg2[%c0_1, %c0_2] : memref<36x8xbf16, #tpu.memory_space<vmem>>, vector<36x8xbf16>
    %cst = arith.constant dense<0.000000e+00> : vector<256x8xf32>
    %2 = tpu.matmul %0, %1, %cst {dimension_numbers = #tpu.dot_dimension_numbers<[1], [0], [0], [1], [0, 0, 1, 1], [], []>} : vector<256x36xbf16>, vector<36x8xbf16>, vector<256x8xf32> -> vector<256x8xf32>
    %c0_3 = arith.constant 0 : index
    %c0_4 = arith.constant 0 : index
    %3 = vector.load %arg3[%c0_3, %c0_4] : memref<1x8xf32, #tpu.memory_space<vmem>>, vector<1x8xf32>
    %4 = vector.broadcast %3 : vector<1x8xf32> to vector<256x8xf32>
    %5 = arith.addf %2, %4 : vector<256x8xf32>
    %cst_5 = arith.constant 0.000000e+00 : f32
    %6 = vector.broadcast %cst_5 : f32 to vector<256x8xf32>
    %7 = arith.cmpf oge, %5, %6 : vector<256x8xf32>
    %cst_6 = arith.constant 0.00999999977 : f32
    %8 = vector.broadcast %cst_6 : f32 to vector<256x8xf32>
    %9 = arith.mulf %8, %5 : vector<256x8xf32>
    %10 = arith.select %7, %5, %9 : vector<256x8xi1>, vector<256x8xf32>
    %11 = arith.truncf %10 : vector<256x8xf32> to vector<256x8xbf16>
    %c0_7 = arith.constant 0 : index
    %c0_8 = arith.constant 0 : index
    %12 = vector.load %arg4[%c0_7, %c0_8] : memref<256x8xbf16, #tpu.memory_space<vmem>>, vector<256x8xbf16>
    tpu.vector_store %arg4[%c0_7, %c0_8], %11 {strides = array<i32>} : memref<256x8xbf16, #tpu.memory_space<vmem>>, vector<256x8xbf16>,
    return
  }
  func.func @transform_0(%arg0: i32) -> (i32, i32) {
    %c0_i32 = arith.constant 0 : i32
    %c0_i32_0 = arith.constant 0 : i32
    return %arg0, %c0_i32 : i32, i32
  }
  func.func @transform_1(%arg0: i32) -> (i32, i32) {
    %c0_i32 = arith.constant 0 : i32
    %c0_i32_0 = arith.constant 0 : i32
    %c0_i32_1 = arith.constant 0 : i32
    return %c0_i32, %c0_i32_0 : i32, i32
  }
  func.func @transform_2(%arg0: i32) -> (i32, i32) {
    %c0_i32 = arith.constant 0 : i32
    %c0_i32_0 = arith.constant 0 : i32
    %c0_i32_1 = arith.constant 0 : i32
    return %c0_i32, %c0_i32_0 : i32, i32
  }
  func.func @transform_3(%arg0: i32) -> (i32, i32) {
    %c0_i32 = arith.constant 0 : i32
    %c0_i32_0 = arith.constant 0 : i32
    return %arg0, %c0_i32 : i32, i32
  }
}

module attributes {stable_mosaic.version = 11 : i64} {
  func.func @_gemm_kernel(%arg0: i32, %arg1: memref<128x72xbf16, #tpu.memory_space<vmem>>, %arg2: memref<72x16xbf16, #tpu.memory_space<vmem>>, %arg3: memref<1x16xf32, #tpu.memory_space<vmem>>, %arg4: memref<128x16xbf16, #tpu.memory_space<vmem>>) attributes {dimension_semantics = [#tpu.dimension_semantics<parallel>], iteration_bounds = array<i64: 1>, scalar_prefetch = 0 : i64, scratch_operands = 0 : i64, tpu.core_type = #tpu.core_type<tc>, window_params = [{transform_indices = @transform_0, window_bounds = array<i64: 128, 72>}, {pipeline_mode = #tpu.pipeline_mode<synchronous>, transform_indices = @transform_1, window_bounds = array<i64: 72, 16>}, {pipeline_mode = #tpu.pipeline_mode<synchronous>, transform_indices = @transform_2, window_bounds = array<i64: 1, 16>}, {transform_indices = @transform_3, window_bounds = array<i64: 128, 16>}]} {
    %c0 = arith.constant 0 : index
    %c0_0 = arith.constant 0 : index
    %0 = vector.load %arg1[%c0, %c0_0] : memref<128x72xbf16, #tpu.memory_space<vmem>>, vector<128x72xbf16>
    %c0_1 = arith.constant 0 : index
    %c0_2 = arith.constant 0 : index
    %1 = vector.load %arg2[%c0_1, %c0_2] : memref<72x16xbf16, #tpu.memory_space<vmem>>, vector<72x16xbf16>
    %cst = arith.constant dense<0.000000e+00> : vector<128x16xf32>
    %2 = tpu.matmul %0, %1, %cst {dimension_numbers = #tpu.dot_dimension_numbers<[1], [0], [0], [1], [0, 0, 1, 1], [], []>} : vector<128x72xbf16>, vector<72x16xbf16>, vector<128x16xf32> -> vector<128x16xf32>
    %c0_3 = arith.constant 0 : index
    %c0_4 = arith.constant 0 : index
    %3 = vector.load %arg3[%c0_3, %c0_4] : memref<1x16xf32, #tpu.memory_space<vmem>>, vector<1x16xf32>
    %4 = vector.broadcast %3 : vector<1x16xf32> to vector<128x16xf32>
    %5 = arith.addf %2, %4 : vector<128x16xf32>
    %cst_5 = arith.constant 0.000000e+00 : f32
    %6 = vector.broadcast %cst_5 : f32 to vector<128x16xf32>
    %7 = arith.cmpf oge, %5, %6 : vector<128x16xf32>
    %cst_6 = arith.constant 0.00999999977 : f32
    %8 = vector.broadcast %cst_6 : f32 to vector<128x16xf32>
    %9 = arith.mulf %8, %5 : vector<128x16xf32>
    %10 = arith.select %7, %5, %9 : vector<128x16xi1>, vector<128x16xf32>
    %11 = arith.truncf %10 : vector<128x16xf32> to vector<128x16xbf16>
    %c0_7 = arith.constant 0 : index
    %c0_8 = arith.constant 0 : index
    %12 = vector.load %arg4[%c0_7, %c0_8] : memref<128x16xbf16, #tpu.memory_space<vmem>>, vector<128x16xbf16>
    tpu.vector_store %arg4[%c0_7, %c0_8], %11 {strides = array<i32>} : memref<128x16xbf16, #tpu.memory_space<vmem>>, vector<128x16xbf16>,
    return
  }
  func.func @transform_0(%arg0: i32) -> (i32, i32) {
    %c0_i32 = arith.constant 0 : i32
    %c0_i32_0 = arith.constant 0 : i32
    return %arg0, %c0_i32 : i32, i32
  }
  func.func @transform_1(%arg0: i32) -> (i32, i32) {
    %c0_i32 = arith.constant 0 : i32
    %c0_i32_0 = arith.constant 0 : i32
    %c0_i32_1 = arith.constant 0 : i32
    return %c0_i32, %c0_i32_0 : i32, i32
  }
  func.func @transform_2(%arg0: i32) -> (i32, i32) {
    %c0_i32 = arith.constant 0 : i32
    %c0_i32_0 = arith.constant 0 : i32
    %c0_i32_1 = arith.constant 0 : i32
    return %c0_i32, %c0_i32_0 : i32, i32
  }
  func.func @transform_3(%arg0: i32) -> (i32, i32) {
    %c0_i32 = arith.constant 0 : i32
    %c0_i32_0 = arith.constant 0 : i32
    return %arg0, %c0_i32 : i32, i32
  }
}

module attributes {stable_mosaic.version = 11 : i64} {
  func.func @_gemm_kernel(%arg0: i32, %arg1: memref<32x144xbf16, #tpu.memory_space<vmem>>, %arg2: memref<144x32xbf16, #tpu.memory_space<vmem>>, %arg3: memref<1x32xf32, #tpu.memory_space<vmem>>, %arg4: memref<32x32xbf16, #tpu.memory_space<vmem>>) attributes {dimension_semantics = [#tpu.dimension_semantics<parallel>], iteration_bounds = array<i64: 1>, scalar_prefetch = 0 : i64, scratch_operands = 0 : i64, tpu.core_type = #tpu.core_type<tc>, window_params = [{transform_indices = @transform_0, window_bounds = array<i64: 32, 144>}, {pipeline_mode = #tpu.pipeline_mode<synchronous>, transform_indices = @transform_1, window_bounds = array<i64: 144, 32>}, {pipeline_mode = #tpu.pipeline_mode<synchronous>, transform_indices = @transform_2, window_bounds = array<i64: 1, 32>}, {transform_indices = @transform_3, window_bounds = array<i64: 32, 32>}]} {
    %c0 = arith.constant 0 : index
    %c0_0 = arith.constant 0 : index
    %0 = vector.load %arg1[%c0, %c0_0] : memref<32x144xbf16, #tpu.memory_space<vmem>>, vector<32x144xbf16>
    %c0_1 = arith.constant 0 : index
    %c0_2 = arith.constant 0 : index
    %1 = vector.load %arg2[%c0_1, %c0_2] : memref<144x32xbf16, #tpu.memory_space<vmem>>, vector<144x32xbf16>
    %cst = arith.constant dense<0.000000e+00> : vector<32x32xf32>
    %2 = tpu.matmul %0, %1, %cst {dimension_numbers = #tpu.dot_dimension_numbers<[1], [0], [0], [1], [0, 0, 1, 1], [], []>} : vector<32x144xbf16>, vector<144x32xbf16>, vector<32x32xf32> -> vector<32x32xf32>
    %c0_3 = arith.constant 0 : index
    %c0_4 = arith.constant 0 : index
    %3 = vector.load %arg3[%c0_3, %c0_4] : memref<1x32xf32, #tpu.memory_space<vmem>>, vector<1x32xf32>
    %4 = vector.broadcast %3 : vector<1x32xf32> to vector<32x32xf32>
    %5 = arith.addf %2, %4 : vector<32x32xf32>
    %cst_5 = arith.constant 0.000000e+00 : f32
    %6 = vector.broadcast %cst_5 : f32 to vector<32x32xf32>
    %7 = arith.cmpf oge, %5, %6 : vector<32x32xf32>
    %cst_6 = arith.constant 0.00999999977 : f32
    %8 = vector.broadcast %cst_6 : f32 to vector<32x32xf32>
    %9 = arith.mulf %8, %5 : vector<32x32xf32>
    %10 = arith.select %7, %5, %9 : vector<32x32xi1>, vector<32x32xf32>
    %11 = arith.truncf %10 : vector<32x32xf32> to vector<32x32xbf16>
    %c0_7 = arith.constant 0 : index
    %c0_8 = arith.constant 0 : index
    %12 = vector.load %arg4[%c0_7, %c0_8] : memref<32x32xbf16, #tpu.memory_space<vmem>>, vector<32x32xbf16>
    tpu.vector_store %arg4[%c0_7, %c0_8], %11 {strides = array<i32>} : memref<32x32xbf16, #tpu.memory_space<vmem>>, vector<32x32xbf16>,
    return
  }
  func.func @transform_0(%arg0: i32) -> (i32, i32) {
    %c0_i32 = arith.constant 0 : i32
    %c0_i32_0 = arith.constant 0 : i32
    return %arg0, %c0_i32 : i32, i32
  }
  func.func @transform_1(%arg0: i32) -> (i32, i32) {
    %c0_i32 = arith.constant 0 : i32
    %c0_i32_0 = arith.constant 0 : i32
    %c0_i32_1 = arith.constant 0 : i32
    return %c0_i32, %c0_i32_0 : i32, i32
  }
  func.func @transform_2(%arg0: i32) -> (i32, i32) {
    %c0_i32 = arith.constant 0 : i32
    %c0_i32_0 = arith.constant 0 : i32
    %c0_i32_1 = arith.constant 0 : i32
    return %c0_i32, %c0_i32_0 : i32, i32
  }
  func.func @transform_3(%arg0: i32) -> (i32, i32) {
    %c0_i32 = arith.constant 0 : i32
    %c0_i32_0 = arith.constant 0 : i32
    return %arg0, %c0_i32 : i32, i32
  }
}

module attributes {stable_mosaic.version = 11 : i64} {
  func.func @_gemm_kernel(%arg0: i32, %arg1: memref<8x288xbf16, #tpu.memory_space<vmem>>, %arg2: memref<288x64xbf16, #tpu.memory_space<vmem>>, %arg3: memref<1x64xf32, #tpu.memory_space<vmem>>, %arg4: memref<8x64xbf16, #tpu.memory_space<vmem>>) attributes {dimension_semantics = [#tpu.dimension_semantics<parallel>], iteration_bounds = array<i64: 1>, scalar_prefetch = 0 : i64, scratch_operands = 0 : i64, tpu.core_type = #tpu.core_type<tc>, window_params = [{transform_indices = @transform_0, window_bounds = array<i64: 8, 288>}, {pipeline_mode = #tpu.pipeline_mode<synchronous>, transform_indices = @transform_1, window_bounds = array<i64: 288, 64>}, {pipeline_mode = #tpu.pipeline_mode<synchronous>, transform_indices = @transform_2, window_bounds = array<i64: 1, 64>}, {transform_indices = @transform_3, window_bounds = array<i64: 8, 64>}]} {
    %c0 = arith.constant 0 : index
    %c0_0 = arith.constant 0 : index
    %0 = vector.load %arg1[%c0, %c0_0] : memref<8x288xbf16, #tpu.memory_space<vmem>>, vector<8x288xbf16>
    %c0_1 = arith.constant 0 : index
    %c0_2 = arith.constant 0 : index
    %1 = vector.load %arg2[%c0_1, %c0_2] : memref<288x64xbf16, #tpu.memory_space<vmem>>, vector<288x64xbf16>
    %cst = arith.constant dense<0.000000e+00> : vector<8x64xf32>
    %2 = tpu.matmul %0, %1, %cst {dimension_numbers = #tpu.dot_dimension_numbers<[1], [0], [0], [1], [0, 0, 1, 1], [], []>} : vector<8x288xbf16>, vector<288x64xbf16>, vector<8x64xf32> -> vector<8x64xf32>
    %c0_3 = arith.constant 0 : index
    %c0_4 = arith.constant 0 : index
    %3 = vector.load %arg3[%c0_3, %c0_4] : memref<1x64xf32, #tpu.memory_space<vmem>>, vector<1x64xf32>
    %4 = vector.broadcast %3 : vector<1x64xf32> to vector<8x64xf32>
    %5 = arith.addf %2, %4 : vector<8x64xf32>
    %cst_5 = arith.constant 0.000000e+00 : f32
    %6 = vector.broadcast %cst_5 : f32 to vector<8x64xf32>
    %7 = arith.cmpf oge, %5, %6 : vector<8x64xf32>
    %cst_6 = arith.constant 0.00999999977 : f32
    %8 = vector.broadcast %cst_6 : f32 to vector<8x64xf32>
    %9 = arith.mulf %8, %5 : vector<8x64xf32>
    %10 = arith.select %7, %5, %9 : vector<8x64xi1>, vector<8x64xf32>
    %11 = arith.truncf %10 : vector<8x64xf32> to vector<8x64xbf16>
    %c0_7 = arith.constant 0 : index
    %c0_8 = arith.constant 0 : index
    %12 = vector.load %arg4[%c0_7, %c0_8] : memref<8x64xbf16, #tpu.memory_space<vmem>>, vector<8x64xbf16>
    tpu.vector_store %arg4[%c0_7, %c0_8], %11 {strides = array<i32>} : memref<8x64xbf16, #tpu.memory_space<vmem>>, vector<8x64xbf16>,
    return
  }
  func.func @transform_0(%arg0: i32) -> (i32, i32) {
    %c0_i32 = arith.constant 0 : i32
    %c0_i32_0 = arith.constant 0 : i32
    return %arg0, %c0_i32 : i32, i32
  }
  func.func @transform_1(%arg0: i32) -> (i32, i32) {
    %c0_i32 = arith.constant 0 : i32
    %c0_i32_0 = arith.constant 0 : i32
    %c0_i32_1 = arith.constant 0 : i32
    return %c0_i32, %c0_i32_0 : i32, i32
  }
  func.func @transform_2(%arg0: i32) -> (i32, i32) {
    %c0_i32 = arith.constant 0 : i32
    %c0_i32_0 = arith.constant 0 : i32
    %c0_i32_1 = arith.constant 0 : i32
    return %c0_i32, %c0_i32_0 : i32, i32
  }
  func.func @transform_3(%arg0: i32) -> (i32, i32) {
    %c0_i32 = arith.constant 0 : i32
    %c0_i32_0 = arith.constant 0 : i32
    return %arg0, %c0_i32 : i32, i32
  }
}

module attributes {stable_mosaic.version = 11 : i64} {
  func.func @_gemm_kernel(%arg0: i32, %arg1: memref<8x576xbf16, #tpu.memory_space<vmem>>, %arg2: memref<576x128xbf16, #tpu.memory_space<vmem>>, %arg3: memref<1x128xf32, #tpu.memory_space<vmem>>, %arg4: memref<8x128xbf16, #tpu.memory_space<vmem>>) attributes {dimension_semantics = [#tpu.dimension_semantics<parallel>], iteration_bounds = array<i64: 1>, scalar_prefetch = 0 : i64, scratch_operands = 0 : i64, tpu.core_type = #tpu.core_type<tc>, window_params = [{transform_indices = @transform_0, window_bounds = array<i64: 8, 576>}, {pipeline_mode = #tpu.pipeline_mode<synchronous>, transform_indices = @transform_1, window_bounds = array<i64: 576, 128>}, {pipeline_mode = #tpu.pipeline_mode<synchronous>, transform_indices = @transform_2, window_bounds = array<i64: 1, 128>}, {transform_indices = @transform_3, window_bounds = array<i64: 8, 128>}]} {
    %c0 = arith.constant 0 : index
    %c0_0 = arith.constant 0 : index
    %0 = vector.load %arg1[%c0, %c0_0] : memref<8x576xbf16, #tpu.memory_space<vmem>>, vector<8x576xbf16>
    %c0_1 = arith.constant 0 : index
    %c0_2 = arith.constant 0 : index
    %1 = vector.load %arg2[%c0_1, %c0_2] : memref<576x128xbf16, #tpu.memory_space<vmem>>, vector<576x128xbf16>
    %cst = arith.constant dense<0.000000e+00> : vector<8x128xf32>
    %2 = tpu.matmul %0, %1, %cst {dimension_numbers = #tpu.dot_dimension_numbers<[1], [0], [0], [1], [0, 0, 1, 1], [], []>} : vector<8x576xbf16>, vector<576x128xbf16>, vector<8x128xf32> -> vector<8x128xf32>
    %c0_3 = arith.constant 0 : index
    %c0_4 = arith.constant 0 : index
    %3 = vector.load %arg3[%c0_3, %c0_4] : memref<1x128xf32, #tpu.memory_space<vmem>>, vector<1x128xf32>
    %4 = vector.broadcast %3 : vector<1x128xf32> to vector<8x128xf32>
    %5 = arith.addf %2, %4 : vector<8x128xf32>
    %cst_5 = arith.constant 0.000000e+00 : f32
    %6 = vector.broadcast %cst_5 : f32 to vector<8x128xf32>
    %7 = arith.cmpf oge, %5, %6 : vector<8x128xf32>
    %cst_6 = arith.constant 0.00999999977 : f32
    %8 = vector.broadcast %cst_6 : f32 to vector<8x128xf32>
    %9 = arith.mulf %8, %5 : vector<8x128xf32>
    %10 = arith.select %7, %5, %9 : vector<8x128xi1>, vector<8x128xf32>
    %11 = arith.truncf %10 : vector<8x128xf32> to vector<8x128xbf16>
    %c0_7 = arith.constant 0 : index
    %c0_8 = arith.constant 0 : index
    %12 = vector.load %arg4[%c0_7, %c0_8] : memref<8x128xbf16, #tpu.memory_space<vmem>>, vector<8x128xbf16>
    tpu.vector_store %arg4[%c0_7, %c0_8], %11 {strides = array<i32>} : memref<8x128xbf16, #tpu.memory_space<vmem>>, vector<8x128xbf16>,
    return
  }
  func.func @transform_0(%arg0: i32) -> (i32, i32) {
    %c0_i32 = arith.constant 0 : i32
    %c0_i32_0 = arith.constant 0 : i32
    return %arg0, %c0_i32 : i32, i32
  }
  func.func @transform_1(%arg0: i32) -> (i32, i32) {
    %c0_i32 = arith.constant 0 : i32
    %c0_i32_0 = arith.constant 0 : i32
    %c0_i32_1 = arith.constant 0 : i32
    return %c0_i32, %c0_i32_0 : i32, i32
  }
  func.func @transform_2(%arg0: i32) -> (i32, i32) {
    %c0_i32 = arith.constant 0 : i32
    %c0_i32_0 = arith.constant 0 : i32
    %c0_i32_1 = arith.constant 0 : i32
    return %c0_i32, %c0_i32_0 : i32, i32
  }
  func.func @transform_3(%arg0: i32) -> (i32, i32) {
    %c0_i32 = arith.constant 0 : i32
    %c0_i32_0 = arith.constant 0 : i32
    return %arg0, %c0_i32 : i32, i32
  }
}

module attributes {stable_mosaic.version = 11 : i64} {
  func.func @_gemm_kernel(%arg0: i32, %arg1: memref<8x128xbf16, #tpu.memory_space<vmem>>, %arg2: memref<128x256xbf16, #tpu.memory_space<vmem>>, %arg3: memref<1x256xf32, #tpu.memory_space<vmem>>, %arg4: memref<8x256xbf16, #tpu.memory_space<vmem>>) attributes {dimension_semantics = [#tpu.dimension_semantics<parallel>], iteration_bounds = array<i64: 1>, scalar_prefetch = 0 : i64, scratch_operands = 0 : i64, tpu.core_type = #tpu.core_type<tc>, window_params = [{transform_indices = @transform_0, window_bounds = array<i64: 8, 128>}, {pipeline_mode = #tpu.pipeline_mode<synchronous>, transform_indices = @transform_1, window_bounds = array<i64: 128, 256>}, {pipeline_mode = #tpu.pipeline_mode<synchronous>, transform_indices = @transform_2, window_bounds = array<i64: 1, 256>}, {transform_indices = @transform_3, window_bounds = array<i64: 8, 256>}]} {
    %c0 = arith.constant 0 : index
    %c0_0 = arith.constant 0 : index
    %0 = vector.load %arg1[%c0, %c0_0] : memref<8x128xbf16, #tpu.memory_space<vmem>>, vector<8x128xbf16>
    %c0_1 = arith.constant 0 : index
    %c0_2 = arith.constant 0 : index
    %1 = vector.load %arg2[%c0_1, %c0_2] : memref<128x256xbf16, #tpu.memory_space<vmem>>, vector<128x256xbf16>
    %cst = arith.constant dense<0.000000e+00> : vector<8x256xf32>
    %2 = tpu.matmul %0, %1, %cst {dimension_numbers = #tpu.dot_dimension_numbers<[1], [0], [0], [1], [0, 0, 1, 1], [], []>} : vector<8x128xbf16>, vector<128x256xbf16>, vector<8x256xf32> -> vector<8x256xf32>
    %c0_3 = arith.constant 0 : index
    %c0_4 = arith.constant 0 : index
    %3 = vector.load %arg3[%c0_3, %c0_4] : memref<1x256xf32, #tpu.memory_space<vmem>>, vector<1x256xf32>
    %4 = vector.broadcast %3 : vector<1x256xf32> to vector<8x256xf32>
    %5 = arith.addf %2, %4 : vector<8x256xf32>
    %cst_5 = arith.constant 0.000000e+00 : f32
    %6 = vector.broadcast %cst_5 : f32 to vector<8x256xf32>
    %7 = arith.cmpf oge, %5, %6 : vector<8x256xf32>
    %cst_6 = arith.constant 0.00999999977 : f32
    %8 = vector.broadcast %cst_6 : f32 to vector<8x256xf32>
    %9 = arith.mulf %8, %5 : vector<8x256xf32>
    %10 = arith.select %7, %5, %9 : vector<8x256xi1>, vector<8x256xf32>
    %11 = arith.truncf %10 : vector<8x256xf32> to vector<8x256xbf16>
    %c0_7 = arith.constant 0 : index
    %c0_8 = arith.constant 0 : index
    %12 = vector.load %arg4[%c0_7, %c0_8] : memref<8x256xbf16, #tpu.memory_space<vmem>>, vector<8x256xbf16>
    tpu.vector_store %arg4[%c0_7, %c0_8], %11 {strides = array<i32>} : memref<8x256xbf16, #tpu.memory_space<vmem>>, vector<8x256xbf16>,
    return
  }
  func.func @transform_0(%arg0: i32) -> (i32, i32) {
    %c0_i32 = arith.constant 0 : i32
    %c0_i32_0 = arith.constant 0 : i32
    return %arg0, %c0_i32 : i32, i32
  }
  func.func @transform_1(%arg0: i32) -> (i32, i32) {
    %c0_i32 = arith.constant 0 : i32
    %c0_i32_0 = arith.constant 0 : i32
    %c0_i32_1 = arith.constant 0 : i32
    return %c0_i32, %c0_i32_0 : i32, i32
  }
  func.func @transform_2(%arg0: i32) -> (i32, i32) {
    %c0_i32 = arith.constant 0 : i32
    %c0_i32_0 = arith.constant 0 : i32
    %c0_i32_1 = arith.constant 0 : i32
    return %c0_i32, %c0_i32_0 : i32, i32
  }
  func.func @transform_3(%arg0: i32) -> (i32, i32) {
    %c0_i32 = arith.constant 0 : i32
    %c0_i32_0 = arith.constant 0 : i32
    return %arg0, %c0_i32 : i32, i32
  }
}

module attributes {stable_mosaic.version = 11 : i64} {
  func.func @_gemm2_kernel(%arg0: i32, %arg1: memref<8x64xbf16, #tpu.memory_space<vmem>>, %arg2: memref<8x64xbf16, #tpu.memory_space<vmem>>, %arg3: memref<64x128xbf16, #tpu.memory_space<vmem>>, %arg4: memref<64x128xbf16, #tpu.memory_space<vmem>>, %arg5: memref<1x128xf32, #tpu.memory_space<vmem>>, %arg6: memref<8x128xbf16, #tpu.memory_space<vmem>>) attributes {dimension_semantics = [#tpu.dimension_semantics<parallel>], iteration_bounds = array<i64: 1>, scalar_prefetch = 0 : i64, scratch_operands = 0 : i64, tpu.core_type = #tpu.core_type<tc>, window_params = [{transform_indices = @transform_0, window_bounds = array<i64: 8, 64>}, {transform_indices = @transform_1, window_bounds = array<i64: 8, 64>}, {pipeline_mode = #tpu.pipeline_mode<synchronous>, transform_indices = @transform_2, window_bounds = array<i64: 64, 128>}, {pipeline_mode = #tpu.pipeline_mode<synchronous>, transform_indices = @transform_3, window_bounds = array<i64: 64, 128>}, {pipeline_mode = #tpu.pipeline_mode<synchronous>, transform_indices = @transform_4, window_bounds = array<i64: 1, 128>}, {transform_indices = @transform_5, window_bounds = array<i64: 8, 128>}]} {
    %c0 = arith.constant 0 : index
    %c0_0 = arith.constant 0 : index
    %0 = vector.load %arg1[%c0, %c0_0] : memref<8x64xbf16, #tpu.memory_space<vmem>>, vector<8x64xbf16>
    %c0_1 = arith.constant 0 : index
    %c0_2 = arith.constant 0 : index
    %1 = vector.load %arg3[%c0_1, %c0_2] : memref<64x128xbf16, #tpu.memory_space<vmem>>, vector<64x128xbf16>
    %cst = arith.constant dense<0.000000e+00> : vector<8x128xf32>
    %2 = tpu.matmul %0, %1, %cst {dimension_numbers = #tpu.dot_dimension_numbers<[1], [0], [0], [1], [0, 0, 1, 1], [], []>} : vector<8x64xbf16>, vector<64x128xbf16>, vector<8x128xf32> -> vector<8x128xf32>
    %c0_3 = arith.constant 0 : index
    %c0_4 = arith.constant 0 : index
    %3 = vector.load %arg2[%c0_3, %c0_4] : memref<8x64xbf16, #tpu.memory_space<vmem>>, vector<8x64xbf16>
    %c0_5 = arith.constant 0 : index
    %c0_6 = arith.constant 0 : index
    %4 = vector.load %arg4[%c0_5, %c0_6] : memref<64x128xbf16, #tpu.memory_space<vmem>>, vector<64x128xbf16>
    %cst_7 = arith.constant dense<0.000000e+00> : vector<8x128xf32>
    %5 = tpu.matmul %3, %4, %cst_7 {dimension_numbers = #tpu.dot_dimension_numbers<[1], [0], [0], [1], [0, 0, 1, 1], [], []>} : vector<8x64xbf16>, vector<64x128xbf16>, vector<8x128xf32> -> vector<8x128xf32>
    %6 = arith.addf %2, %5 : vector<8x128xf32>
    %c0_8 = arith.constant 0 : index
    %c0_9 = arith.constant 0 : index
    %7 = vector.load %arg5[%c0_8, %c0_9] : memref<1x128xf32, #tpu.memory_space<vmem>>, vector<1x128xf32>
    %8 = vector.broadcast %7 : vector<1x128xf32> to vector<8x128xf32>
    %9 = arith.addf %6, %8 : vector<8x128xf32>
    %cst_10 = arith.constant 0.000000e+00 : f32
    %10 = vector.broadcast %cst_10 : f32 to vector<8x128xf32>
    %11 = arith.cmpf oge, %9, %10 : vector<8x128xf32>
    %cst_11 = arith.constant 0.00999999977 : f32
    %12 = vector.broadcast %cst_11 : f32 to vector<8x128xf32>
    %13 = arith.mulf %12, %9 : vector<8x128xf32>
    %14 = arith.select %11, %9, %13 : vector<8x128xi1>, vector<8x128xf32>
    %15 = arith.truncf %14 : vector<8x128xf32> to vector<8x128xbf16>
    %c0_12 = arith.constant 0 : index
    %c0_13 = arith.constant 0 : index
    %16 = vector.load %arg6[%c0_12, %c0_13] : memref<8x128xbf16, #tpu.memory_space<vmem>>, vector<8x128xbf16>
    tpu.vector_store %arg6[%c0_12, %c0_13], %15 {strides = array<i32>} : memref<8x128xbf16, #tpu.memory_space<vmem>>, vector<8x128xbf16>,
    return
  }
  func.func @transform_0(%arg0: i32) -> (i32, i32) {
    %c0_i32 = arith.constant 0 : i32
    %c0_i32_0 = arith.constant 0 : i32
    return %arg0, %c0_i32 : i32, i32
  }
  func.func @transform_1(%arg0: i32) -> (i32, i32) {
    %c0_i32 = arith.constant 0 : i32
    %c0_i32_0 = arith.constant 0 : i32
    return %arg0, %c0_i32 : i32, i32
  }
  func.func @transform_2(%arg0: i32) -> (i32, i32) {
    %c0_i32 = arith.constant 0 : i32
    %c0_i32_0 = arith.constant 0 : i32
    %c0_i32_1 = arith.constant 0 : i32
    return %c0_i32, %c0_i32_0 : i32, i32
  }
  func.func @transform_3(%arg0: i32) -> (i32, i32) {
    %c0_i32 = arith.constant 0 : i32
    %c0_i32_0 = arith.constant 0 : i32
    %c0_i32_1 = arith.constant 0 : i32
    return %c0_i32, %c0_i32_0 : i32, i32
  }
  func.func @transform_4(%arg0: i32) -> (i32, i32) {
    %c0_i32 = arith.constant 0 : i32
    %c0_i32_0 = arith.constant 0 : i32
    %c0_i32_1 = arith.constant 0 : i32
    return %c0_i32, %c0_i32_0 : i32, i32
  }
  func.func @transform_5(%arg0: i32) -> (i32, i32) {
    %c0_i32 = arith.constant 0 : i32
    %c0_i32_0 = arith.constant 0 : i32
    return %arg0, %c0_i32 : i32, i32
  }
}

module attributes {stable_mosaic.version = 11 : i64} {
  func.func @_gemm2_kernel(%arg0: i32, %arg1: memref<32x32xbf16, #tpu.memory_space<vmem>>, %arg2: memref<32x32xbf16, #tpu.memory_space<vmem>>, %arg3: memref<32x64xbf16, #tpu.memory_space<vmem>>, %arg4: memref<32x64xbf16, #tpu.memory_space<vmem>>, %arg5: memref<1x64xf32, #tpu.memory_space<vmem>>, %arg6: memref<32x64xbf16, #tpu.memory_space<vmem>>) attributes {dimension_semantics = [#tpu.dimension_semantics<parallel>], iteration_bounds = array<i64: 1>, scalar_prefetch = 0 : i64, scratch_operands = 0 : i64, tpu.core_type = #tpu.core_type<tc>, window_params = [{transform_indices = @transform_0, window_bounds = array<i64: 32, 32>}, {transform_indices = @transform_1, window_bounds = array<i64: 32, 32>}, {pipeline_mode = #tpu.pipeline_mode<synchronous>, transform_indices = @transform_2, window_bounds = array<i64: 32, 64>}, {pipeline_mode = #tpu.pipeline_mode<synchronous>, transform_indices = @transform_3, window_bounds = array<i64: 32, 64>}, {pipeline_mode = #tpu.pipeline_mode<synchronous>, transform_indices = @transform_4, window_bounds = array<i64: 1, 64>}, {transform_indices = @transform_5, window_bounds = array<i64: 32, 64>}]} {
    %c0 = arith.constant 0 : index
    %c0_0 = arith.constant 0 : index
    %0 = vector.load %arg1[%c0, %c0_0] : memref<32x32xbf16, #tpu.memory_space<vmem>>, vector<32x32xbf16>
    %c0_1 = arith.constant 0 : index
    %c0_2 = arith.constant 0 : index
    %1 = vector.load %arg3[%c0_1, %c0_2] : memref<32x64xbf16, #tpu.memory_space<vmem>>, vector<32x64xbf16>
    %cst = arith.constant dense<0.000000e+00> : vector<32x64xf32>
    %2 = tpu.matmul %0, %1, %cst {dimension_numbers = #tpu.dot_dimension_numbers<[1], [0], [0], [1], [0, 0, 1, 1], [], []>} : vector<32x32xbf16>, vector<32x64xbf16>, vector<32x64xf32> -> vector<32x64xf32>
    %c0_3 = arith.constant 0 : index
    %c0_4 = arith.constant 0 : index
    %3 = vector.load %arg2[%c0_3, %c0_4] : memref<32x32xbf16, #tpu.memory_space<vmem>>, vector<32x32xbf16>
    %c0_5 = arith.constant 0 : index
    %c0_6 = arith.constant 0 : index
    %4 = vector.load %arg4[%c0_5, %c0_6] : memref<32x64xbf16, #tpu.memory_space<vmem>>, vector<32x64xbf16>
    %cst_7 = arith.constant dense<0.000000e+00> : vector<32x64xf32>
    %5 = tpu.matmul %3, %4, %cst_7 {dimension_numbers = #tpu.dot_dimension_numbers<[1], [0], [0], [1], [0, 0, 1, 1], [], []>} : vector<32x32xbf16>, vector<32x64xbf16>, vector<32x64xf32> -> vector<32x64xf32>
    %6 = arith.addf %2, %5 : vector<32x64xf32>
    %c0_8 = arith.constant 0 : index
    %c0_9 = arith.constant 0 : index
    %7 = vector.load %arg5[%c0_8, %c0_9] : memref<1x64xf32, #tpu.memory_space<vmem>>, vector<1x64xf32>
    %8 = vector.broadcast %7 : vector<1x64xf32> to vector<32x64xf32>
    %9 = arith.addf %6, %8 : vector<32x64xf32>
    %cst_10 = arith.constant 0.000000e+00 : f32
    %10 = vector.broadcast %cst_10 : f32 to vector<32x64xf32>
    %11 = arith.cmpf oge, %9, %10 : vector<32x64xf32>
    %cst_11 = arith.constant 0.00999999977 : f32
    %12 = vector.broadcast %cst_11 : f32 to vector<32x64xf32>
    %13 = arith.mulf %12, %9 : vector<32x64xf32>
    %14 = arith.select %11, %9, %13 : vector<32x64xi1>, vector<32x64xf32>
    %15 = arith.truncf %14 : vector<32x64xf32> to vector<32x64xbf16>
    %c0_12 = arith.constant 0 : index
    %c0_13 = arith.constant 0 : index
    %16 = vector.load %arg6[%c0_12, %c0_13] : memref<32x64xbf16, #tpu.memory_space<vmem>>, vector<32x64xbf16>
    tpu.vector_store %arg6[%c0_12, %c0_13], %15 {strides = array<i32>} : memref<32x64xbf16, #tpu.memory_space<vmem>>, vector<32x64xbf16>,
    return
  }
  func.func @transform_0(%arg0: i32) -> (i32, i32) {
    %c0_i32 = arith.constant 0 : i32
    %c0_i32_0 = arith.constant 0 : i32
    return %arg0, %c0_i32 : i32, i32
  }
  func.func @transform_1(%arg0: i32) -> (i32, i32) {
    %c0_i32 = arith.constant 0 : i32
    %c0_i32_0 = arith.constant 0 : i32
    return %arg0, %c0_i32 : i32, i32
  }
  func.func @transform_2(%arg0: i32) -> (i32, i32) {
    %c0_i32 = arith.constant 0 : i32
    %c0_i32_0 = arith.constant 0 : i32
    %c0_i32_1 = arith.constant 0 : i32
    return %c0_i32, %c0_i32_0 : i32, i32
  }
  func.func @transform_3(%arg0: i32) -> (i32, i32) {
    %c0_i32 = arith.constant 0 : i32
    %c0_i32_0 = arith.constant 0 : i32
    %c0_i32_1 = arith.constant 0 : i32
    return %c0_i32, %c0_i32_0 : i32, i32
  }
  func.func @transform_4(%arg0: i32) -> (i32, i32) {
    %c0_i32 = arith.constant 0 : i32
    %c0_i32_0 = arith.constant 0 : i32
    %c0_i32_1 = arith.constant 0 : i32
    return %c0_i32, %c0_i32_0 : i32, i32
  }
  func.func @transform_5(%arg0: i32) -> (i32, i32) {
    %c0_i32 = arith.constant 0 : i32
    %c0_i32_0 = arith.constant 0 : i32
    return %arg0, %c0_i32 : i32, i32
  }
}

module attributes {stable_mosaic.version = 11 : i64} {
  func.func @_gemm2_kernel(%arg0: i32, %arg1: memref<128x16xbf16, #tpu.memory_space<vmem>>, %arg2: memref<128x16xbf16, #tpu.memory_space<vmem>>, %arg3: memref<16x32xbf16, #tpu.memory_space<vmem>>, %arg4: memref<16x32xbf16, #tpu.memory_space<vmem>>, %arg5: memref<1x32xf32, #tpu.memory_space<vmem>>, %arg6: memref<128x32xbf16, #tpu.memory_space<vmem>>) attributes {dimension_semantics = [#tpu.dimension_semantics<parallel>], iteration_bounds = array<i64: 1>, scalar_prefetch = 0 : i64, scratch_operands = 0 : i64, tpu.core_type = #tpu.core_type<tc>, window_params = [{transform_indices = @transform_0, window_bounds = array<i64: 128, 16>}, {transform_indices = @transform_1, window_bounds = array<i64: 128, 16>}, {pipeline_mode = #tpu.pipeline_mode<synchronous>, transform_indices = @transform_2, window_bounds = array<i64: 16, 32>}, {pipeline_mode = #tpu.pipeline_mode<synchronous>, transform_indices = @transform_3, window_bounds = array<i64: 16, 32>}, {pipeline_mode = #tpu.pipeline_mode<synchronous>, transform_indices = @transform_4, window_bounds = array<i64: 1, 32>}, {transform_indices = @transform_5, window_bounds = array<i64: 128, 32>}]} {
    %c0 = arith.constant 0 : index
    %c0_0 = arith.constant 0 : index
    %0 = vector.load %arg1[%c0, %c0_0] : memref<128x16xbf16, #tpu.memory_space<vmem>>, vector<128x16xbf16>
    %c0_1 = arith.constant 0 : index
    %c0_2 = arith.constant 0 : index
    %1 = vector.load %arg3[%c0_1, %c0_2] : memref<16x32xbf16, #tpu.memory_space<vmem>>, vector<16x32xbf16>
    %cst = arith.constant dense<0.000000e+00> : vector<128x32xf32>
    %2 = tpu.matmul %0, %1, %cst {dimension_numbers = #tpu.dot_dimension_numbers<[1], [0], [0], [1], [0, 0, 1, 1], [], []>} : vector<128x16xbf16>, vector<16x32xbf16>, vector<128x32xf32> -> vector<128x32xf32>
    %c0_3 = arith.constant 0 : index
    %c0_4 = arith.constant 0 : index
    %3 = vector.load %arg2[%c0_3, %c0_4] : memref<128x16xbf16, #tpu.memory_space<vmem>>, vector<128x16xbf16>
    %c0_5 = arith.constant 0 : index
    %c0_6 = arith.constant 0 : index
    %4 = vector.load %arg4[%c0_5, %c0_6] : memref<16x32xbf16, #tpu.memory_space<vmem>>, vector<16x32xbf16>
    %cst_7 = arith.constant dense<0.000000e+00> : vector<128x32xf32>
    %5 = tpu.matmul %3, %4, %cst_7 {dimension_numbers = #tpu.dot_dimension_numbers<[1], [0], [0], [1], [0, 0, 1, 1], [], []>} : vector<128x16xbf16>, vector<16x32xbf16>, vector<128x32xf32> -> vector<128x32xf32>
    %6 = arith.addf %2, %5 : vector<128x32xf32>
    %c0_8 = arith.constant 0 : index
    %c0_9 = arith.constant 0 : index
    %7 = vector.load %arg5[%c0_8, %c0_9] : memref<1x32xf32, #tpu.memory_space<vmem>>, vector<1x32xf32>
    %8 = vector.broadcast %7 : vector<1x32xf32> to vector<128x32xf32>
    %9 = arith.addf %6, %8 : vector<128x32xf32>
    %cst_10 = arith.constant 0.000000e+00 : f32
    %10 = vector.broadcast %cst_10 : f32 to vector<128x32xf32>
    %11 = arith.cmpf oge, %9, %10 : vector<128x32xf32>
    %cst_11 = arith.constant 0.00999999977 : f32
    %12 = vector.broadcast %cst_11 : f32 to vector<128x32xf32>
    %13 = arith.mulf %12, %9 : vector<128x32xf32>
    %14 = arith.select %11, %9, %13 : vector<128x32xi1>, vector<128x32xf32>
    %15 = arith.truncf %14 : vector<128x32xf32> to vector<128x32xbf16>
    %c0_12 = arith.constant 0 : index
    %c0_13 = arith.constant 0 : index
    %16 = vector.load %arg6[%c0_12, %c0_13] : memref<128x32xbf16, #tpu.memory_space<vmem>>, vector<128x32xbf16>
    tpu.vector_store %arg6[%c0_12, %c0_13], %15 {strides = array<i32>} : memref<128x32xbf16, #tpu.memory_space<vmem>>, vector<128x32xbf16>,
    return
  }
  func.func @transform_0(%arg0: i32) -> (i32, i32) {
    %c0_i32 = arith.constant 0 : i32
    %c0_i32_0 = arith.constant 0 : i32
    return %arg0, %c0_i32 : i32, i32
  }
  func.func @transform_1(%arg0: i32) -> (i32, i32) {
    %c0_i32 = arith.constant 0 : i32
    %c0_i32_0 = arith.constant 0 : i32
    return %arg0, %c0_i32 : i32, i32
  }
  func.func @transform_2(%arg0: i32) -> (i32, i32) {
    %c0_i32 = arith.constant 0 : i32
    %c0_i32_0 = arith.constant 0 : i32
    %c0_i32_1 = arith.constant 0 : i32
    return %c0_i32, %c0_i32_0 : i32, i32
  }
  func.func @transform_3(%arg0: i32) -> (i32, i32) {
    %c0_i32 = arith.constant 0 : i32
    %c0_i32_0 = arith.constant 0 : i32
    %c0_i32_1 = arith.constant 0 : i32
    return %c0_i32, %c0_i32_0 : i32, i32
  }
  func.func @transform_4(%arg0: i32) -> (i32, i32) {
    %c0_i32 = arith.constant 0 : i32
    %c0_i32_0 = arith.constant 0 : i32
    %c0_i32_1 = arith.constant 0 : i32
    return %c0_i32, %c0_i32_0 : i32, i32
  }
  func.func @transform_5(%arg0: i32) -> (i32, i32) {
    %c0_i32 = arith.constant 0 : i32
    %c0_i32_0 = arith.constant 0 : i32
    return %arg0, %c0_i32 : i32, i32
  }
}

module attributes {stable_mosaic.version = 11 : i64} {
  func.func @_gemm2_kernel(%arg0: i32, %arg1: memref<256x8xbf16, #tpu.memory_space<vmem>>, %arg2: memref<256x8xbf16, #tpu.memory_space<vmem>>, %arg3: memref<8x12xbf16, #tpu.memory_space<vmem>>, %arg4: memref<8x12xbf16, #tpu.memory_space<vmem>>, %arg5: memref<1x12xf32, #tpu.memory_space<vmem>>, %arg6: memref<256x12xf32, #tpu.memory_space<vmem>>) attributes {dimension_semantics = [#tpu.dimension_semantics<parallel>], iteration_bounds = array<i64: 2>, scalar_prefetch = 0 : i64, scratch_operands = 0 : i64, tpu.core_type = #tpu.core_type<tc>, window_params = [{transform_indices = @transform_0, window_bounds = array<i64: 256, 8>}, {transform_indices = @transform_1, window_bounds = array<i64: 256, 8>}, {pipeline_mode = #tpu.pipeline_mode<synchronous>, transform_indices = @transform_2, window_bounds = array<i64: 8, 12>}, {pipeline_mode = #tpu.pipeline_mode<synchronous>, transform_indices = @transform_3, window_bounds = array<i64: 8, 12>}, {pipeline_mode = #tpu.pipeline_mode<synchronous>, transform_indices = @transform_4, window_bounds = array<i64: 1, 12>}, {transform_indices = @transform_5, window_bounds = array<i64: 256, 12>}]} {
    %c0 = arith.constant 0 : index
    %c0_0 = arith.constant 0 : index
    %0 = vector.load %arg1[%c0, %c0_0] : memref<256x8xbf16, #tpu.memory_space<vmem>>, vector<256x8xbf16>
    %c0_1 = arith.constant 0 : index
    %c0_2 = arith.constant 0 : index
    %1 = vector.load %arg3[%c0_1, %c0_2] : memref<8x12xbf16, #tpu.memory_space<vmem>>, vector<8x12xbf16>
    %cst = arith.constant dense<0.000000e+00> : vector<256x12xf32>
    %2 = tpu.matmul %0, %1, %cst {dimension_numbers = #tpu.dot_dimension_numbers<[1], [0], [0], [1], [0, 0, 1, 1], [], []>} : vector<256x8xbf16>, vector<8x12xbf16>, vector<256x12xf32> -> vector<256x12xf32>
    %c0_3 = arith.constant 0 : index
    %c0_4 = arith.constant 0 : index
    %3 = vector.load %arg2[%c0_3, %c0_4] : memref<256x8xbf16, #tpu.memory_space<vmem>>, vector<256x8xbf16>
    %c0_5 = arith.constant 0 : index
    %c0_6 = arith.constant 0 : index
    %4 = vector.load %arg4[%c0_5, %c0_6] : memref<8x12xbf16, #tpu.memory_space<vmem>>, vector<8x12xbf16>
    %cst_7 = arith.constant dense<0.000000e+00> : vector<256x12xf32>
    %5 = tpu.matmul %3, %4, %cst_7 {dimension_numbers = #tpu.dot_dimension_numbers<[1], [0], [0], [1], [0, 0, 1, 1], [], []>} : vector<256x8xbf16>, vector<8x12xbf16>, vector<256x12xf32> -> vector<256x12xf32>
    %6 = arith.addf %2, %5 : vector<256x12xf32>
    %c0_8 = arith.constant 0 : index
    %c0_9 = arith.constant 0 : index
    %7 = vector.load %arg5[%c0_8, %c0_9] : memref<1x12xf32, #tpu.memory_space<vmem>>, vector<1x12xf32>
    %8 = vector.broadcast %7 : vector<1x12xf32> to vector<256x12xf32>
    %9 = arith.addf %6, %8 : vector<256x12xf32>
    %cst_10 = arith.constant 0.000000e+00 : f32
    %10 = vector.broadcast %cst_10 : f32 to vector<256x12xf32>
    %11 = arith.subf %10, %9 : vector<256x12xf32>
    %12 = math.exp %11 : vector<256x12xf32>
    %cst_11 = arith.constant 1.000000e+00 : f32
    %13 = vector.broadcast %cst_11 : f32 to vector<256x12xf32>
    %14 = arith.addf %13, %12 : vector<256x12xf32>
    %cst_12 = arith.constant 1.000000e+00 : f32
    %15 = vector.broadcast %cst_12 : f32 to vector<256x12xf32>
    %16 = arith.divf %15, %14 : vector<256x12xf32>
    %c0_13 = arith.constant 0 : index
    %c0_14 = arith.constant 0 : index
    %17 = vector.load %arg6[%c0_13, %c0_14] : memref<256x12xf32, #tpu.memory_space<vmem>>, vector<256x12xf32>
    tpu.vector_store %arg6[%c0_13, %c0_14], %16 {strides = array<i32>} : memref<256x12xf32, #tpu.memory_space<vmem>>, vector<256x12xf32>,
    return
  }
  func.func @transform_0(%arg0: i32) -> (i32, i32) {
    %c0_i32 = arith.constant 0 : i32
    %c0_i32_0 = arith.constant 0 : i32
    return %arg0, %c0_i32 : i32, i32
  }
  func.func @transform_1(%arg0: i32) -> (i32, i32) {
    %c0_i32 = arith.constant 0 : i32
    %c0_i32_0 = arith.constant 0 : i32
    return %arg0, %c0_i32 : i32, i32
  }
  func.func @transform_2(%arg0: i32) -> (i32, i32) {
    %c0_i32 = arith.constant 0 : i32
    %c0_i32_0 = arith.constant 0 : i32
    %c0_i32_1 = arith.constant 0 : i32
    return %c0_i32, %c0_i32_0 : i32, i32
  }
  func.func @transform_3(%arg0: i32) -> (i32, i32) {
    %c0_i32 = arith.constant 0 : i32
    %c0_i32_0 = arith.constant 0 : i32
    %c0_i32_1 = arith.constant 0 : i32
    return %c0_i32, %c0_i32_0 : i32, i32
  }
  func.func @transform_4(%arg0: i32) -> (i32, i32) {
    %c0_i32 = arith.constant 0 : i32
    %c0_i32_0 = arith.constant 0 : i32
    %c0_i32_1 = arith.constant 0 : i32
    return %c0_i32, %c0_i32_0 : i32, i32
  }
  func.func @transform_5(%arg0: i32) -> (i32, i32) {
    %c0_i32 = arith.constant 0 : i32
    %c0_i32_0 = arith.constant 0 : i32
    return %arg0, %c0_i32 : i32, i32
  }
}

</mosaic_0001>

<llo_original>
// kernel: unet_forward.10
$region0: #{unet_forward.10}
  #allocation0 [shape = 'u32[]', space=smem, size = 0x4, offset = 0x4, fixed_abs, tag = 'smem constant byte address 0x4 - core index']
  #allocation1 [shape = 'u32[144,128]{1,0:T(1,128)}', space=vmem, size = 0x12000, scoped, tag = 'internal scratch']
  %s0 = inlined_call_operand.vmem [shape: bf16[512,36], index: 0, kind: input, shape index: {}]
  %s1 = inlined_call_operand.vmem [shape: bf16[36,8], index: 1, kind: input, shape index: {}]
  %s2 = inlined_call_operand.vmem [shape: f32[1,8], index: 2, kind: input, shape index: {}]
  %s3 = inlined_call_operand.vmem [shape: bf16[512,8], index: 3, kind: output, shape index: {}]
  %s4 = sld [smem:[#allocation0]]
  $region45: #{unet_forward.10} parent=0
    _
  %s6 = ssub.s32 1, %s4
  %s7 = scalar_select 0, %s6, %s4
  loop: start=0, step=1, limit=4
  $region2: #{unet_forward.10} parent=0 // loop_pre_header
    _
  $region3: #{unet_forward.10} parent=0 // loop_header
    %s9 = sphi 0, %s13
    %p10 = scmp.ge.s32.totalorder %s9, 4
    %s19 = sphi 0, %s21
    %s22 = sphi 0, %s19
    %s23 = sphi 0, %s22
    %s39 = sphi 0, %s23
    %s43 = sphi 0, %s43
    %s45 = sphi 0, %s43
    %s46 = sphi 0, %s45
    %s60 = sphi 0, %s46
    %s64 = sphi 0, %s64
    %s66 = sphi 0, %s64
    %s67 = sphi 0, %s66
    %s81 = sphi 0, %s67
    %s87 = sphi 0, %s89
    %s90 = sphi 0, %s87
    %s91 = sphi 0, %s90
    %s107 = sphi 0, %s91
  $region4: #{unet_forward.10} parent=0 // loop_header_branch
    %12 = sbr.rel (%p10) target = $region8
  $region5: #{unet_forward.10} parent=0 // loop_body
    %s14 = ssub.s32 %s9, 1
    %s15 = ssub.s32 %s9, 2
    %s16 = sadd.s32 %s9, 1
    %s17 = ssub.s32 %s9, %s16
    %p18 = scmp.eq.s32.totalorder %s17, 0
    %s20 = sadd.s32 %s19, 1
    %s21 = scalar_select %p18, %s19, %s20
    %p24 = pneg %p18
    %p25 = scmp.eq.s32.totalorder %s9, 1
    %p26 = por %p24, %p25
    %p27 = scmp.ne.s32.totalorder %s19, %s22
    %p28 = scmp.eq.s32.totalorder %s9, 0
    %p29 = por %p27, %p28
    %p30 = scmp.ne.s32.totalorder %s19, %s22
    %p31 = scmp.eq.s32.totalorder %s14, 1
    %p32 = por %p30, %p31
    %p33 = scmp.ne.s32.totalorder %s22, %s23
    %p34 = scmp.eq.s32.totalorder %s14, 0
    %p35 = por %p33, %p34
    %p36 = scmp.ne.s32.totalorder %s22, %s23
    %p37 = scmp.eq.s32.totalorder %s15, 1
    %p38 = por %p36, %p37
    %p40 = scmp.ne.s32.totalorder %s23, %s39
    %p41 = scmp.eq.s32.totalorder %s15, 0
    %p42 = por %p40, %p41
    %s44 = sadd.s32 %s43, 1
    %p47 = scmp.eq.s32.totalorder %s9, 1
    %p48 = scmp.ne.s32.totalorder %s43, %s45
    %p49 = scmp.eq.s32.totalorder %s9, 0
    %p50 = por %p48, %p49
    %p51 = scmp.ne.s32.totalorder %s43, %s45
    %p52 = scmp.eq.s32.totalorder %s14, 1
    %p53 = por %p51, %p52
    %p54 = scmp.ne.s32.totalorder %s45, %s46
    %p55 = scmp.eq.s32.totalorder %s14, 0
    %p56 = por %p54, %p55
    %p57 = scmp.ne.s32.totalorder %s45, %s46
    %p58 = scmp.eq.s32.totalorder %s15, 1
    %p59 = por %p57, %p58
    %p61 = scmp.ne.s32.totalorder %s46, %s60
    %p62 = scmp.eq.s32.totalorder %s15, 0
    %p63 = por %p61, %p62
    %s65 = sadd.s32 %s64, 1
    %p68 = scmp.eq.s32.totalorder %s9, 1
    %p69 = scmp.ne.s32.totalorder %s64, %s66
    %p70 = scmp.eq.s32.totalorder %s9, 0
    %p71 = por %p69, %p70
    %p72 = scmp.ne.s32.totalorder %s64, %s66
    %p73 = scmp.eq.s32.totalorder %s14, 1
    %p74 = por %p72, %p73
    %p75 = scmp.ne.s32.totalorder %s66, %s67
    %p76 = scmp.eq.s32.totalorder %s14, 0
    %p77 = por %p75, %p76
    %p78 = scmp.ne.s32.totalorder %s66, %s67
    %p79 = scmp.eq.s32.totalorder %s15, 1
    %p80 = por %p78, %p79
    %p82 = scmp.ne.s32.totalorder %s67, %s81
    %p83 = scmp.eq.s32.totalorder %s15, 0
    %p84 = por %p82, %p83
    %s85 = ssub.s32 %s9, %s16
    %p86 = scmp.eq.s32.totalorder %s85, 0
    %s88 = sadd.s32 %s87, 1
    %s89 = scalar_select %p86, %s87, %s88
    %p92 = pneg %p86
    %p93 = scmp.eq.s32.totalorder %s9, 1
    %p94 = por %p92, %p93
    %p95 = scmp.ne.s32.totalorder %s87, %s90
    %p96 = scmp.eq.s32.totalorder %s9, 0
    %p97 = por %p95, %p96
    %p98 = scmp.ne.s32.totalorder %s87, %s90
    %p99 = scmp.eq.s32.totalorder %s14, 1
    %p100 = por %p98, %p99
    %p101 = scmp.ne.s32.totalorder %s90, %s91
    %p102 = scmp.eq.s32.totalorder %s14, 0
    %p103 = por %p101, %p102
    %p104 = scmp.ne.s32.totalorder %s90, %s91
    %p105 = scmp.eq.s32.totalorder %s15, 1
    %p106 = por %p104, %p105
    %p108 = scmp.ne.s32.totalorder %s91, %s107
    %p109 = scmp.eq.s32.totalorder %s15, 0
    %p110 = por %p108, %p109
    %p111 = scmp.le.s32.totalorder 1, %s9
    %p112 = scmp.lt.s32.totalorder %s9, 3
    %p113 = pnand %p111, %p112
    %p114 = pneg %p113
    // Predicated region
    $region9: #{unet_forward.10} parent=5 // pred_check
      _
    $region10: #{unet_forward.10} parent=5 // pred_check_branch
      %116 = sbr.rel (%p113) target = $region12
    $region11: #{unet_forward.10} parent=5 // pred_region
      %s117 = ssub.s32 %s9, 1
      // Predicated region
      $region13: #{unet_forward.10} parent=11 // pred_check
        %p118 = pneg %p56
      $region14: #{unet_forward.10} parent=11 // pred_check_branch
        %120 = sbr.rel (%p118) target = $region16
      $region15: #{unet_forward.10} parent=11 // pred_region
        _
      $region16: #{unet_forward.10} parent=11 // pred_fallthru
        _
      // Predicated region
      $region17: #{unet_forward.10} parent=11 // pred_check
        %p121 = pneg %p77
      $region18: #{unet_forward.10} parent=11 // pred_check_branch
        %123 = sbr.rel (%p121) target = $region20
      $region19: #{unet_forward.10} parent=11 // pred_region
        _
      $region20: #{unet_forward.10} parent=11 // pred_fallthru
        _
    $region12: #{unet_forward.10} parent=5 // pred_fallthru
      _
    %p124 = scmp.lt.s32.totalorder %s9, 2
    // Predicated region
    $region21: #{unet_forward.10} parent=5 // pred_check
      %p125 = pneg %p124
    $region22: #{unet_forward.10} parent=5 // pred_check_branch
      %127 = sbr.rel (%p125) target = $region24
    $region23: #{unet_forward.10} parent=5 // pred_region
      // Predicated region
      $region25: #{unet_forward.10} parent=23 // pred_check
        %p128 = pneg %p29
      $region26: #{unet_forward.10} parent=23 // pred_check_branch
        %130 = sbr.rel (%p128) target = $region28
      $region27: #{unet_forward.10} parent=23 // pred_region
        %s131 = smul.u32 32, %s9
        %p132 = scmp.lt.s32.totalorder %s131, 63
        %s133 = scalar_select %p132, %s131, 63
        %s134 = smul.addr %s133, 4
        %s135 = scalar_lea.vmem %s0, %s134
        %s136 = smul.u32 32, %s9
      $region28: #{unet_forward.10} parent=23 // pred_fallthru
        _
    $region24: #{unet_forward.10} parent=5 // pred_fallthru
      _
    %p137 = scmp.le.s32.totalorder 1, %s9
    %p138 = scmp.lt.s32.totalorder %s9, 3
    %p139 = pnand %p137, %p138
    %p140 = pneg %p139
    // Predicated region
    $region29: #{unet_forward.10} parent=5 // pred_check
      _
    $region30: #{unet_forward.10} parent=5 // pred_check_branch
      %142 = sbr.rel (%p139) target = $region32
    $region31: #{unet_forward.10} parent=5 // pred_region
      %s143 = ssub.s32 %s9, 1
      %s144 = smul.u32 32, %s14
      %p145 = scmp.lt.s32.totalorder %s144, 63
      %s146 = scalar_select %p145, %s144, 63
      %s147 = smul.addr %s146, 4
      %s148 = scalar_lea.vmem %s0, %s147
      %p149 = pneg %p35
      %p150 = pneg %p32
      %p151 = pneg %p56
      %p152 = pneg %p53
      %p153 = pneg %p77
      %p154 = pneg %p74
      %p155 = pneg %p103
      %p156 = pneg %p100
      %s157 = smul.u32 32, %s14
      %p158 = scmp.lt.s32.totalorder %s157, 63
      %s159 = scalar_select %p158, %s157, 63
      %s160 = smul.addr %s159, 4
      %s161 = scalar_lea.vmem %s3, %s160
      %s162 = smul.u32 32, %s14
      %p163 = scmp.lt.s32.totalorder %s162, 63
      %s164 = scalar_select %p163, %s162, 63
      %s165 = smul.addr %s164, 4
      %s166 = scalar_lea.vmem %s0, %s165
      %s167 = smul.u32 32, %s14
      %s168 = smul.u32 32, %s14
      %p169 = scmp.lt.s32.totalorder %s168, 63
      %s170 = scalar_select %p169, %s168, 63
      %s171 = smul.addr %s170, 4
      %s172 = scalar_lea.vmem %s3, %s171
      %s173 = smul.u32 32, %s14
      %v175 = vld [vmem:[%s166] sm:$0xf]
      %v176 = vld [vmem:[%s166 + $0x4] sm:$0xf]
      %v177 = vld [vmem:[%s166 + $0x8] sm:$0xf]
      %v178 = vld [vmem:[%s166 + $0xc] sm:$0xf]
      %v179 = vld [vmem:[%s166 + $0x10] sm:$0xf]
      %v180 = vld [vmem:[%s166 + $0x14] sm:$0xf]
      %v181 = vld [vmem:[%s166 + $0x18] sm:$0xf]
      %v182 = vld [vmem:[%s166 + $0x1c] sm:$0xf]
      %v183 = vld [vmem:[%s166 + $0x20] sm:$0xf]
      %v184 = vld [vmem:[%s166 + $0x24] sm:$0xf]
      %v185 = vld [vmem:[%s166 + $0x28] sm:$0xf]
      %v186 = vld [vmem:[%s166 + $0x2c] sm:$0xf]
      %v187 = vld [vmem:[%s166 + $0x30] sm:$0xf]
      %v188 = vld [vmem:[%s166 + $0x34] sm:$0xf]
      %v189 = vld [vmem:[%s166 + $0x38] sm:$0xf]
      %v190 = vld [vmem:[%s166 + $0x3c] sm:$0xf]
      %v191 = vld [vmem:[%s166 + $0x40] sm:$0xf]
      %v192 = vld [vmem:[%s166 + $0x44] sm:$0xf]
      %v193 = vld [vmem:[%s166 + $0x48] sm:$0xf]
      %v194 = vld [vmem:[%s166 + $0x4c] sm:$0xf]
      %v195 = vld [vmem:[%s166 + $0x50] sm:$0xf]
      %v196 = vld [vmem:[%s166 + $0x54] sm:$0xf]
      %v197 = vld [vmem:[%s166 + $0x58] sm:$0xf]
      %v198 = vld [vmem:[%s166 + $0x5c] sm:$0xf]
      %v199 = vld [vmem:[%s166 + $0x60] sm:$0xf]
      %v200 = vld [vmem:[%s166 + $0x64] sm:$0xf]
      %v201 = vld [vmem:[%s166 + $0x68] sm:$0xf]
      %v202 = vld [vmem:[%s166 + $0x6c] sm:$0xf]
      %v203 = vld [vmem:[%s166 + $0x70] sm:$0xf]
      %v204 = vld [vmem:[%s166 + $0x74] sm:$0xf]
      %v205 = vld [vmem:[%s166 + $0x78] sm:$0xf]
      %v206 = vld [vmem:[%s166 + $0x7c] sm:$0xf]
      %v207 = vld [vmem:[%s1] sm:$0xf]
      %v208 = vld [vmem:[%s1 + $0x4] sm:$0xf]
      %v209 = vld [vmem:[%s1 + $0x8] sm:$0xf]
      %v210 = vld [vmem:[%s1 + $0xc] sm:$0xf]
      %v211 = vld [vmem:[%s1 + $0x10] sm:$0x3]
      %v212 = vld [vmem:[%s2] sm:$0x1]
      %v214 = vlaneseq
      %v215 = vshrl.u32 %v214, 7
      %v216 = vsub.s32 0, %v215
      %v217 = vrot.slane %v212, %v216
      %v251 = vunpack.c.l.b16 %v175
      %v252 = vunpack.c.l.b16 %v176
      %v253 = vunpack.c.l.b16 %v177
      %v254 = vunpack.c.l.b16 %v178
      %v255 = vunpack.c.l.b16 %v179
      %v256 = vunpack.c.l.b16 %v180
      %v257 = vunpack.c.l.b16 %v181
      %v258 = vunpack.c.l.b16 %v182
      %v259 = vunpack.c.l.b16 %v183
      %v260 = vunpack.c.l.b16 %v184
      %v261 = vunpack.c.l.b16 %v185
      %v262 = vunpack.c.l.b16 %v186
      %v263 = vunpack.c.l.b16 %v187
      %v264 = vunpack.c.l.b16 %v188
      %v265 = vunpack.c.l.b16 %v189
      %v266 = vunpack.c.l.b16 %v190
      %v267 = vunpack.c.l.b16 %v191
      %v268 = vunpack.c.l.b16 %v192
      %v269 = vunpack.c.l.b16 %v193
      %v270 = vunpack.c.l.b16 %v194
      %v271 = vunpack.c.l.b16 %v195
      %v272 = vunpack.c.l.b16 %v196
      %v273 = vunpack.c.l.b16 %v197
      %v274 = vunpack.c.l.b16 %v198
      %v275 = vunpack.c.l.b16 %v199
      %v276 = vunpack.c.l.b16 %v200
      %v277 = vunpack.c.l.b16 %v201
      %v278 = vunpack.c.l.b16 %v202
      %v279 = vunpack.c.l.b16 %v203
      %v280 = vunpack.c.l.b16 %v204
      %v281 = vunpack.c.l.b16 %v205
      %v282 = vunpack.c.l.b16 %v206
      %v283 = vpack.c.b16 %v252, %v251
      %v284 = vpack.c.b16 %v254, %v253
      %v285 = vpack.c.b16 %v256, %v255
      %v286 = vpack.c.b16 %v258, %v257
      %v287 = vpack.c.b16 %v260, %v259
      %v288 = vpack.c.b16 %v262, %v261
      %v289 = vpack.c.b16 %v264, %v263
      %v290 = vpack.c.b16 %v266, %v265
      %v291 = vpack.c.b16 %v268, %v267
      %v292 = vpack.c.b16 %v270, %v269
      %v293 = vpack.c.b16 %v272, %v271
      %v294 = vpack.c.b16 %v274, %v273
      %v295 = vpack.c.b16 %v276, %v275
      %v296 = vpack.c.b16 %v278, %v277
      %v297 = vpack.c.b16 %v280, %v279
      %v298 = vpack.c.b16 %v282, %v281
      %v304 = vunpack.c.l.b16 %v207
      %v305 = vunpack.c.l.b16 %v208
      %v306 = vunpack.c.l.b16 %v209
      %v307 = vunpack.c.l.b16 %v210
      %v308 = vunpack.c.l.b16 %v211
      %v309 = vpack.c.b16 %v305, %v304
      %v310 = vpack.c.b16 %v307, %v306
      %v311 = vpack.c.b16 %v308, %v308
      %vm314 = vcmask 293888
      %v316 = vsel %vm314, %v283, 0
      %v319 = vsel %vm314, %v284, 0
      %v322 = vsel %vm314, %v285, 0
      %v325 = vsel %vm314, %v286, 0
      %v328 = vsel %vm314, %v287, 0
      %v331 = vsel %vm314, %v288, 0
      %v334 = vsel %vm314, %v289, 0
      %v337 = vsel %vm314, %v290, 0
      %v340 = vsel %vm314, %v291, 0
      %v343 = vsel %vm314, %v292, 0
      %v346 = vsel %vm314, %v293, 0
      %v349 = vsel %vm314, %v294, 0
      %v352 = vsel %vm314, %v295, 0
      %v355 = vsel %vm314, %v296, 0
      %v358 = vsel %vm314, %v297, 0
      %v361 = vsel %vm314, %v298, 0
      %vm363 = vcmask 1041408
      %v365 = vsel %vm363, %v311, 0
      %367 = vmatprep.subr.bf16.mxu0 0
      %368 = vmatpush1.bf16.msra.mxu0 %v309
      %369 = vmatprep.subr.bf16.mxu0 0
      %370 = vmatpush1.bf16.msra.mxu0 %v310
      %371 = vmatprep.subr.bf16.mxu0 0
      %372 = vmatpush1.bf16.msra.mxu0 %v365
      %373 = vmatprep.subr.bf16.mxu0 0
      %374 = vmatpush1.bf16.msra.mxu0 0
      %375 = vmatprep.subr.bf16.mxu0 0
      %376 = vmatpush1.bf16.msra.mxu0 0
      %377 = vmatprep.subr.bf16.mxu0 0
      %378 = vmatpush1.bf16.msra.mxu0 0
      %379 = vmatprep.subr.bf16.mxu0 0
      %380 = vmatpush1.bf16.msra.mxu0 0
      %381 = vmatprep.subr.bf16.mxu0 0
      %382 = vmatpush1.bf16.msra.mxu0 0
      %383 = vmatprep.subr.bf16.mxu0 0
      %384 = vmatpush1.bf16.msra.mxu0 0
      %385 = vmatprep.subr.bf16.mxu0 0
      %386 = vmatpush1.bf16.msra.mxu0 0
      %387 = vmatprep.subr.bf16.mxu0 0
      %388 = vmatpush1.bf16.msra.mxu0 0
      %389 = vmatprep.subr.bf16.mxu0 0
      %390 = vmatpush1.bf16.msra.mxu0 0
      %391 = vmatprep.subr.bf16.mxu0 0
      %392 = vmatpush1.bf16.msra.mxu0 0
      %393 = vmatprep.subr.bf16.mxu0 0
      %394 = vmatpush1.bf16.msra.mxu0 0
      %395 = vmatprep.subr.bf16.mxu0 0
      %396 = vmatpush1.bf16.msra.mxu0 0
      %397 = vmatprep.subr.bf16.mxu0 0
      %398 = vmatpush1.bf16.msra.mxu0 0
      %399 = vmatprep.mubr.bf16.mxu0 0
      %400 = vmatmul.mubr.bf16.gmra.mrb[0].mxu0 %v316
      %v401 = vpop.f32.mrb[0].mxu0
      %v402 = vadd.f32 %v217, %v401
      %v403 = vpop.f32.mrb[0].mxu0
      %v404 = vpop.f32.mrb[0].mxu0
      %v405 = vadd.f32 %v217, %v404
      %v406 = vpop.f32.mrb[0].mxu0
      %407 = vmatprep.mubr.bf16.mxu0 0
      %408 = vmatmul.mubr.bf16.gmra.mrb[0].mxu0 %v319
      %v409 = vpop.f32.mrb[0].mxu0
      %v410 = vadd.f32 %v217, %v409
      %v411 = vpop.f32.mrb[0].mxu0
      %v412 = vpop.f32.mrb[0].mxu0
      %v413 = vadd.f32 %v217, %v412
      %v414 = vpop.f32.mrb[0].mxu0
      %415 = vmatprep.mubr.bf16.mxu0 0
      %416 = vmatmul.mubr.bf16.gmra.mrb[0].mxu0 %v322
      %v417 = vpop.f32.mrb[0].mxu0
      %v418 = vadd.f32 %v217, %v417
      %v419 = vpop.f32.mrb[0].mxu0
      %v420 = vpop.f32.mrb[0].mxu0
      %v421 = vadd.f32 %v217, %v420
      %v422 = vpop.f32.mrb[0].mxu0
      %423 = vmatprep.mubr.bf16.mxu0 0
      %424 = vmatmul.mubr.bf16.gmra.mrb[0].mxu0 %v325
      %v425 = vpop.f32.mrb[0].mxu0
      %v426 = vadd.f32 %v217, %v425
      %v427 = vpop.f32.mrb[0].mxu0
      %v428 = vpop.f32.mrb[0].mxu0
      %v429 = vadd.f32 %v217, %v428
      %v430 = vpop.f32.mrb[0].mxu0
      %431 = vmatprep.mubr.bf16.mxu0 0
      %432 = vmatmul.mubr.bf16.gmra.mrb[0].mxu0 %v328
      %v433 = vpop.f32.mrb[0].mxu0
      %v434 = vadd.f32 %v217, %v433
      %v435 = vpop.f32.mrb[0].mxu0
      %v436 = vpop.f32.mrb[0].mxu0
      %v437 = vadd.f32 %v217, %v436
      %v438 = vpop.f32.mrb[0].mxu0
      %439 = vmatprep.mubr.bf16.mxu0 0
      %440 = vmatmul.mubr.bf16.gmra.mrb[0].mxu0 %v331
      %v441 = vpop.f32.mrb[0].mxu0
      %v442 = vadd.f32 %v217, %v441
      %v443 = vpop.f32.mrb[0].mxu0
      %v444 = vpop.f32.mrb[0].mxu0
      %v445 = vadd.f32 %v217, %v444
      %v446 = vpop.f32.mrb[0].mxu0
      %447 = vmatprep.mubr.bf16.mxu0 0
      %448 = vmatmul.mubr.bf16.gmra.mrb[0].mxu0 %v334
      %v449 = vpop.f32.mrb[0].mxu0
      %v450 = vadd.f32 %v217, %v449
      %v451 = vpop.f32.mrb[0].mxu0
      %v452 = vpop.f32.mrb[0].mxu0
      %v453 = vadd.f32 %v217, %v452
      %v454 = vpop.f32.mrb[0].mxu0
      %455 = vmatprep.mubr.bf16.mxu0 0
      %456 = vmatmul.mubr.bf16.gmra.mrb[0].mxu0 %v337
      %v457 = vpop.f32.mrb[0].mxu0
      %v458 = vadd.f32 %v217, %v457
      %v459 = vpop.f32.mrb[0].mxu0
      %v460 = vpop.f32.mrb[0].mxu0
      %v461 = vadd.f32 %v217, %v460
      %v462 = vpop.f32.mrb[0].mxu0
      %463 = vmatprep.mubr.bf16.mxu0 0
      %464 = vmatmul.mubr.bf16.gmra.mrb[0].mxu0 %v340
      %v465 = vpop.f32.mrb[0].mxu0
      %v466 = vadd.f32 %v217, %v465
      %v467 = vpop.f32.mrb[0].mxu0
      %v468 = vpop.f32.mrb[0].mxu0
      %v469 = vadd.f32 %v217, %v468
      %v470 = vpop.f32.mrb[0].mxu0
      %471 = vmatprep.mubr.bf16.mxu0 0
      %472 = vmatmul.mubr.bf16.gmra.mrb[0].mxu0 %v343
      %v473 = vpop.f32.mrb[0].mxu0
      %v474 = vadd.f32 %v217, %v473
      %v475 = vpop.f32.mrb[0].mxu0
      %v476 = vpop.f32.mrb[0].mxu0
      %v477 = vadd.f32 %v217, %v476
      %v478 = vpop.f32.mrb[0].mxu0
      %479 = vmatprep.mubr.bf16.mxu0 0
      %480 = vmatmul.mubr.bf16.gmra.mrb[0].mxu0 %v346
      %v481 = vpop.f32.mrb[0].mxu0
      %v482 = vadd.f32 %v217, %v481
      %v483 = vpop.f32.mrb[0].mxu0
      %v484 = vpop.f32.mrb[0].mxu0
      %v485 = vadd.f32 %v217, %v484
      %v486 = vpop.f32.mrb[0].mxu0
      %487 = vmatprep.mubr.bf16.mxu0 0
      %488 = vmatmul.mubr.bf16.gmra.mrb[0].mxu0 %v349
      %v489 = vpop.f32.mrb[0].mxu0
      %v490 = vadd.f32 %v217, %v489
      %v491 = vpop.f32.mrb[0].mxu0
      %v492 = vpop.f32.mrb[0].mxu0
      %v493 = vadd.f32 %v217, %v492
      %v494 = vpop.f32.mrb[0].mxu0
      %495 = vmatprep.mubr.bf16.mxu0 0
      %496 = vmatmul.mubr.bf16.gmra.mrb[0].mxu0 %v352
      %v497 = vpop.f32.mrb[0].mxu0
      %v498 = vadd.f32 %v217, %v497
      %v499 = vpop.f32.mrb[0].mxu0
      %v500 = vpop.f32.mrb[0].mxu0
      %v501 = vadd.f32 %v217, %v500
      %v502 = vpop.f32.mrb[0].mxu0
      %503 = vmatprep.mubr.bf16.mxu0 0
      %504 = vmatmul.mubr.bf16.gmra.mrb[0].mxu0 %v355
      %v505 = vpop.f32.mrb[0].mxu0
      %v506 = vadd.f32 %v217, %v505
      %v507 = vpop.f32.mrb[0].mxu0
      %v508 = vpop.f32.mrb[0].mxu0
      %v509 = vadd.f32 %v217, %v508
      %v510 = vpop.f32.mrb[0].mxu0
      %511 = vmatprep.mubr.bf16.mxu0 0
      %512 = vmatmul.mubr.bf16.gmra.mrb[0].mxu0 %v358
      %v513 = vpop.f32.mrb[0].mxu0
      %v514 = vadd.f32 %v217, %v513
      %v515 = vpop.f32.mrb[0].mxu0
      %v516 = vpop.f32.mrb[0].mxu0
      %v517 = vadd.f32 %v217, %v516
      %v518 = vpop.f32.mrb[0].mxu0
      %519 = vmatprep.mubr.bf16.mxu0 0
      %520 = vmatmul.mubr.bf16.gmra.mrb[0].mxu0 %v361
      %v521 = vpop.f32.mrb[0].mxu0
      %v522 = vadd.f32 %v217, %v521
      %v523 = vpop.f32.mrb[0].mxu0
      %v524 = vpop.f32.mrb[0].mxu0
      %v525 = vadd.f32 %v217, %v524
      %v526 = vpop.f32.mrb[0].mxu0
      %527 = vdwg.mxu0
      %vm528 = vcmp.ge.f32.partialorder %v402, 0.0
      %vm529 = vcmp.ge.f32.partialorder %v405, 0.0
      %vm530 = vcmp.ge.f32.partialorder %v410, 0.0
      %vm531 = vcmp.ge.f32.partialorder %v413, 0.0
      %vm532 = vcmp.ge.f32.partialorder %v418, 0.0
      %vm533 = vcmp.ge.f32.partialorder %v421, 0.0
      %vm534 = vcmp.ge.f32.partialorder %v426, 0.0
      %vm535 = vcmp.ge.f32.partialorder %v429, 0.0
      %vm536 = vcmp.ge.f32.partialorder %v434, 0.0
      %vm537 = vcmp.ge.f32.partialorder %v437, 0.0
      %vm538 = vcmp.ge.f32.partialorder %v442, 0.0
      %vm539 = vcmp.ge.f32.partialorder %v445, 0.0
      %vm540 = vcmp.ge.f32.partialorder %v450, 0.0
      %vm541 = vcmp.ge.f32.partialorder %v453, 0.0
      %vm542 = vcmp.ge.f32.partialorder %v458, 0.0
      %vm543 = vcmp.ge.f32.partialorder %v461, 0.0
      %vm544 = vcmp.ge.f32.partialorder %v466, 0.0
      %vm545 = vcmp.ge.f32.partialorder %v469, 0.0
      %vm546 = vcmp.ge.f32.partialorder %v474, 0.0
      %vm547 = vcmp.ge.f32.partialorder %v477, 0.0
      %vm548 = vcmp.ge.f32.partialorder %v482, 0.0
      %vm549 = vcmp.ge.f32.partialorder %v485, 0.0
      %vm550 = vcmp.ge.f32.partialorder %v490, 0.0
      %vm551 = vcmp.ge.f32.partialorder %v493, 0.0
      %vm552 = vcmp.ge.f32.partialorder %v498, 0.0
      %vm553 = vcmp.ge.f32.partialorder %v501, 0.0
      %vm554 = vcmp.ge.f32.partialorder %v506, 0.0
      %vm555 = vcmp.ge.f32.partialorder %v509, 0.0
      %vm556 = vcmp.ge.f32.partialorder %v514, 0.0
      %vm557 = vcmp.ge.f32.partialorder %v517, 0.0
      %vm558 = vcmp.ge.f32.partialorder %v522, 0.0
      %vm559 = vcmp.ge.f32.partialorder %v525, 0.0
      %v560 = vmul.f32 %v402, 0.01
      %v561 = vmul.f32 %v405, 0.01
      %v562 = vmul.f32 %v410, 0.01
      %v563 = vmul.f32 %v413, 0.01
      %v564 = vmul.f32 %v418, 0.01
      %v565 = vmul.f32 %v421, 0.01
      %v566 = vmul.f32 %v426, 0.01
      %v567 = vmul.f32 %v429, 0.01
      %v568 = vmul.f32 %v434, 0.01
      %v569 = vmul.f32 %v437, 0.01
      %v570 = vmul.f32 %v442, 0.01
      %v571 = vmul.f32 %v445, 0.01
      %v572 = vmul.f32 %v450, 0.01
      %v573 = vmul.f32 %v453, 0.01
      %v574 = vmul.f32 %v458, 0.01
      %v575 = vmul.f32 %v461, 0.01
      %v576 = vmul.f32 %v466, 0.01
      %v577 = vmul.f32 %v469, 0.01
      %v578 = vmul.f32 %v474, 0.01
      %v579 = vmul.f32 %v477, 0.01
      %v580 = vmul.f32 %v482, 0.01
      %v581 = vmul.f32 %v485, 0.01
      %v582 = vmul.f32 %v490, 0.01
      %v583 = vmul.f32 %v493, 0.01
      %v584 = vmul.f32 %v498, 0.01
      %v585 = vmul.f32 %v501, 0.01
      %v586 = vmul.f32 %v506, 0.01
      %v587 = vmul.f32 %v509, 0.01
      %v588 = vmul.f32 %v514, 0.01
      %v589 = vmul.f32 %v517, 0.01
      %v590 = vmul.f32 %v522, 0.01
      %v591 = vmul.f32 %v525, 0.01
      %v592 = vsel %vm528, %v402, %v560
      %v593 = vsel %vm529, %v405, %v561
      %v594 = vsel %vm530, %v410, %v562
      %v595 = vsel %vm531, %v413, %v563
      %v596 = vsel %vm532, %v418, %v564
      %v597 = vsel %vm533, %v421, %v565
      %v598 = vsel %vm534, %v426, %v566
      %v599 = vsel %vm535, %v429, %v567
      %v600 = vsel %vm536, %v434, %v568
      %v601 = vsel %vm537, %v437, %v569
      %v602 = vsel %vm538, %v442, %v570
      %v603 = vsel %vm539, %v445, %v571
      %v604 = vsel %vm540, %v450, %v572
      %v605 = vsel %vm541, %v453, %v573
      %v606 = vsel %vm542, %v458, %v574
      %v607 = vsel %vm543, %v461, %v575
      %v608 = vsel %vm544, %v466, %v576
      %v609 = vsel %vm545, %v469, %v577
      %v610 = vsel %vm546, %v474, %v578
      %v611 = vsel %vm547, %v477, %v579
      %v612 = vsel %vm548, %v482, %v580
      %v613 = vsel %vm549, %v485, %v581
      %v614 = vsel %vm550, %v490, %v582
      %v615 = vsel %vm551, %v493, %v583
      %v616 = vsel %vm552, %v498, %v584
      %v617 = vsel %vm553, %v501, %v585
      %v618 = vsel %vm554, %v506, %v586
      %v619 = vsel %vm555, %v509, %v587
      %v620 = vsel %vm556, %v514, %v588
      %v621 = vsel %vm557, %v517, %v589
      %v622 = vsel %vm558, %v522, %v590
      %v623 = vsel %vm559, %v525, %v591
      %v624 = vpack.c.bf16 %v593, %v592
      %v625 = vpack.c.bf16 %v595, %v594
      %v626 = vpack.c.bf16 %v597, %v596
      %v627 = vpack.c.bf16 %v599, %v598
      %v628 = vpack.c.bf16 %v601, %v600
      %v629 = vpack.c.bf16 %v603, %v602
      %v630 = vpack.c.bf16 %v605, %v604
      %v631 = vpack.c.bf16 %v607, %v606
      %v632 = vpack.c.bf16 %v609, %v608
      %v633 = vpack.c.bf16 %v611, %v610
      %v634 = vpack.c.bf16 %v613, %v612
      %v635 = vpack.c.bf16 %v615, %v614
      %v636 = vpack.c.bf16 %v617, %v616
      %v637 = vpack.c.bf16 %v619, %v618
      %v638 = vpack.c.bf16 %v621, %v620
      %v639 = vpack.c.bf16 %v623, %v622
      %v656 = vunpack.c.l.b16 %v624
      %v657 = vunpack.c.h.b16 %v624
      %v658 = vunpack.c.l.b16 %v625
      %v659 = vunpack.c.h.b16 %v625
      %v660 = vunpack.c.l.b16 %v626
      %v661 = vunpack.c.h.b16 %v626
      %v662 = vunpack.c.l.b16 %v627
      %v663 = vunpack.c.h.b16 %v627
      %v664 = vunpack.c.l.b16 %v628
      %v665 = vunpack.c.h.b16 %v628
      %v666 = vunpack.c.l.b16 %v629
      %v667 = vunpack.c.h.b16 %v629
      %v668 = vunpack.c.l.b16 %v630
      %v669 = vunpack.c.h.b16 %v630
      %v670 = vunpack.c.l.b16 %v631
      %v671 = vunpack.c.h.b16 %v631
      %v672 = vunpack.c.l.b16 %v632
      %v673 = vunpack.c.h.b16 %v632
      %v674 = vunpack.c.l.b16 %v633
      %v675 = vunpack.c.h.b16 %v633
      %v676 = vunpack.c.l.b16 %v634
      %v677 = vunpack.c.h.b16 %v634
      %v678 = vunpack.c.l.b16 %v635
      %v679 = vunpack.c.h.b16 %v635
      %v680 = vunpack.c.l.b16 %v636
      %v681 = vunpack.c.h.b16 %v636
      %v682 = vunpack.c.l.b16 %v637
      %v683 = vunpack.c.h.b16 %v637
      %v684 = vunpack.c.l.b16 %v638
      %v685 = vunpack.c.h.b16 %v638
      %v686 = vunpack.c.l.b16 %v639
      %v687 = vunpack.c.h.b16 %v639
      %v688 = vpack.c.b16 %v656, %v656
      %v689 = vpack.c.b16 %v657, %v657
      %v690 = vpack.c.b16 %v658, %v658
      %v691 = vpack.c.b16 %v659, %v659
      %v692 = vpack.c.b16 %v660, %v660
      %v693 = vpack.c.b16 %v661, %v661
      %v694 = vpack.c.b16 %v662, %v662
      %v695 = vpack.c.b16 %v663, %v663
      %v696 = vpack.c.b16 %v664, %v664
      %v697 = vpack.c.b16 %v665, %v665
      %v698 = vpack.c.b16 %v666, %v666
      %v699 = vpack.c.b16 %v667, %v667
      %v700 = vpack.c.b16 %v668, %v668
      %v701 = vpack.c.b16 %v669, %v669
      %v702 = vpack.c.b16 %v670, %v670
      %v703 = vpack.c.b16 %v671, %v671
      %v704 = vpack.c.b16 %v672, %v672
      %v705 = vpack.c.b16 %v673, %v673
      %v706 = vpack.c.b16 %v674, %v674
      %v707 = vpack.c.b16 %v675, %v675
      %v708 = vpack.c.b16 %v676, %v676
      %v709 = vpack.c.b16 %v677, %v677
      %v710 = vpack.c.b16 %v678, %v678
      %v711 = vpack.c.b16 %v679, %v679
      %v712 = vpack.c.b16 %v680, %v680
      %v713 = vpack.c.b16 %v681, %v681
      %v714 = vpack.c.b16 %v682, %v682
      %v715 = vpack.c.b16 %v683, %v683
      %v716 = vpack.c.b16 %v684, %v684
      %v717 = vpack.c.b16 %v685, %v685
      %v718 = vpack.c.b16 %v686, %v686
      %v719 = vpack.c.b16 %v687, %v687
      %vm752 = vcmask 60416
      %753 = vst.msk [vmem:[%s172] sm:$0xf] %vm752, %v688
      %754 = vst.msk [vmem:[%s172 + $0x4] sm:$0xf] %vm752, %v689
      %755 = vst.msk [vmem:[%s172 + $0x8] sm:$0xf] %vm752, %v690
      %756 = vst.msk [vmem:[%s172 + $0xc] sm:$0xf] %vm752, %v691
      %757 = vst.msk [vmem:[%s172 + $0x10] sm:$0xf] %vm752, %v692
      %758 = vst.msk [vmem:[%s172 + $0x14] sm:$0xf] %vm752, %v693
      %759 = vst.msk [vmem:[%s172 + $0x18] sm:$0xf] %vm752, %v694
      %760 = vst.msk [vmem:[%s172 + $0x1c] sm:$0xf] %vm752, %v695
      %761 = vst.msk [vmem:[%s172 + $0x20] sm:$0xf] %vm752, %v696
      %762 = vst.msk [vmem:[%s172 + $0x24] sm:$0xf] %vm752, %v697
      %763 = vst.msk [vmem:[%s172 + $0x28] sm:$0xf] %vm752, %v698
      %764 = vst.msk [vmem:[%s172 + $0x2c] sm:$0xf] %vm752, %v699
      %765 = vst.msk [vmem:[%s172 + $0x30] sm:$0xf] %vm752, %v700
      %766 = vst.msk [vmem:[%s172 + $0x34] sm:$0xf] %vm752, %v701
      %767 = vst.msk [vmem:[%s172 + $0x38] sm:$0xf] %vm752, %v702
      %768 = vst.msk [vmem:[%s172 + $0x3c] sm:$0xf] %vm752, %v703
      %769 = vst.msk [vmem:[%s172 + $0x40] sm:$0xf] %vm752, %v704
      %770 = vst.msk [vmem:[%s172 + $0x44] sm:$0xf] %vm752, %v705
      %771 = vst.msk [vmem:[%s172 + $0x48] sm:$0xf] %vm752, %v706
      %772 = vst.msk [vmem:[%s172 + $0x4c] sm:$0xf] %vm752, %v707
      %773 = vst.msk [vmem:[%s172 + $0x50] sm:$0xf] %vm752, %v708
      %774 = vst.msk [vmem:[%s172 + $0x54] sm:$0xf] %vm752, %v709
      %775 = vst.msk [vmem:[%s172 + $0x58] sm:$0xf] %vm752, %v710
      %776 = vst.msk [vmem:[%s172 + $0x5c] sm:$0xf] %vm752, %v711
      %777 = vst.msk [vmem:[%s172 + $0x60] sm:$0xf] %vm752, %v712
      %778 = vst.msk [vmem:[%s172 + $0x64] sm:$0xf] %vm752, %v713
      %779 = vst.msk [vmem:[%s172 + $0x68] sm:$0xf] %vm752, %v714
      %780 = vst.msk [vmem:[%s172 + $0x6c] sm:$0xf] %vm752, %v715
      %781 = vst.msk [vmem:[%s172 + $0x70] sm:$0xf] %vm752, %v716
      %782 = vst.msk [vmem:[%s172 + $0x74] sm:$0xf] %vm752, %v717
      %783 = vst.msk [vmem:[%s172 + $0x78] sm:$0xf] %vm752, %v718
      %784 = vst.msk [vmem:[%s172 + $0x7c] sm:$0xf] %vm752, %v719
      %s785 = smul.u32 32, %s14
      %p786 = scmp.lt.s32.totalorder %s785, 63
      %s787 = scalar_select %p786, %s785, 63
      %s788 = smul.addr %s787, 4
      %s789 = scalar_lea.vmem %s3, %s788
      // Predicated region
      $region33: #{unet_forward.10} parent=31 // pred_check
        %p790 = pneg %p100
      $region34: #{unet_forward.10} parent=31 // pred_check_branch
        %792 = sbr.rel (%p790) target = $region36
      $region35: #{unet_forward.10} parent=31 // pred_region
        %s793 = smul.u32 32, %s14
      $region36: #{unet_forward.10} parent=31 // pred_fallthru
        _
    $region32: #{unet_forward.10} parent=5 // pred_fallthru
      _
    %p794 = scmp.le.s32.totalorder 2, %s9
    // Predicated region
    $region37: #{unet_forward.10} parent=5 // pred_check
      %p795 = pneg %p794
    $region38: #{unet_forward.10} parent=5 // pred_check_branch
      %797 = sbr.rel (%p795) target = $region40
    $region39: #{unet_forward.10} parent=5 // pred_region
      %s798 = ssub.s32 %s9, 2
      // Predicated region
      $region41: #{unet_forward.10} parent=39 // pred_check
        %p799 = pneg %p106
      $region42: #{unet_forward.10} parent=39 // pred_check_branch
        %801 = sbr.rel (%p799) target = $region44
      $region43: #{unet_forward.10} parent=39 // pred_region
        %s802 = smul.u32 32, %s15
        %p803 = scmp.lt.s32.totalorder %s802, 63
        %s804 = scalar_select %p803, %s802, 63
        %s805 = smul.addr %s804, 4
        %s806 = scalar_lea.vmem %s3, %s805
      $region44: #{unet_forward.10} parent=39 // pred_fallthru
        _
    $region40: #{unet_forward.10} parent=5 // pred_fallthru
      _
  $region6: #{unet_forward.10} parent=0 // loop_footer
    %s13 = sadd.s32 1, %s9
  $region7: #{unet_forward.10} parent=0 // loop_footer_branch
    %8 = sbr.rel target = $region3
  $region8: #{unet_forward.10} parent=0 // loop_exit
    _

// kernel: unet_forward.11
$region0: #{unet_forward.11}
  #allocation0 [shape = 'u32[]', space=smem, size = 0x4, offset = 0x4, fixed_abs, tag = 'smem constant byte address 0x4 - core index']
  #allocation1 [shape = 'u32[144,128]{1,0:T(1,128)}', space=vmem, size = 0x12000, scoped, tag = 'internal scratch']
  %s0 = inlined_call_operand.vmem [shape: bf16[128,72], index: 0, kind: input, shape index: {}]
  %s1 = inlined_call_operand.vmem [shape: bf16[72,16], index: 1, kind: input, shape index: {}]
  %s2 = inlined_call_operand.vmem [shape: f32[1,16], index: 2, kind: input, shape index: {}]
  %s3 = inlined_call_operand.vmem [shape: bf16[128,16], index: 3, kind: output, shape index: {}]
  %s4 = sld [smem:[#allocation0]]
  $region22: #{unet_forward.11} parent=0
    _
  %s6 = ssub.s32 1, %s4
  %s7 = scalar_select 0, %s6, %s4
  // Predicated region
  $region2: #{unet_forward.11} parent=0 // pred_check
    _
  $region3: #{unet_forward.11} parent=0 // pred_check_branch
    %9 = sbr.rel (0) target = $region5
  $region4: #{unet_forward.11} parent=0 // pred_region
    _
  $region5: #{unet_forward.11} parent=0 // pred_fallthru
    _
  // Predicated region
  $region6: #{unet_forward.11} parent=0 // pred_check
    _
  $region7: #{unet_forward.11} parent=0 // pred_check_branch
    %11 = sbr.rel (0) target = $region9
  $region8: #{unet_forward.11} parent=0 // pred_region
    _
  $region9: #{unet_forward.11} parent=0 // pred_fallthru
    _
  // Predicated region
  $region10: #{unet_forward.11} parent=0 // pred_check
    _
  $region11: #{unet_forward.11} parent=0 // pred_check_branch
    %13 = sbr.rel (0) target = $region13
  $region12: #{unet_forward.11} parent=0 // pred_region
    _
  $region13: #{unet_forward.11} parent=0 // pred_fallthru
    _
  %v15 = vld [vmem:[%s0] sm:$0xf]
  %v16 = vld [vmem:[%s0 + $0x4] sm:$0xf]
  %v17 = vld [vmem:[%s0 + $0x8] sm:$0xf]
  %v18 = vld [vmem:[%s0 + $0xc] sm:$0xf]
  %v19 = vld [vmem:[%s0 + $0x10] sm:$0xf]
  %v20 = vld [vmem:[%s0 + $0x14] sm:$0xf]
  %v21 = vld [vmem:[%s0 + $0x18] sm:$0xf]
  %v22 = vld [vmem:[%s0 + $0x1c] sm:$0xf]
  %v23 = vld [vmem:[%s0 + $0x20] sm:$0xf]
  %v24 = vld [vmem:[%s0 + $0x24] sm:$0xf]
  %v25 = vld [vmem:[%s0 + $0x28] sm:$0xf]
  %v26 = vld [vmem:[%s0 + $0x2c] sm:$0xf]
  %v27 = vld [vmem:[%s0 + $0x30] sm:$0xf]
  %v28 = vld [vmem:[%s0 + $0x34] sm:$0xf]
  %v29 = vld [vmem:[%s0 + $0x38] sm:$0xf]
  %v30 = vld [vmem:[%s0 + $0x3c] sm:$0xf]
  %v31 = vld [vmem:[%s1] sm:$0xf]
  %v32 = vld [vmem:[%s1 + $0x4] sm:$0xf]
  %v33 = vld [vmem:[%s1 + $0x8] sm:$0xf]
  %v34 = vld [vmem:[%s1 + $0xc] sm:$0xf]
  %v35 = vld [vmem:[%s1 + $0x10] sm:$0xf]
  %v36 = vld [vmem:[%s1 + $0x14] sm:$0xf]
  %v37 = vld [vmem:[%s1 + $0x18] sm:$0xf]
  %v38 = vld [vmem:[%s1 + $0x1c] sm:$0xf]
  %v39 = vld [vmem:[%s1 + $0x20] sm:$0xf]
  %v40 = vld [vmem:[%s2] sm:$0x1]
  %v42 = vlaneseq
  %v43 = vshrl.u32 %v42, 7
  %v44 = vsub.s32 0, %v43
  %v45 = vrot.slane %v40, %v44
  %v63 = vunpack.c.l.b16 %v15
  %v64 = vunpack.c.l.b16 %v16
  %v65 = vunpack.c.l.b16 %v17
  %v66 = vunpack.c.l.b16 %v18
  %v67 = vunpack.c.l.b16 %v19
  %v68 = vunpack.c.l.b16 %v20
  %v69 = vunpack.c.l.b16 %v21
  %v70 = vunpack.c.l.b16 %v22
  %v71 = vunpack.c.l.b16 %v23
  %v72 = vunpack.c.l.b16 %v24
  %v73 = vunpack.c.l.b16 %v25
  %v74 = vunpack.c.l.b16 %v26
  %v75 = vunpack.c.l.b16 %v27
  %v76 = vunpack.c.l.b16 %v28
  %v77 = vunpack.c.l.b16 %v29
  %v78 = vunpack.c.l.b16 %v30
  %v79 = vpack.c.b16 %v64, %v63
  %v80 = vpack.c.b16 %v66, %v65
  %v81 = vpack.c.b16 %v68, %v67
  %v82 = vpack.c.b16 %v70, %v69
  %v83 = vpack.c.b16 %v72, %v71
  %v84 = vpack.c.b16 %v74, %v73
  %v85 = vpack.c.b16 %v76, %v75
  %v86 = vpack.c.b16 %v78, %v77
  %v96 = vunpack.c.l.b16 %v31
  %v97 = vunpack.c.l.b16 %v32
  %v98 = vunpack.c.l.b16 %v33
  %v99 = vunpack.c.l.b16 %v34
  %v100 = vunpack.c.l.b16 %v35
  %v101 = vunpack.c.l.b16 %v36
  %v102 = vunpack.c.l.b16 %v37
  %v103 = vunpack.c.l.b16 %v38
  %v104 = vunpack.c.l.b16 %v39
  %v105 = vpack.c.b16 %v97, %v96
  %v106 = vpack.c.b16 %v99, %v98
  %v107 = vpack.c.b16 %v101, %v100
  %v108 = vpack.c.b16 %v103, %v102
  %v109 = vpack.c.b16 %v104, %v104
  %vm114 = vcmask 588800
  %v116 = vsel %vm114, %v79, 0
  %v119 = vsel %vm114, %v80, 0
  %v122 = vsel %vm114, %v81, 0
  %v125 = vsel %vm114, %v82, 0
  %v128 = vsel %vm114, %v83, 0
  %v131 = vsel %vm114, %v84, 0
  %v134 = vsel %vm114, %v85, 0
  %v137 = vsel %vm114, %v86, 0
  %vm139 = vcmask 1043456
  %v141 = vsel %vm139, %v109, 0
  %143 = vmatprep.subr.bf16.mxu0 0
  %144 = vmatpush1.bf16.msra.mxu0 %v105
  %145 = vmatprep.subr.bf16.mxu0 0
  %146 = vmatpush1.bf16.msra.mxu0 %v106
  %147 = vmatprep.subr.bf16.mxu0 0
  %148 = vmatpush1.bf16.msra.mxu0 %v107
  %149 = vmatprep.subr.bf16.mxu0 0
  %150 = vmatpush1.bf16.msra.mxu0 %v108
  %151 = vmatprep.subr.bf16.mxu0 0
  %152 = vmatpush1.bf16.msra.mxu0 %v141
  %153 = vmatprep.subr.bf16.mxu0 0
  %154 = vmatpush1.bf16.msra.mxu0 0
  %155 = vmatprep.subr.bf16.mxu0 0
  %156 = vmatpush1.bf16.msra.mxu0 0
  %157 = vmatprep.subr.bf16.mxu0 0
  %158 = vmatpush1.bf16.msra.mxu0 0
  %159 = vmatprep.subr.bf16.mxu0 0
  %160 = vmatpush1.bf16.msra.mxu0 0
  %161 = vmatprep.subr.bf16.mxu0 0
  %162 = vmatpush1.bf16.msra.mxu0 0
  %163 = vmatprep.subr.bf16.mxu0 0
  %164 = vmatpush1.bf16.msra.mxu0 0
  %165 = vmatprep.subr.bf16.mxu0 0
  %166 = vmatpush1.bf16.msra.mxu0 0
  %167 = vmatprep.subr.bf16.mxu0 0
  %168 = vmatpush1.bf16.msra.mxu0 0
  %169 = vmatprep.subr.bf16.mxu0 0
  %170 = vmatpush1.bf16.msra.mxu0 0
  %171 = vmatprep.subr.bf16.mxu0 0
  %172 = vmatpush1.bf16.msra.mxu0 0
  %173 = vmatprep.subr.bf16.mxu0 0
  %174 = vmatpush1.bf16.msra.mxu0 0
  %175 = vmatprep.mubr.bf16.mxu0 0
  %176 = vmatmul.mubr.bf16.gmra.mrb[0].mxu0 %v116
  %v177 = vpop.f32.mrb[0].mxu0
  %v178 = vadd.f32 %v45, %v177
  %v179 = vpop.f32.mrb[0].mxu0
  %v180 = vpop.f32.mrb[0].mxu0
  %v181 = vadd.f32 %v45, %v180
  %v182 = vpop.f32.mrb[0].mxu0
  %183 = vmatprep.mubr.bf16.mxu0 0
  %184 = vmatmul.mubr.bf16.gmra.mrb[0].mxu0 %v119
  %v185 = vpop.f32.mrb[0].mxu0
  %v186 = vadd.f32 %v45, %v185
  %v187 = vpop.f32.mrb[0].mxu0
  %v188 = vpop.f32.mrb[0].mxu0
  %v189 = vadd.f32 %v45, %v188
  %v190 = vpop.f32.mrb[0].mxu0
  %191 = vmatprep.mubr.bf16.mxu0 0
  %192 = vmatmul.mubr.bf16.gmra.mrb[0].mxu0 %v122
  %v193 = vpop.f32.mrb[0].mxu0
  %v194 = vadd.f32 %v45, %v193
  %v195 = vpop.f32.mrb[0].mxu0
  %v196 = vpop.f32.mrb[0].mxu0
  %v197 = vadd.f32 %v45, %v196
  %v198 = vpop.f32.mrb[0].mxu0
  %199 = vmatprep.mubr.bf16.mxu0 0
  %200 = vmatmul.mubr.bf16.gmra.mrb[0].mxu0 %v125
  %v201 = vpop.f32.mrb[0].mxu0
  %v202 = vadd.f32 %v45, %v201
  %v203 = vpop.f32.mrb[0].mxu0
  %v204 = vpop.f32.mrb[0].mxu0
  %v205 = vadd.f32 %v45, %v204
  %v206 = vpop.f32.mrb[0].mxu0
  %207 = vmatprep.mubr.bf16.mxu0 0
  %208 = vmatmul.mubr.bf16.gmra.mrb[0].mxu0 %v128
  %v209 = vpop.f32.mrb[0].mxu0
  %v210 = vadd.f32 %v45, %v209
  %v211 = vpop.f32.mrb[0].mxu0
  %v212 = vpop.f32.mrb[0].mxu0
  %v213 = vadd.f32 %v45, %v212
  %v214 = vpop.f32.mrb[0].mxu0
  %215 = vmatprep.mubr.bf16.mxu0 0
  %216 = vmatmul.mubr.bf16.gmra.mrb[0].mxu0 %v131
  %v217 = vpop.f32.mrb[0].mxu0
  %v218 = vadd.f32 %v45, %v217
  %v219 = vpop.f32.mrb[0].mxu0
  %v220 = vpop.f32.mrb[0].mxu0
  %v221 = vadd.f32 %v45, %v220
  %v222 = vpop.f32.mrb[0].mxu0
  %223 = vmatprep.mubr.bf16.mxu0 0
  %224 = vmatmul.mubr.bf16.gmra.mrb[0].mxu0 %v134
  %v225 = vpop.f32.mrb[0].mxu0
  %v226 = vadd.f32 %v45, %v225
  %v227 = vpop.f32.mrb[0].mxu0
  %v228 = vpop.f32.mrb[0].mxu0
  %v229 = vadd.f32 %v45, %v228
  %v230 = vpop.f32.mrb[0].mxu0
  %231 = vmatprep.mubr.bf16.mxu0 0
  %232 = vmatmul.mubr.bf16.gmra.mrb[0].mxu0 %v137
  %v233 = vpop.f32.mrb[0].mxu0
  %v234 = vadd.f32 %v45, %v233
  %v235 = vpop.f32.mrb[0].mxu0
  %v236 = vpop.f32.mrb[0].mxu0
  %v237 = vadd.f32 %v45, %v236
  %v238 = vpop.f32.mrb[0].mxu0
  %239 = vdwg.mxu0
  %vm240 = vcmp.ge.f32.partialorder %v178, 0.0
  %vm241 = vcmp.ge.f32.partialorder %v181, 0.0
  %vm242 = vcmp.ge.f32.partialorder %v186, 0.0
  %vm243 = vcmp.ge.f32.partialorder %v189, 0.0
  %vm244 = vcmp.ge.f32.partialorder %v194, 0.0
  %vm245 = vcmp.ge.f32.partialorder %v197, 0.0
  %vm246 = vcmp.ge.f32.partialorder %v202, 0.0
  %vm247 = vcmp.ge.f32.partialorder %v205, 0.0
  %vm248 = vcmp.ge.f32.partialorder %v210, 0.0
  %vm249 = vcmp.ge.f32.partialorder %v213, 0.0
  %vm250 = vcmp.ge.f32.partialorder %v218, 0.0
  %vm251 = vcmp.ge.f32.partialorder %v221, 0.0
  %vm252 = vcmp.ge.f32.partialorder %v226, 0.0
  %vm253 = vcmp.ge.f32.partialorder %v229, 0.0
  %vm254 = vcmp.ge.f32.partialorder %v234, 0.0
  %vm255 = vcmp.ge.f32.partialorder %v237, 0.0
  %v256 = vmul.f32 %v178, 0.01
  %v257 = vmul.f32 %v181, 0.01
  %v258 = vmul.f32 %v186, 0.01
  %v259 = vmul.f32 %v189, 0.01
  %v260 = vmul.f32 %v194, 0.01
  %v261 = vmul.f32 %v197, 0.01
  %v262 = vmul.f32 %v202, 0.01
  %v263 = vmul.f32 %v205, 0.01
  %v264 = vmul.f32 %v210, 0.01
  %v265 = vmul.f32 %v213, 0.01
  %v266 = vmul.f32 %v218, 0.01
  %v267 = vmul.f32 %v221, 0.01
  %v268 = vmul.f32 %v226, 0.01
  %v269 = vmul.f32 %v229, 0.01
  %v270 = vmul.f32 %v234, 0.01
  %v271 = vmul.f32 %v237, 0.01
  %v272 = vsel %vm240, %v178, %v256
  %v273 = vsel %vm241, %v181, %v257
  %v274 = vsel %vm242, %v186, %v258
  %v275 = vsel %vm243, %v189, %v259
  %v276 = vsel %vm244, %v194, %v260
  %v277 = vsel %vm245, %v197, %v261
  %v278 = vsel %vm246, %v202, %v262
  %v279 = vsel %vm247, %v205, %v263
  %v280 = vsel %vm248, %v210, %v264
  %v281 = vsel %vm249, %v213, %v265
  %v282 = vsel %vm250, %v218, %v266
  %v283 = vsel %vm251, %v221, %v267
  %v284 = vsel %vm252, %v226, %v268
  %v285 = vsel %vm253, %v229, %v269
  %v286 = vsel %vm254, %v234, %v270
  %v287 = vsel %vm255, %v237, %v271
  %v288 = vpack.c.bf16 %v273, %v272
  %v289 = vpack.c.bf16 %v275, %v274
  %v290 = vpack.c.bf16 %v277, %v276
  %v291 = vpack.c.bf16 %v279, %v278
  %v292 = vpack.c.bf16 %v281, %v280
  %v293 = vpack.c.bf16 %v283, %v282
  %v294 = vpack.c.bf16 %v285, %v284
  %v295 = vpack.c.bf16 %v287, %v286
  %v304 = vunpack.c.l.b16 %v288
  %v305 = vunpack.c.h.b16 %v288
  %v306 = vunpack.c.l.b16 %v289
  %v307 = vunpack.c.h.b16 %v289
  %v308 = vunpack.c.l.b16 %v290
  %v309 = vunpack.c.h.b16 %v290
  %v310 = vunpack.c.l.b16 %v291
  %v311 = vunpack.c.h.b16 %v291
  %v312 = vunpack.c.l.b16 %v292
  %v313 = vunpack.c.h.b16 %v292
  %v314 = vunpack.c.l.b16 %v293
  %v315 = vunpack.c.h.b16 %v293
  %v316 = vunpack.c.l.b16 %v294
  %v317 = vunpack.c.h.b16 %v294
  %v318 = vunpack.c.l.b16 %v295
  %v319 = vunpack.c.h.b16 %v295
  %v320 = vpack.c.b16 %v304, %v304
  %v321 = vpack.c.b16 %v305, %v305
  %v322 = vpack.c.b16 %v306, %v306
  %v323 = vpack.c.b16 %v307, %v307
  %v324 = vpack.c.b16 %v308, %v308
  %v325 = vpack.c.b16 %v309, %v309
  %v326 = vpack.c.b16 %v310, %v310
  %v327 = vpack.c.b16 %v311, %v311
  %v328 = vpack.c.b16 %v312, %v312
  %v329 = vpack.c.b16 %v313, %v313
  %v330 = vpack.c.b16 %v314, %v314
  %v331 = vpack.c.b16 %v315, %v315
  %v332 = vpack.c.b16 %v316, %v316
  %v333 = vpack.c.b16 %v317, %v317
  %v334 = vpack.c.b16 %v318, %v318
  %v335 = vpack.c.b16 %v319, %v319
  %vm352 = vcmask 125952
  %353 = vst.msk [vmem:[%s3] sm:$0xf] %vm352, %v320
  %354 = vst.msk [vmem:[%s3 + $0x4] sm:$0xf] %vm352, %v321
  %355 = vst.msk [vmem:[%s3 + $0x8] sm:$0xf] %vm352, %v322
  %356 = vst.msk [vmem:[%s3 + $0xc] sm:$0xf] %vm352, %v323
  %357 = vst.msk [vmem:[%s3 + $0x10] sm:$0xf] %vm352, %v324
  %358 = vst.msk [vmem:[%s3 + $0x14] sm:$0xf] %vm352, %v325
  %359 = vst.msk [vmem:[%s3 + $0x18] sm:$0xf] %vm352, %v326
  %360 = vst.msk [vmem:[%s3 + $0x1c] sm:$0xf] %vm352, %v327
  %361 = vst.msk [vmem:[%s3 + $0x20] sm:$0xf] %vm352, %v328
  %362 = vst.msk [vmem:[%s3 + $0x24] sm:$0xf] %vm352, %v329
  %363 = vst.msk [vmem:[%s3 + $0x28] sm:$0xf] %vm352, %v330
  %364 = vst.msk [vmem:[%s3 + $0x2c] sm:$0xf] %vm352, %v331
  %365 = vst.msk [vmem:[%s3 + $0x30] sm:$0xf] %vm352, %v332
  %366 = vst.msk [vmem:[%s3 + $0x34] sm:$0xf] %vm352, %v333
  %367 = vst.msk [vmem:[%s3 + $0x38] sm:$0xf] %vm352, %v334
  %368 = vst.msk [vmem:[%s3 + $0x3c] sm:$0xf] %vm352, %v335
  // Predicated region
  $region14: #{unet_forward.11} parent=0 // pred_check
    _
  $region15: #{unet_forward.11} parent=0 // pred_check_branch
    %370 = sbr.rel (0) target = $region17
  $region16: #{unet_forward.11} parent=0 // pred_region
    _
  $region17: #{unet_forward.11} parent=0 // pred_fallthru
    _
  // Predicated region
  $region18: #{unet_forward.11} parent=0 // pred_check
    _
  $region19: #{unet_forward.11} parent=0 // pred_check_branch
    %372 = sbr.rel (0) target = $region21
  $region20: #{unet_forward.11} parent=0 // pred_region
    _
  $region21: #{unet_forward.11} parent=0 // pred_fallthru
    _

// kernel: unet_forward.12
$region0: #{unet_forward.12}
  #allocation0 [shape = 'u32[]', space=smem, size = 0x4, offset = 0x4, fixed_abs, tag = 'smem constant byte address 0x4 - core index']
  #allocation1 [shape = 'u32[144,128]{1,0:T(1,128)}', space=vmem, size = 0x12000, scoped, tag = 'internal scratch']
  %s0 = inlined_call_operand.vmem [shape: bf16[32,144], index: 0, kind: input, shape index: {}]
  %s1 = inlined_call_operand.vmem [shape: bf16[144,32], index: 1, kind: input, shape index: {}]
  %s2 = inlined_call_operand.vmem [shape: f32[1,32], index: 2, kind: input, shape index: {}]
  %s3 = inlined_call_operand.vmem [shape: bf16[32,32], index: 3, kind: output, shape index: {}]
  %s4 = sld [smem:[#allocation0]]
  $region22: #{unet_forward.12} parent=0
    _
  %s6 = ssub.s32 1, %s4
  %s7 = scalar_select 0, %s6, %s4
  // Predicated region
  $region2: #{unet_forward.12} parent=0 // pred_check
    _
  $region3: #{unet_forward.12} parent=0 // pred_check_branch
    %9 = sbr.rel (0) target = $region5
  $region4: #{unet_forward.12} parent=0 // pred_region
    _
  $region5: #{unet_forward.12} parent=0 // pred_fallthru
    _
  // Predicated region
  $region6: #{unet_forward.12} parent=0 // pred_check
    _
  $region7: #{unet_forward.12} parent=0 // pred_check_branch
    %11 = sbr.rel (0) target = $region9
  $region8: #{unet_forward.12} parent=0 // pred_region
    _
  $region9: #{unet_forward.12} parent=0 // pred_fallthru
    _
  // Predicated region
  $region10: #{unet_forward.12} parent=0 // pred_check
    _
  $region11: #{unet_forward.12} parent=0 // pred_check_branch
    %13 = sbr.rel (0) target = $region13
  $region12: #{unet_forward.12} parent=0 // pred_region
    _
  $region13: #{unet_forward.12} parent=0 // pred_fallthru
    _
  %v15 = vld [vmem:[%s0] sm:$0xff]
  %v16 = vld [vmem:[%s0 + $0x8] sm:$0xff]
  %v17 = vld [vmem:[%s0 + $0x10] sm:$0xff]
  %v18 = vld [vmem:[%s0 + $0x18] sm:$0xff]
  %v19 = vld [vmem:[%s1] sm:$0xf]
  %v20 = vld [vmem:[%s1 + $0x4] sm:$0xf]
  %v21 = vld [vmem:[%s1 + $0x8] sm:$0xf]
  %v22 = vld [vmem:[%s1 + $0xc] sm:$0xf]
  %v23 = vld [vmem:[%s1 + $0x10] sm:$0xf]
  %v24 = vld [vmem:[%s1 + $0x14] sm:$0xf]
  %v25 = vld [vmem:[%s1 + $0x18] sm:$0xf]
  %v26 = vld [vmem:[%s1 + $0x1c] sm:$0xf]
  %v27 = vld [vmem:[%s1 + $0x20] sm:$0xf]
  %v28 = vld [vmem:[%s1 + $0x24] sm:$0xf]
  %v29 = vld [vmem:[%s1 + $0x28] sm:$0xf]
  %v30 = vld [vmem:[%s1 + $0x2c] sm:$0xf]
  %v31 = vld [vmem:[%s1 + $0x30] sm:$0xf]
  %v32 = vld [vmem:[%s1 + $0x34] sm:$0xf]
  %v33 = vld [vmem:[%s1 + $0x38] sm:$0xf]
  %v34 = vld [vmem:[%s1 + $0x3c] sm:$0xf]
  %v35 = vld [vmem:[%s1 + $0x40] sm:$0xf]
  %v36 = vld [vmem:[%s1 + $0x44] sm:$0xf]
  %v37 = vld [vmem:[%s2] sm:$0x1]
  %v39 = vlaneseq
  %v40 = vshrl.u32 %v39, 7
  %v41 = vsub.s32 0, %v40
  %v42 = vrot.slane %v37, %v41
  %v48 = vunpack.c.l.b16 %v15
  %v49 = vunpack.c.h.b16 %v15
  %v50 = vunpack.c.l.b16 %v16
  %v51 = vunpack.c.h.b16 %v16
  %v52 = vunpack.c.l.b16 %v17
  %v53 = vunpack.c.h.b16 %v17
  %v54 = vunpack.c.l.b16 %v18
  %v55 = vunpack.c.h.b16 %v18
  %v56 = vpack.c.b16 %v50, %v48
  %v57 = vpack.c.b16 %v51, %v49
  %v58 = vpack.c.b16 %v54, %v52
  %v59 = vpack.c.b16 %v55, %v53
  %v80 = vunpack.c.l.b16 %v19
  %v81 = vunpack.c.l.b16 %v20
  %v82 = vunpack.c.l.b16 %v21
  %v83 = vunpack.c.l.b16 %v22
  %v84 = vunpack.c.l.b16 %v23
  %v85 = vunpack.c.l.b16 %v24
  %v86 = vunpack.c.l.b16 %v25
  %v87 = vunpack.c.l.b16 %v26
  %v88 = vunpack.c.l.b16 %v27
  %v89 = vunpack.c.l.b16 %v28
  %v90 = vunpack.c.l.b16 %v29
  %v91 = vunpack.c.l.b16 %v30
  %v92 = vunpack.c.l.b16 %v31
  %v93 = vunpack.c.l.b16 %v32
  %v94 = vunpack.c.l.b16 %v33
  %v95 = vunpack.c.l.b16 %v34
  %v96 = vunpack.c.l.b16 %v35
  %v97 = vunpack.c.l.b16 %v36
  %v98 = vpack.c.b16 %v81, %v80
  %v99 = vpack.c.b16 %v83, %v82
  %v100 = vpack.c.b16 %v85, %v84
  %v101 = vpack.c.b16 %v87, %v86
  %v102 = vpack.c.b16 %v89, %v88
  %v103 = vpack.c.b16 %v91, %v90
  %v104 = vpack.c.b16 %v93, %v92
  %v105 = vpack.c.b16 %v95, %v94
  %v106 = vpack.c.b16 %v97, %v96
  %vm116 = vcmask 130048
  %v118 = vsel %vm116, %v57, 0
  %v121 = vsel %vm116, %v59, 0
  %123 = vmatprep.subr.bf16.mxu0 0
  %124 = vmatpush1.bf16.msra.mxu0 %v98
  %125 = vmatprep.subr.bf16.mxu0 0
  %126 = vmatpush1.bf16.msra.mxu0 %v99
  %127 = vmatprep.subr.bf16.mxu0 0
  %128 = vmatpush1.bf16.msra.mxu0 %v100
  %129 = vmatprep.subr.bf16.mxu0 0
  %130 = vmatpush1.bf16.msra.mxu0 %v101
  %131 = vmatprep.subr.bf16.mxu0 0
  %132 = vmatpush1.bf16.msra.mxu0 %v102
  %133 = vmatprep.subr.bf16.mxu0 0
  %134 = vmatpush1.bf16.msra.mxu0 %v103
  %135 = vmatprep.subr.bf16.mxu0 0
  %136 = vmatpush1.bf16.msra.mxu0 %v104
  %137 = vmatprep.subr.bf16.mxu0 0
  %138 = vmatpush1.bf16.msra.mxu0 %v105
  %139 = vmatprep.subr.bf16.mxu0 0
  %140 = vmatpush1.bf16.msra.mxu0 %v106
  %141 = vmatprep.subr.bf16.mxu0 0
  %142 = vmatpush1.bf16.msra.mxu0 0
  %143 = vmatprep.subr.bf16.mxu0 0
  %144 = vmatpush1.bf16.msra.mxu0 0
  %145 = vmatprep.subr.bf16.mxu0 0
  %146 = vmatpush1.bf16.msra.mxu0 0
  %147 = vmatprep.subr.bf16.mxu0 0
  %148 = vmatpush1.bf16.msra.mxu0 0
  %149 = vmatprep.subr.bf16.mxu0 0
  %150 = vmatpush1.bf16.msra.mxu0 0
  %151 = vmatprep.subr.bf16.mxu0 0
  %152 = vmatpush1.bf16.msra.mxu0 0
  %153 = vmatprep.subr.bf16.mxu0 0
  %154 = vmatpush1.bf16.msra.mxu0 0
  %155 = vmatprep.mubr.bf16.mxu0 %v118
  %156 = vmatmul.mubr.bf16.gmra.mrb[0].mxu0 %v56
  %v157 = vpop.f32.mrb[0].mxu0
  %v158 = vadd.f32 %v42, %v157
  %v159 = vpop.f32.mrb[0].mxu0
  %v160 = vpop.f32.mrb[0].mxu0
  %v161 = vadd.f32 %v42, %v160
  %v162 = vpop.f32.mrb[0].mxu0
  %163 = vmatprep.mubr.bf16.mxu0 %v121
  %164 = vmatmul.mubr.bf16.gmra.mrb[0].mxu0 %v58
  %v165 = vpop.f32.mrb[0].mxu0
  %v166 = vadd.f32 %v42, %v165
  %v167 = vpop.f32.mrb[0].mxu0
  %v168 = vpop.f32.mrb[0].mxu0
  %v169 = vadd.f32 %v42, %v168
  %v170 = vpop.f32.mrb[0].mxu0
  %171 = vdwg.mxu0
  %vm172 = vcmp.ge.f32.partialorder %v158, 0.0
  %vm173 = vcmp.ge.f32.partialorder %v161, 0.0
  %vm174 = vcmp.ge.f32.partialorder %v166, 0.0
  %vm175 = vcmp.ge.f32.partialorder %v169, 0.0
  %v176 = vmul.f32 %v158, 0.01
  %v177 = vmul.f32 %v161, 0.01
  %v178 = vmul.f32 %v166, 0.01
  %v179 = vmul.f32 %v169, 0.01
  %v180 = vsel %vm172, %v158, %v176
  %v181 = vsel %vm173, %v161, %v177
  %v182 = vsel %vm174, %v166, %v178
  %v183 = vsel %vm175, %v169, %v179
  %v184 = vpack.c.bf16 %v181, %v180
  %v185 = vpack.c.bf16 %v183, %v182
  %v188 = vunpack.c.l.b16 %v184
  %v189 = vunpack.c.h.b16 %v184
  %v190 = vunpack.c.l.b16 %v185
  %v191 = vunpack.c.h.b16 %v185
  %v192 = vpack.c.b16 %v188, %v188
  %v193 = vpack.c.b16 %v189, %v189
  %v194 = vpack.c.b16 %v190, %v190
  %v195 = vpack.c.b16 %v191, %v191
  %vm200 = vcmask 257024
  %201 = vst.msk [vmem:[%s3] sm:$0xf] %vm200, %v192
  %202 = vst.msk [vmem:[%s3 + $0x4] sm:$0xf] %vm200, %v193
  %203 = vst.msk [vmem:[%s3 + $0x8] sm:$0xf] %vm200, %v194
  %204 = vst.msk [vmem:[%s3 + $0xc] sm:$0xf] %vm200, %v195
  // Predicated region
  $region14: #{unet_forward.12} parent=0 // pred_check
    _
  $region15: #{unet_forward.12} parent=0 // pred_check_branch
    %206 = sbr.rel (0) target = $region17
  $region16: #{unet_forward.12} parent=0 // pred_region
    _
  $region17: #{unet_forward.12} parent=0 // pred_fallthru
    _
  // Predicated region
  $region18: #{unet_forward.12} parent=0 // pred_check
    _
  $region19: #{unet_forward.12} parent=0 // pred_check_branch
    %208 = sbr.rel (0) target = $region21
  $region20: #{unet_forward.12} parent=0 // pred_region
    _
  $region21: #{unet_forward.12} parent=0 // pred_fallthru
    _

// kernel: tile.28
$region0: #{tile.28}
  #allocation0 [shape = 's32[1]{0}', space=sflag, size = 0x4, scoped, tag = 'scoped memory for tile.28']
  %s0 = inlined_call_operand.vmem [shape: f32[64], index: 0, kind: input, shape index: {}]
  %s1 = inlined_call_operand.vmem [shape: f32[4,64], index: 1, kind: output, shape index: {}]
  // Predicated region
  $region2: #{tile.28} parent=0 // pred_check
    _
  $region3: #{tile.28} parent=0 // pred_check_branch
    %3 = sbr.rel (0) target = $region5
  $region4: #{tile.28} parent=0 // pred_region
    _
  $region5: #{tile.28} parent=0 // pred_fallthru
    _
  %v4 = vld [vmem:[%s0] ss:$0 sm:$0xff]
  %5 = vst [vmem:[%s1] sm:$0xf] %v4

// kernel: tile.29
$region0: #{tile.29}
  %s0 = inlined_call_operand.vmem [shape: f32[4,64], index: 0, kind: input, shape index: {}]
  %s1 = inlined_call_operand.vmem [shape: f32[1,256], index: 1, kind: output, shape index: {}]
  $region1: #{tile.29} parent=0
    #allocation0 [shape = 'u8[8192]{0}', space=vmem, size = 0x2000, scoped, tag = 'scoped mem for output reshape']
    #allocation1 [shape = 'u8[4096]{0}', space=vmem, size = 0x1000, scoped, tag = 'scoped mem for input reshape']
    %s3 = sshllo.u32 0, 4
    %v4 = vld [vmem:[%s0] sm:%s3]
    %5 = vst [vmem:[#allocation1] sm:%s3] %v4
    %s6 = smov 3
    %v7 = vld [vmem:[#allocation1] ss:$2 sm:%s6]
    %vm8 = vcmask 523264
    %9 = vst.msk [vmem:[#allocation0] ss:$8 sm:$0x3] %vm8, %v7
    %s10 = scalar_lea.vmem [#allocation1], 1
    %s11 = smov 3
    %v12 = vld [vmem:[%s10] ss:$2 sm:%s11]
    %13 = vrot.lane.b32.xlu0 %v12, 64
    %v14 = vpop.permute.xlu0 %13
    %vm15 = vcmask 1048064
    %16 = vst.msk [vmem:[#allocation0] ss:$8 sm:$0x3] %vm15, %v14
    %s18 = sshllo.u32 0, 1
    %v20 = vld [vmem:[#allocation0] sm:%s18]
    %s21 = sshllo.u32 0, 1
    %22 = vst [vmem:[%s1] sm:%s21] %v20
    %s23 = scalar_lea.vmem [#allocation0], 8
    %v24 = vld [vmem:[%s23] sm:%s18]
    %s25 = sshllo.u32 0, 1
    %s26 = scalar_lea.vmem %s1, 1
    %27 = vst [vmem:[%s26] sm:%s25] %v24

// kernel: unet_forward.13
$region0: #{unet_forward.13}
  #allocation0 [shape = 'u32[]', space=smem, size = 0x4, offset = 0x4, fixed_abs, tag = 'smem constant byte address 0x4 - core index']
  #allocation1 [shape = 'u32[144,128]{1,0:T(1,128)}', space=vmem, size = 0x12000, scoped, tag = 'internal scratch']
  %s0 = inlined_call_operand.vmem [shape: bf16[8,288], index: 0, kind: input, shape index: {}]
  %s1 = inlined_call_operand.vmem [shape: bf16[288,64], index: 1, kind: input, shape index: {}]
  %s2 = inlined_call_operand.vmem [shape: f32[1,64], index: 2, kind: input, shape index: {}]
  %s3 = inlined_call_operand.vmem [shape: bf16[8,64], index: 3, kind: output, shape index: {}]
  %s4 = sld [smem:[#allocation0]]
  $region22: #{unet_forward.13} parent=0
    _
  %s6 = ssub.s32 1, %s4
  %s7 = scalar_select 0, %s6, %s4
  // Predicated region
  $region2: #{unet_forward.13} parent=0 // pred_check
    _
  $region3: #{unet_forward.13} parent=0 // pred_check_branch
    %9 = sbr.rel (0) target = $region5
  $region4: #{unet_forward.13} parent=0 // pred_region
    _
  $region5: #{unet_forward.13} parent=0 // pred_fallthru
    _
  // Predicated region
  $region6: #{unet_forward.13} parent=0 // pred_check
    _
  $region7: #{unet_forward.13} parent=0 // pred_check_branch
    %11 = sbr.rel (0) target = $region9
  $region8: #{unet_forward.13} parent=0 // pred_region
    _
  $region9: #{unet_forward.13} parent=0 // pred_fallthru
    _
  // Predicated region
  $region10: #{unet_forward.13} parent=0 // pred_check
    _
  $region11: #{unet_forward.13} parent=0 // pred_check_branch
    %13 = sbr.rel (0) target = $region13
  $region12: #{unet_forward.13} parent=0 // pred_region
    _
  $region13: #{unet_forward.13} parent=0 // pred_fallthru
    _
  %v15 = vld [vmem:[%s0] sm:$0xff]
  %v16 = vld [vmem:[%s0 + $0x8] sm:$0xf]
  %v17 = vld [vmem:[%s1] sm:$0xf]
  %v18 = vld [vmem:[%s1 + $0x4] sm:$0xf]
  %v19 = vld [vmem:[%s1 + $0x8] sm:$0xf]
  %v20 = vld [vmem:[%s1 + $0xc] sm:$0xf]
  %v21 = vld [vmem:[%s1 + $0x10] sm:$0xf]
  %v22 = vld [vmem:[%s1 + $0x14] sm:$0xf]
  %v23 = vld [vmem:[%s1 + $0x18] sm:$0xf]
  %v24 = vld [vmem:[%s1 + $0x1c] sm:$0xf]
  %v25 = vld [vmem:[%s1 + $0x20] sm:$0xf]
  %v26 = vld [vmem:[%s1 + $0x24] sm:$0xf]
  %v27 = vld [vmem:[%s1 + $0x28] sm:$0xf]
  %v28 = vld [vmem:[%s1 + $0x2c] sm:$0xf]
  %v29 = vld [vmem:[%s1 + $0x30] sm:$0xf]
  %v30 = vld [vmem:[%s1 + $0x34] sm:$0xf]
  %v31 = vld [vmem:[%s1 + $0x38] sm:$0xf]
  %v32 = vld [vmem:[%s1 + $0x3c] sm:$0xf]
  %v33 = vld [vmem:[%s1 + $0x40] sm:$0xf]
  %v34 = vld [vmem:[%s1 + $0x44] sm:$0xf]
  %v35 = vld [vmem:[%s1 + $0x48] sm:$0xf]
  %v36 = vld [vmem:[%s1 + $0x4c] sm:$0xf]
  %v37 = vld [vmem:[%s1 + $0x50] sm:$0xf]
  %v38 = vld [vmem:[%s1 + $0x54] sm:$0xf]
  %v39 = vld [vmem:[%s1 + $0x58] sm:$0xf]
  %v40 = vld [vmem:[%s1 + $0x5c] sm:$0xf]
  %v41 = vld [vmem:[%s1 + $0x60] sm:$0xf]
  %v42 = vld [vmem:[%s1 + $0x64] sm:$0xf]
  %v43 = vld [vmem:[%s1 + $0x68] sm:$0xf]
  %v44 = vld [vmem:[%s1 + $0x6c] sm:$0xf]
  %v45 = vld [vmem:[%s1 + $0x70] sm:$0xf]
  %v46 = vld [vmem:[%s1 + $0x74] sm:$0xf]
  %v47 = vld [vmem:[%s1 + $0x78] sm:$0xf]
  %v48 = vld [vmem:[%s1 + $0x7c] sm:$0xf]
  %v49 = vld [vmem:[%s1 + $0x80] sm:$0xf]
  %v50 = vld [vmem:[%s1 + $0x84] sm:$0xf]
  %v51 = vld [vmem:[%s1 + $0x88] sm:$0xf]
  %v52 = vld [vmem:[%s1 + $0x8c] sm:$0xf]
  %v53 = vld [vmem:[%s2] sm:$0x1]
  %v55 = vlaneseq
  %v56 = vshrl.u32 %v55, 7
  %v57 = vsub.s32 0, %v56
  %v58 = vrot.slane %v53, %v57
  %v62 = vunpack.c.l.b16 %v15
  %v63 = vunpack.c.h.b16 %v15
  %v64 = vunpack.c.l.b16 %v16
  %v65 = vpack.c.b16 %v62, %v62
  %v66 = vpack.c.b16 %v63, %v63
  %v67 = vpack.c.b16 %v64, %v64
  %v106 = vunpack.c.l.b16 %v17
  %v107 = vunpack.c.l.b16 %v18
  %v108 = vunpack.c.l.b16 %v19
  %v109 = vunpack.c.l.b16 %v20
  %v110 = vunpack.c.l.b16 %v21
  %v111 = vunpack.c.l.b16 %v22
  %v112 = vunpack.c.l.b16 %v23
  %v113 = vunpack.c.l.b16 %v24
  %v114 = vunpack.c.l.b16 %v25
  %v115 = vunpack.c.l.b16 %v26
  %v116 = vunpack.c.l.b16 %v27
  %v117 = vunpack.c.l.b16 %v28
  %v118 = vunpack.c.l.b16 %v29
  %v119 = vunpack.c.l.b16 %v30
  %v120 = vunpack.c.l.b16 %v31
  %v121 = vunpack.c.l.b16 %v32
  %v122 = vunpack.c.l.b16 %v33
  %v123 = vunpack.c.l.b16 %v34
  %v124 = vunpack.c.l.b16 %v35
  %v125 = vunpack.c.l.b16 %v36
  %v126 = vunpack.c.l.b16 %v37
  %v127 = vunpack.c.l.b16 %v38
  %v128 = vunpack.c.l.b16 %v39
  %v129 = vunpack.c.l.b16 %v40
  %v130 = vunpack.c.l.b16 %v41
  %v131 = vunpack.c.l.b16 %v42
  %v132 = vunpack.c.l.b16 %v43
  %v133 = vunpack.c.l.b16 %v44
  %v134 = vunpack.c.l.b16 %v45
  %v135 = vunpack.c.l.b16 %v46
  %v136 = vunpack.c.l.b16 %v47
  %v137 = vunpack.c.l.b16 %v48
  %v138 = vunpack.c.l.b16 %v49
  %v139 = vunpack.c.l.b16 %v50
  %v140 = vunpack.c.l.b16 %v51
  %v141 = vunpack.c.l.b16 %v52
  %v142 = vpack.c.b16 %v107, %v106
  %v143 = vpack.c.b16 %v109, %v108
  %v144 = vpack.c.b16 %v111, %v110
  %v145 = vpack.c.b16 %v113, %v112
  %v146 = vpack.c.b16 %v115, %v114
  %v147 = vpack.c.b16 %v117, %v116
  %v148 = vpack.c.b16 %v119, %v118
  %v149 = vpack.c.b16 %v121, %v120
  %v150 = vpack.c.b16 %v123, %v122
  %v151 = vpack.c.b16 %v125, %v124
  %v152 = vpack.c.b16 %v127, %v126
  %v153 = vpack.c.b16 %v129, %v128
  %v154 = vpack.c.b16 %v131, %v130
  %v155 = vpack.c.b16 %v133, %v132
  %v156 = vpack.c.b16 %v135, %v134
  %v157 = vpack.c.b16 %v137, %v136
  %v158 = vpack.c.b16 %v139, %v138
  %v159 = vpack.c.b16 %v141, %v140
  %vm178 = vcmask 261120
  %v180 = vsel %vm178, %v67, 0
  %182 = vmatprep.subr.bf16.mxu0 0
  %183 = vmatpush1.bf16.msra.mxu0 %v142
  %184 = vmatprep.subr.bf16.mxu0 0
  %185 = vmatpush1.bf16.msra.mxu0 %v143
  %186 = vmatprep.subr.bf16.mxu0 0
  %187 = vmatpush1.bf16.msra.mxu0 %v144
  %188 = vmatprep.subr.bf16.mxu0 0
  %189 = vmatpush1.bf16.msra.mxu0 %v145
  %190 = vmatprep.subr.bf16.mxu0 0
  %191 = vmatpush1.bf16.msra.mxu0 %v146
  %192 = vmatprep.subr.bf16.mxu0 0
  %193 = vmatpush1.bf16.msra.mxu0 %v147
  %194 = vmatprep.subr.bf16.mxu0 0
  %195 = vmatpush1.bf16.msra.mxu0 %v148
  %196 = vmatprep.subr.bf16.mxu0 0
  %197 = vmatpush1.bf16.msra.mxu0 %v149
  %198 = vmatprep.subr.bf16.mxu0 0
  %199 = vmatpush1.bf16.msra.mxu0 %v150
  %200 = vmatprep.subr.bf16.mxu0 0
  %201 = vmatpush1.bf16.msra.mxu0 %v151
  %202 = vmatprep.subr.bf16.mxu0 0
  %203 = vmatpush1.bf16.msra.mxu0 %v152
  %204 = vmatprep.subr.bf16.mxu0 0
  %205 = vmatpush1.bf16.msra.mxu0 %v153
  %206 = vmatprep.subr.bf16.mxu0 0
  %207 = vmatpush1.bf16.msra.mxu0 %v154
  %208 = vmatprep.subr.bf16.mxu0 0
  %209 = vmatpush1.bf16.msra.mxu0 %v155
  %210 = vmatprep.subr.bf16.mxu0 0
  %211 = vmatpush1.bf16.msra.mxu0 %v156
  %212 = vmatprep.subr.bf16.mxu0 0
  %213 = vmatpush1.bf16.msra.mxu0 %v157
  %214 = vmatprep.mubr.bf16.mxu0 %v66
  %215 = vmatmul.mubr.bf16.gmra.mrb[0].mxu0 %v65
  %v216 = vpop.f32.mrb[0].mxu0
  %v217 = vadd.f32 %v58, %v216
  %v218 = vpop.f32.mrb[0].mxu0
  %v219 = vpop.f32.mrb[0].mxu0
  %v220 = vpop.f32.mrb[0].mxu0
  %221 = vdwg.mxu0
  %222 = vmatprep.subr.bf16.mxu0 0
  %223 = vmatpush1.bf16.msra.mxu0 %v158
  %224 = vmatprep.subr.bf16.mxu0 0
  %225 = vmatpush1.bf16.msra.mxu0 %v159
  %226 = vmatprep.subr.bf16.mxu0 0
  %227 = vmatpush1.bf16.msra.mxu0 0
  %228 = vmatprep.subr.bf16.mxu0 0
  %229 = vmatpush1.bf16.msra.mxu0 0
  %230 = vmatprep.subr.bf16.mxu0 0
  %231 = vmatpush1.bf16.msra.mxu0 0
  %232 = vmatprep.subr.bf16.mxu0 0
  %233 = vmatpush1.bf16.msra.mxu0 0
  %234 = vmatprep.subr.bf16.mxu0 0
  %235 = vmatpush1.bf16.msra.mxu0 0
  %236 = vmatprep.subr.bf16.mxu0 0
  %237 = vmatpush1.bf16.msra.mxu0 0
  %238 = vmatprep.subr.bf16.mxu0 0
  %239 = vmatpush1.bf16.msra.mxu0 0
  %240 = vmatprep.subr.bf16.mxu0 0
  %241 = vmatpush1.bf16.msra.mxu0 0
  %242 = vmatprep.subr.bf16.mxu0 0
  %243 = vmatpush1.bf16.msra.mxu0 0
  %244 = vmatprep.subr.bf16.mxu0 0
  %245 = vmatpush1.bf16.msra.mxu0 0
  %246 = vmatprep.subr.bf16.mxu0 0
  %247 = vmatpush1.bf16.msra.mxu0 0
  %248 = vmatprep.subr.bf16.mxu0 0
  %249 = vmatpush1.bf16.msra.mxu0 0
  %250 = vmatprep.subr.bf16.mxu0 0
  %251 = vmatpush1.bf16.msra.mxu0 0
  %252 = vmatprep.subr.bf16.mxu0 0
  %253 = vmatpush1.bf16.msra.mxu0 0
  %254 = vmatprep.mubr.bf16.mxu0 0
  %255 = vmatmul.mubr.bf16.gmra.mrb[0].mxu0 %v180
  %v256 = vpop.f32.mrb[0].mxu0
  %v257 = vadd.f32 %v217, %v256
  %v258 = vpop.f32.mrb[0].mxu0
  %v259 = vpop.f32.mrb[0].mxu0
  %v260 = vpop.f32.mrb[0].mxu0
  %261 = vdwg.mxu0
  %vm262 = vcmp.ge.f32.partialorder %v257, 0.0
  %v263 = vmul.f32 %v257, 0.01
  %v264 = vsel %vm262, %v257, %v263
  %v265 = vpack.c.bf16 %v264, %v264
  %vm266 = vcmask 519168
  %267 = vst.msk [vmem:[%s3] sm:$0xf] %vm266, %v265
  // Predicated region
  $region14: #{unet_forward.13} parent=0 // pred_check
    _
  $region15: #{unet_forward.13} parent=0 // pred_check_branch
    %269 = sbr.rel (0) target = $region17
  $region16: #{unet_forward.13} parent=0 // pred_region
    _
  $region17: #{unet_forward.13} parent=0 // pred_fallthru
    _
  // Predicated region
  $region18: #{unet_forward.13} parent=0 // pred_check
    _
  $region19: #{unet_forward.13} parent=0 // pred_check_branch
    %271 = sbr.rel (0) target = $region21
  $region20: #{unet_forward.13} parent=0 // pred_region
    _
  $region21: #{unet_forward.13} parent=0 // pred_fallthru
    _

// kernel: tile.33
$region0: #{tile.33}
  #allocation0 [shape = 's32[1]{0}', space=sflag, size = 0x4, scoped, tag = 'scoped memory for tile.33']
  %s0 = inlined_call_operand.vmem [shape: f32[32], index: 0, kind: input, shape index: {}]
  %s1 = inlined_call_operand.vmem [shape: f32[4,32], index: 1, kind: output, shape index: {}]
  // Predicated region
  $region2: #{tile.33} parent=0 // pred_check
    _
  $region3: #{tile.33} parent=0 // pred_check_branch
    %3 = sbr.rel (0) target = $region5
  $region4: #{tile.33} parent=0 // pred_region
    _
  $region5: #{tile.33} parent=0 // pred_fallthru
    _
  %v4 = vld [vmem:[%s0] ss:$0 sm:$0xff]
  %5 = vst [vmem:[%s1] sm:$0xf] %v4

// kernel: tile.34
$region0: #{tile.34}
  %s0 = inlined_call_operand.vmem [shape: f32[4,32], index: 0, kind: input, shape index: {}]
  %s1 = inlined_call_operand.vmem [shape: f32[1,128], index: 1, kind: output, shape index: {}]
  $region1: #{tile.34} parent=0
    #allocation0 [shape = 'u8[4096]{0}', space=vmem, size = 0x1000, scoped, tag = 'scoped mem for output reshape']
    #allocation1 [shape = 'u8[4096]{0}', space=vmem, size = 0x1000, scoped, tag = 'scoped mem for input reshape']
    %s3 = sshllo.u32 0, 4
    %v4 = vld [vmem:[%s0] sm:%s3]
    %5 = vst [vmem:[#allocation1] sm:%s3] %v4
    %v6 = vld [vmem:[#allocation1] sm:$0x1]
    %vm7 = vcmask 261120
    %8 = vst.msk [vmem:[#allocation0] sm:$0x1] %vm7, %v6
    %s9 = scalar_lea.vmem [#allocation1], 3
    %v10 = vld [vmem:[%s9] sm:$0x1]
    %11 = vrot.lane.b32.xlu0 %v10, 96
    %v12 = vpop.permute.xlu0 %11
    %vm13 = vcmask 1048320
    %14 = vst.msk [vmem:[#allocation0] sm:$0x1] %vm13, %v12
    %s15 = scalar_lea.vmem [#allocation1], 2
    %v16 = vld [vmem:[%s15] sm:$0x1]
    %17 = vrot.lane.b32.xlu0 %v16, 64
    %v18 = vpop.permute.xlu0 %17
    %vm19 = vcmask 785920
    %20 = vst.msk [vmem:[#allocation0] sm:$0x1] %vm19, %v18
    %s21 = scalar_lea.vmem [#allocation1], 1
    %v22 = vld [vmem:[%s21] sm:$0x1]
    %23 = vrot.lane.b32.xlu0 %v22, 32
    %v24 = vpop.permute.xlu0 %23
    %vm25 = vcmask 523520
    %26 = vst.msk [vmem:[#allocation0] sm:$0x1] %vm25, %v24
    %s28 = sshllo.u32 0, 1
    %v30 = vld [vmem:[#allocation0] sm:%s28]
    %s31 = sshllo.u32 0, 1
    %32 = vst [vmem:[%s1] sm:%s31] %v30

// kernel: unet_forward.14
$region0: #{unet_forward.14}
  #allocation0 [shape = 'u32[]', space=smem, size = 0x4, offset = 0x4, fixed_abs, tag = 'smem constant byte address 0x4 - core index']
  #allocation1 [shape = 'u32[144,128]{1,0:T(1,128)}', space=vmem, size = 0x12000, scoped, tag = 'internal scratch']
  %s0 = inlined_call_operand.vmem [shape: bf16[8,576], index: 0, kind: input, shape index: {}]
  %s1 = inlined_call_operand.vmem [shape: bf16[576,128], index: 1, kind: input, shape index: {}]
  %s2 = inlined_call_operand.vmem [shape: f32[1,128], index: 2, kind: input, shape index: {}]
  %s3 = inlined_call_operand.vmem [shape: bf16[8,128], index: 3, kind: output, shape index: {}]
  %s4 = sld [smem:[#allocation0]]
  $region22: #{unet_forward.14} parent=0
    _
  %s6 = ssub.s32 1, %s4
  %s7 = scalar_select 0, %s6, %s4
  // Predicated region
  $region2: #{unet_forward.14} parent=0 // pred_check
    _
  $region3: #{unet_forward.14} parent=0 // pred_check_branch
    %9 = sbr.rel (0) target = $region5
  $region4: #{unet_forward.14} parent=0 // pred_region
    _
  $region5: #{unet_forward.14} parent=0 // pred_fallthru
    _
  // Predicated region
  $region6: #{unet_forward.14} parent=0 // pred_check
    _
  $region7: #{unet_forward.14} parent=0 // pred_check_branch
    %11 = sbr.rel (0) target = $region9
  $region8: #{unet_forward.14} parent=0 // pred_region
    _
  $region9: #{unet_forward.14} parent=0 // pred_fallthru
    _
  // Predicated region
  $region10: #{unet_forward.14} parent=0 // pred_check
    _
  $region11: #{unet_forward.14} parent=0 // pred_check_branch
    %13 = sbr.rel (0) target = $region13
  $region12: #{unet_forward.14} parent=0 // pred_region
    _
  $region13: #{unet_forward.14} parent=0 // pred_fallthru
    _
  %v15 = vld [vmem:[%s0] sm:$0xff]
  %v16 = vld [vmem:[%s0 + $0x8] sm:$0xff]
  %v17 = vld [vmem:[%s0 + $0x10] sm:$0xf]
  %v18 = vld [vmem:[%s1] sm:$0xf]
  %v19 = vld [vmem:[%s1 + $0x4] sm:$0xf]
  %v20 = vld [vmem:[%s1 + $0x8] sm:$0xf]
  %v21 = vld [vmem:[%s1 + $0xc] sm:$0xf]
  %v22 = vld [vmem:[%s1 + $0x10] sm:$0xf]
  %v23 = vld [vmem:[%s1 + $0x14] sm:$0xf]
  %v24 = vld [vmem:[%s1 + $0x18] sm:$0xf]
  %v25 = vld [vmem:[%s1 + $0x1c] sm:$0xf]
  %v26 = vld [vmem:[%s1 + $0x20] sm:$0xf]
  %v27 = vld [vmem:[%s1 + $0x24] sm:$0xf]
  %v28 = vld [vmem:[%s1 + $0x28] sm:$0xf]
  %v29 = vld [vmem:[%s1 + $0x2c] sm:$0xf]
  %v30 = vld [vmem:[%s1 + $0x30] sm:$0xf]
  %v31 = vld [vmem:[%s1 + $0x34] sm:$0xf]
  %v32 = vld [vmem:[%s1 + $0x38] sm:$0xf]
  %v33 = vld [vmem:[%s1 + $0x3c] sm:$0xf]
  %v34 = vld [vmem:[%s1 + $0x40] sm:$0xf]
  %v35 = vld [vmem:[%s1 + $0x44] sm:$0xf]
  %v36 = vld [vmem:[%s1 + $0x48] sm:$0xf]
  %v37 = vld [vmem:[%s1 + $0x4c] sm:$0xf]
  %v38 = vld [vmem:[%s1 + $0x50] sm:$0xf]
  %v39 = vld [vmem:[%s1 + $0x54] sm:$0xf]
  %v40 = vld [vmem:[%s1 + $0x58] sm:$0xf]
  %v41 = vld [vmem:[%s1 + $0x5c] sm:$0xf]
  %v42 = vld [vmem:[%s1 + $0x60] sm:$0xf]
  %v43 = vld [vmem:[%s1 + $0x64] sm:$0xf]
  %v44 = vld [vmem:[%s1 + $0x68] sm:$0xf]
  %v45 = vld [vmem:[%s1 + $0x6c] sm:$0xf]
  %v46 = vld [vmem:[%s1 + $0x70] sm:$0xf]
  %v47 = vld [vmem:[%s1 + $0x74] sm:$0xf]
  %v48 = vld [vmem:[%s1 + $0x78] sm:$0xf]
  %v49 = vld [vmem:[%s1 + $0x7c] sm:$0xf]
  %v50 = vld [vmem:[%s1 + $0x80] sm:$0xf]
  %v51 = vld [vmem:[%s1 + $0x84] sm:$0xf]
  %v52 = vld [vmem:[%s1 + $0x88] sm:$0xf]
  %v53 = vld [vmem:[%s1 + $0x8c] sm:$0xf]
  %v54 = vld [vmem:[%s1 + $0x90] sm:$0xf]
  %v55 = vld [vmem:[%s1 + $0x94] sm:$0xf]
  %v56 = vld [vmem:[%s1 + $0x98] sm:$0xf]
  %v57 = vld [vmem:[%s1 + $0x9c] sm:$0xf]
  %v58 = vld [vmem:[%s1 + $0xa0] sm:$0xf]
  %v59 = vld [vmem:[%s1 + $0xa4] sm:$0xf]
  %v60 = vld [vmem:[%s1 + $0xa8] sm:$0xf]
  %v61 = vld [vmem:[%s1 + $0xac] sm:$0xf]
  %v62 = vld [vmem:[%s1 + $0xb0] sm:$0xf]
  %v63 = vld [vmem:[%s1 + $0xb4] sm:$0xf]
  %v64 = vld [vmem:[%s1 + $0xb8] sm:$0xf]
  %v65 = vld [vmem:[%s1 + $0xbc] sm:$0xf]
  %v66 = vld [vmem:[%s1 + $0xc0] sm:$0xf]
  %v67 = vld [vmem:[%s1 + $0xc4] sm:$0xf]
  %v68 = vld [vmem:[%s1 + $0xc8] sm:$0xf]
  %v69 = vld [vmem:[%s1 + $0xcc] sm:$0xf]
  %v70 = vld [vmem:[%s1 + $0xd0] sm:$0xf]
  %v71 = vld [vmem:[%s1 + $0xd4] sm:$0xf]
  %v72 = vld [vmem:[%s1 + $0xd8] sm:$0xf]
  %v73 = vld [vmem:[%s1 + $0xdc] sm:$0xf]
  %v74 = vld [vmem:[%s1 + $0xe0] sm:$0xf]
  %v75 = vld [vmem:[%s1 + $0xe4] sm:$0xf]
  %v76 = vld [vmem:[%s1 + $0xe8] sm:$0xf]
  %v77 = vld [vmem:[%s1 + $0xec] sm:$0xf]
  %v78 = vld [vmem:[%s1 + $0xf0] sm:$0xf]
  %v79 = vld [vmem:[%s1 + $0xf4] sm:$0xf]
  %v80 = vld [vmem:[%s1 + $0xf8] sm:$0xf]
  %v81 = vld [vmem:[%s1 + $0xfc] sm:$0xf]
  %v82 = vld [vmem:[%s1 + $0x100] sm:$0xf]
  %v83 = vld [vmem:[%s1 + $0x104] sm:$0xf]
  %v84 = vld [vmem:[%s1 + $0x108] sm:$0xf]
  %v85 = vld [vmem:[%s1 + $0x10c] sm:$0xf]
  %v86 = vld [vmem:[%s1 + $0x110] sm:$0xf]
  %v87 = vld [vmem:[%s1 + $0x114] sm:$0xf]
  %v88 = vld [vmem:[%s1 + $0x118] sm:$0xf]
  %v89 = vld [vmem:[%s1 + $0x11c] sm:$0xf]
  %v90 = vld [vmem:[%s2] sm:$0x1]
  %v92 = vlaneseq
  %v93 = vshrl.u32 %v92, 7
  %v94 = vsub.s32 0, %v93
  %v95 = vrot.slane %v90, %v94
  %v100 = vunpack.c.l.b16 %v15
  %v101 = vunpack.c.h.b16 %v15
  %v102 = vunpack.c.l.b16 %v16
  %v103 = vunpack.c.h.b16 %v16
  %v104 = vunpack.c.l.b16 %v17
  %v105 = vpack.c.b16 %v100, %v100
  %v106 = vpack.c.b16 %v101, %v101
  %v107 = vpack.c.b16 %v102, %v102
  %v108 = vpack.c.b16 %v103, %v103
  %v109 = vpack.c.b16 %v104, %v104
  %v186 = vunpack.c.l.b16 %v18
  %v187 = vunpack.c.l.b16 %v19
  %v188 = vunpack.c.l.b16 %v20
  %v189 = vunpack.c.l.b16 %v21
  %v190 = vunpack.c.l.b16 %v22
  %v191 = vunpack.c.l.b16 %v23
  %v192 = vunpack.c.l.b16 %v24
  %v193 = vunpack.c.l.b16 %v25
  %v194 = vunpack.c.l.b16 %v26
  %v195 = vunpack.c.l.b16 %v27
  %v196 = vunpack.c.l.b16 %v28
  %v197 = vunpack.c.l.b16 %v29
  %v198 = vunpack.c.l.b16 %v30
  %v199 = vunpack.c.l.b16 %v31
  %v200 = vunpack.c.l.b16 %v32
  %v201 = vunpack.c.l.b16 %v33
  %v202 = vunpack.c.l.b16 %v34
  %v203 = vunpack.c.l.b16 %v35
  %v204 = vunpack.c.l.b16 %v36
  %v205 = vunpack.c.l.b16 %v37
  %v206 = vunpack.c.l.b16 %v38
  %v207 = vunpack.c.l.b16 %v39
  %v208 = vunpack.c.l.b16 %v40
  %v209 = vunpack.c.l.b16 %v41
  %v210 = vunpack.c.l.b16 %v42
  %v211 = vunpack.c.l.b16 %v43
  %v212 = vunpack.c.l.b16 %v44
  %v213 = vunpack.c.l.b16 %v45
  %v214 = vunpack.c.l.b16 %v46
  %v215 = vunpack.c.l.b16 %v47
  %v216 = vunpack.c.l.b16 %v48
  %v217 = vunpack.c.l.b16 %v49
  %v218 = vunpack.c.l.b16 %v50
  %v219 = vunpack.c.l.b16 %v51
  %v220 = vunpack.c.l.b16 %v52
  %v221 = vunpack.c.l.b16 %v53
  %v222 = vunpack.c.l.b16 %v54
  %v223 = vunpack.c.l.b16 %v55
  %v224 = vunpack.c.l.b16 %v56
  %v225 = vunpack.c.l.b16 %v57
  %v226 = vunpack.c.l.b16 %v58
  %v227 = vunpack.c.l.b16 %v59
  %v228 = vunpack.c.l.b16 %v60
  %v229 = vunpack.c.l.b16 %v61
  %v230 = vunpack.c.l.b16 %v62
  %v231 = vunpack.c.l.b16 %v63
  %v232 = vunpack.c.l.b16 %v64
  %v233 = vunpack.c.l.b16 %v65
  %v234 = vunpack.c.l.b16 %v66
  %v235 = vunpack.c.l.b16 %v67
  %v236 = vunpack.c.l.b16 %v68
  %v237 = vunpack.c.l.b16 %v69
  %v238 = vunpack.c.l.b16 %v70
  %v239 = vunpack.c.l.b16 %v71
  %v240 = vunpack.c.l.b16 %v72
  %v241 = vunpack.c.l.b16 %v73
  %v242 = vunpack.c.l.b16 %v74
  %v243 = vunpack.c.l.b16 %v75
  %v244 = vunpack.c.l.b16 %v76
  %v245 = vunpack.c.l.b16 %v77
  %v246 = vunpack.c.l.b16 %v78
  %v247 = vunpack.c.l.b16 %v79
  %v248 = vunpack.c.l.b16 %v80
  %v249 = vunpack.c.l.b16 %v81
  %v250 = vunpack.c.l.b16 %v82
  %v251 = vunpack.c.l.b16 %v83
  %v252 = vunpack.c.l.b16 %v84
  %v253 = vunpack.c.l.b16 %v85
  %v254 = vunpack.c.l.b16 %v86
  %v255 = vunpack.c.l.b16 %v87
  %v256 = vunpack.c.l.b16 %v88
  %v257 = vunpack.c.l.b16 %v89
  %v258 = vpack.c.b16 %v187, %v186
  %v259 = vpack.c.b16 %v189, %v188
  %v260 = vpack.c.b16 %v191, %v190
  %v261 = vpack.c.b16 %v193, %v192
  %v262 = vpack.c.b16 %v195, %v194
  %v263 = vpack.c.b16 %v197, %v196
  %v264 = vpack.c.b16 %v199, %v198
  %v265 = vpack.c.b16 %v201, %v200
  %v266 = vpack.c.b16 %v203, %v202
  %v267 = vpack.c.b16 %v205, %v204
  %v268 = vpack.c.b16 %v207, %v206
  %v269 = vpack.c.b16 %v209, %v208
  %v270 = vpack.c.b16 %v211, %v210
  %v271 = vpack.c.b16 %v213, %v212
  %v272 = vpack.c.b16 %v215, %v214
  %v273 = vpack.c.b16 %v217, %v216
  %v274 = vpack.c.b16 %v219, %v218
  %v275 = vpack.c.b16 %v221, %v220
  %v276 = vpack.c.b16 %v223, %v222
  %v277 = vpack.c.b16 %v225, %v224
  %v278 = vpack.c.b16 %v227, %v226
  %v279 = vpack.c.b16 %v229, %v228
  %v280 = vpack.c.b16 %v231, %v230
  %v281 = vpack.c.b16 %v233, %v232
  %v282 = vpack.c.b16 %v235, %v234
  %v283 = vpack.c.b16 %v237, %v236
  %v284 = vpack.c.b16 %v239, %v238
  %v285 = vpack.c.b16 %v241, %v240
  %v286 = vpack.c.b16 %v243, %v242
  %v287 = vpack.c.b16 %v245, %v244
  %v288 = vpack.c.b16 %v247, %v246
  %v289 = vpack.c.b16 %v249, %v248
  %v290 = vpack.c.b16 %v251, %v250
  %v291 = vpack.c.b16 %v253, %v252
  %v292 = vpack.c.b16 %v255, %v254
  %v293 = vpack.c.b16 %v257, %v256
  %vm330 = vcmask 523264
  %v332 = vsel %vm330, %v109, 0
  %334 = vmatprep.subr.bf16.mxu0 0
  %335 = vmatpush1.bf16.msra.mxu0 %v258
  %336 = vmatprep.subr.bf16.mxu0 0
  %337 = vmatpush1.bf16.msra.mxu0 %v259
  %338 = vmatprep.subr.bf16.mxu0 0
  %339 = vmatpush1.bf16.msra.mxu0 %v260
  %340 = vmatprep.subr.bf16.mxu0 0
  %341 = vmatpush1.bf16.msra.mxu0 %v261
  %342 = vmatprep.subr.bf16.mxu0 0
  %343 = vmatpush1.bf16.msra.mxu0 %v262
  %344 = vmatprep.subr.bf16.mxu0 0
  %345 = vmatpush1.bf16.msra.mxu0 %v263
  %346 = vmatprep.subr.bf16.mxu0 0
  %347 = vmatpush1.bf16.msra.mxu0 %v264
  %348 = vmatprep.subr.bf16.mxu0 0
  %349 = vmatpush1.bf16.msra.mxu0 %v265
  %350 = vmatprep.subr.bf16.mxu0 0
  %351 = vmatpush1.bf16.msra.mxu0 %v266
  %352 = vmatprep.subr.bf16.mxu0 0
  %353 = vmatpush1.bf16.msra.mxu0 %v267
  %354 = vmatprep.subr.bf16.mxu0 0
  %355 = vmatpush1.bf16.msra.mxu0 %v268
  %356 = vmatprep.subr.bf16.mxu0 0
  %357 = vmatpush1.bf16.msra.mxu0 %v269
  %358 = vmatprep.subr.bf16.mxu0 0
  %359 = vmatpush1.bf16.msra.mxu0 %v270
  %360 = vmatprep.subr.bf16.mxu0 0
  %361 = vmatpush1.bf16.msra.mxu0 %v271
  %362 = vmatprep.subr.bf16.mxu0 0
  %363 = vmatpush1.bf16.msra.mxu0 %v272
  %364 = vmatprep.subr.bf16.mxu0 0
  %365 = vmatpush1.bf16.msra.mxu0 %v273
  %366 = vmatprep.mubr.bf16.mxu0 %v106
  %367 = vmatmul.mubr.bf16.gmra.mrb[0].mxu0 %v105
  %v368 = vpop.f32.mrb[0].mxu0
  %v369 = vadd.f32 %v95, %v368
  %v370 = vpop.f32.mrb[0].mxu0
  %v371 = vpop.f32.mrb[0].mxu0
  %v372 = vpop.f32.mrb[0].mxu0
  %373 = vdwg.mxu0
  %374 = vmatprep.subr.bf16.mxu0 0
  %375 = vmatpush1.bf16.msra.mxu0 %v274
  %376 = vmatprep.subr.bf16.mxu0 0
  %377 = vmatpush1.bf16.msra.mxu0 %v275
  %378 = vmatprep.subr.bf16.mxu0 0
  %379 = vmatpush1.bf16.msra.mxu0 %v276
  %380 = vmatprep.subr.bf16.mxu0 0
  %381 = vmatpush1.bf16.msra.mxu0 %v277
  %382 = vmatprep.subr.bf16.mxu0 0
  %383 = vmatpush1.bf16.msra.mxu0 %v278
  %384 = vmatprep.subr.bf16.mxu0 0
  %385 = vmatpush1.bf16.msra.mxu0 %v279
  %386 = vmatprep.subr.bf16.mxu0 0
  %387 = vmatpush1.bf16.msra.mxu0 %v280
  %388 = vmatprep.subr.bf16.mxu0 0
  %389 = vmatpush1.bf16.msra.mxu0 %v281
  %390 = vmatprep.subr.bf16.mxu0 0
  %391 = vmatpush1.bf16.msra.mxu0 %v282
  %392 = vmatprep.subr.bf16.mxu0 0
  %393 = vmatpush1.bf16.msra.mxu0 %v283
  %394 = vmatprep.subr.bf16.mxu0 0
  %395 = vmatpush1.bf16.msra.mxu0 %v284
  %396 = vmatprep.subr.bf16.mxu0 0
  %397 = vmatpush1.bf16.msra.mxu0 %v285
  %398 = vmatprep.subr.bf16.mxu0 0
  %399 = vmatpush1.bf16.msra.mxu0 %v286
  %400 = vmatprep.subr.bf16.mxu0 0
  %401 = vmatpush1.bf16.msra.mxu0 %v287
  %402 = vmatprep.subr.bf16.mxu0 0
  %403 = vmatpush1.bf16.msra.mxu0 %v288
  %404 = vmatprep.subr.bf16.mxu0 0
  %405 = vmatpush1.bf16.msra.mxu0 %v289
  %406 = vmatprep.mubr.bf16.mxu0 %v108
  %407 = vmatmul.mubr.bf16.gmra.mrb[0].mxu0 %v107
  %v408 = vpop.f32.mrb[0].mxu0
  %v409 = vadd.f32 %v369, %v408
  %v410 = vpop.f32.mrb[0].mxu0
  %v411 = vpop.f32.mrb[0].mxu0
  %v412 = vpop.f32.mrb[0].mxu0
  %413 = vdwg.mxu0
  %414 = vmatprep.subr.bf16.mxu0 0
  %415 = vmatpush1.bf16.msra.mxu0 %v290
  %416 = vmatprep.subr.bf16.mxu0 0
  %417 = vmatpush1.bf16.msra.mxu0 %v291
  %418 = vmatprep.subr.bf16.mxu0 0
  %419 = vmatpush1.bf16.msra.mxu0 %v292
  %420 = vmatprep.subr.bf16.mxu0 0
  %421 = vmatpush1.bf16.msra.mxu0 %v293
  %422 = vmatprep.subr.bf16.mxu0 0
  %423 = vmatpush1.bf16.msra.mxu0 0
  %424 = vmatprep.subr.bf16.mxu0 0
  %425 = vmatpush1.bf16.msra.mxu0 0
  %426 = vmatprep.subr.bf16.mxu0 0
  %427 = vmatpush1.bf16.msra.mxu0 0
  %428 = vmatprep.subr.bf16.mxu0 0
  %429 = vmatpush1.bf16.msra.mxu0 0
  %430 = vmatprep.subr.bf16.mxu0 0
  %431 = vmatpush1.bf16.msra.mxu0 0
  %432 = vmatprep.subr.bf16.mxu0 0
  %433 = vmatpush1.bf16.msra.mxu0 0
  %434 = vmatprep.subr.bf16.mxu0 0
  %435 = vmatpush1.bf16.msra.mxu0 0
  %436 = vmatprep.subr.bf16.mxu0 0
  %437 = vmatpush1.bf16.msra.mxu0 0
  %438 = vmatprep.subr.bf16.mxu0 0
  %439 = vmatpush1.bf16.msra.mxu0 0
  %440 = vmatprep.subr.bf16.mxu0 0
  %441 = vmatpush1.bf16.msra.mxu0 0
  %442 = vmatprep.subr.bf16.mxu0 0
  %443 = vmatpush1.bf16.msra.mxu0 0
  %444 = vmatprep.subr.bf16.mxu0 0
  %445 = vmatpush1.bf16.msra.mxu0 0
  %446 = vmatprep.mubr.bf16.mxu0 0
  %447 = vmatmul.mubr.bf16.gmra.mrb[0].mxu0 %v332
  %v448 = vpop.f32.mrb[0].mxu0
  %v449 = vadd.f32 %v409, %v448
  %v450 = vpop.f32.mrb[0].mxu0
  %v451 = vpop.f32.mrb[0].mxu0
  %v452 = vpop.f32.mrb[0].mxu0
  %453 = vdwg.mxu0
  %vm454 = vcmp.ge.f32.partialorder %v449, 0.0
  %v455 = vmul.f32 %v449, 0.01
  %v456 = vsel %vm454, %v449, %v455
  %v457 = vpack.c.bf16 %v456, %v456
  %458 = vst [vmem:[%s3] sm:$0xf] %v457
  // Predicated region
  $region14: #{unet_forward.14} parent=0 // pred_check
    _
  $region15: #{unet_forward.14} parent=0 // pred_check_branch
    %460 = sbr.rel (0) target = $region17
  $region16: #{unet_forward.14} parent=0 // pred_region
    _
  $region17: #{unet_forward.14} parent=0 // pred_fallthru
    _
  // Predicated region
  $region18: #{unet_forward.14} parent=0 // pred_check
    _
  $region19: #{unet_forward.14} parent=0 // pred_check_branch
    %462 = sbr.rel (0) target = $region21
  $region20: #{unet_forward.14} parent=0 // pred_region
    _
  $region21: #{unet_forward.14} parent=0 // pred_fallthru
    _

// kernel: unet_forward.15
$region0: #{unet_forward.15}
  #allocation0 [shape = 'u32[]', space=smem, size = 0x4, offset = 0x4, fixed_abs, tag = 'smem constant byte address 0x4 - core index']
  #allocation1 [shape = 'u32[144,128]{1,0:T(1,128)}', space=vmem, size = 0x12000, scoped, tag = 'internal scratch']
  %s0 = inlined_call_operand.vmem [shape: bf16[8,128], index: 0, kind: input, shape index: {}]
  %s1 = inlined_call_operand.vmem [shape: bf16[128,256], index: 1, kind: input, shape index: {}]
  %s2 = inlined_call_operand.vmem [shape: f32[1,256], index: 2, kind: input, shape index: {}]
  %s3 = inlined_call_operand.vmem [shape: bf16[8,256], index: 3, kind: output, shape index: {}]
  %s4 = sld [smem:[#allocation0]]
  $region22: #{unet_forward.15} parent=0
    _
  %s6 = ssub.s32 1, %s4
  %s7 = scalar_select 0, %s6, %s4
  // Predicated region
  $region2: #{unet_forward.15} parent=0 // pred_check
    _
  $region3: #{unet_forward.15} parent=0 // pred_check_branch
    %9 = sbr.rel (0) target = $region5
  $region4: #{unet_forward.15} parent=0 // pred_region
    _
  $region5: #{unet_forward.15} parent=0 // pred_fallthru
    _
  // Predicated region
  $region6: #{unet_forward.15} parent=0 // pred_check
    _
  $region7: #{unet_forward.15} parent=0 // pred_check_branch
    %11 = sbr.rel (0) target = $region9
  $region8: #{unet_forward.15} parent=0 // pred_region
    _
  $region9: #{unet_forward.15} parent=0 // pred_fallthru
    _
  // Predicated region
  $region10: #{unet_forward.15} parent=0 // pred_check
    _
  $region11: #{unet_forward.15} parent=0 // pred_check_branch
    %13 = sbr.rel (0) target = $region13
  $region12: #{unet_forward.15} parent=0 // pred_region
    _
  $region13: #{unet_forward.15} parent=0 // pred_fallthru
    _
  %v15 = vld [vmem:[%s0] sm:$0xf]
  %v16 = vld [vmem:[%s1] sm:$0xff]
  %v17 = vld [vmem:[%s1 + $0x8] sm:$0xff]
  %v18 = vld [vmem:[%s1 + $0x10] sm:$0xff]
  %v19 = vld [vmem:[%s1 + $0x18] sm:$0xff]
  %v20 = vld [vmem:[%s1 + $0x20] sm:$0xff]
  %v21 = vld [vmem:[%s1 + $0x28] sm:$0xff]
  %v22 = vld [vmem:[%s1 + $0x30] sm:$0xff]
  %v23 = vld [vmem:[%s1 + $0x38] sm:$0xff]
  %v24 = vld [vmem:[%s1 + $0x40] sm:$0xff]
  %v25 = vld [vmem:[%s1 + $0x48] sm:$0xff]
  %v26 = vld [vmem:[%s1 + $0x50] sm:$0xff]
  %v27 = vld [vmem:[%s1 + $0x58] sm:$0xff]
  %v28 = vld [vmem:[%s1 + $0x60] sm:$0xff]
  %v29 = vld [vmem:[%s1 + $0x68] sm:$0xff]
  %v30 = vld [vmem:[%s1 + $0x70] sm:$0xff]
  %v31 = vld [vmem:[%s1 + $0x78] sm:$0xff]
  %v32 = vld [vmem:[%s2] sm:$0x3]
  %v34 = vlaneseq
  %v35 = vshrl.u32 %v34, 7
  %v36 = vsub.s32 0, %v35
  %v37 = vrot.slane %v32, %v36
  %v38 = vlaneseq
  %v39 = vshrl.u32 %v38, 7
  %v40 = vsub.s32 1, %v39
  %v41 = vrot.slane %v32, %v40
  %v60 = vunpack.c.l.b16 %v16
  %v61 = vunpack.c.h.b16 %v16
  %v62 = vunpack.c.l.b16 %v17
  %v63 = vunpack.c.h.b16 %v17
  %v64 = vunpack.c.l.b16 %v18
  %v65 = vunpack.c.h.b16 %v18
  %v66 = vunpack.c.l.b16 %v19
  %v67 = vunpack.c.h.b16 %v19
  %v68 = vunpack.c.l.b16 %v20
  %v69 = vunpack.c.h.b16 %v20
  %v70 = vunpack.c.l.b16 %v21
  %v71 = vunpack.c.h.b16 %v21
  %v72 = vunpack.c.l.b16 %v22
  %v73 = vunpack.c.h.b16 %v22
  %v74 = vunpack.c.l.b16 %v23
  %v75 = vunpack.c.h.b16 %v23
  %v76 = vunpack.c.l.b16 %v24
  %v77 = vunpack.c.h.b16 %v24
  %v78 = vunpack.c.l.b16 %v25
  %v79 = vunpack.c.h.b16 %v25
  %v80 = vunpack.c.l.b16 %v26
  %v81 = vunpack.c.h.b16 %v26
  %v82 = vunpack.c.l.b16 %v27
  %v83 = vunpack.c.h.b16 %v27
  %v84 = vunpack.c.l.b16 %v28
  %v85 = vunpack.c.h.b16 %v28
  %v86 = vunpack.c.l.b16 %v29
  %v87 = vunpack.c.h.b16 %v29
  %v88 = vunpack.c.l.b16 %v30
  %v89 = vunpack.c.h.b16 %v30
  %v90 = vunpack.c.l.b16 %v31
  %v91 = vunpack.c.h.b16 %v31
  %v92 = vpack.c.b16 %v62, %v60
  %v93 = vpack.c.b16 %v63, %v61
  %v94 = vpack.c.b16 %v66, %v64
  %v95 = vpack.c.b16 %v67, %v65
  %v96 = vpack.c.b16 %v70, %v68
  %v97 = vpack.c.b16 %v71, %v69
  %v98 = vpack.c.b16 %v74, %v72
  %v99 = vpack.c.b16 %v75, %v73
  %v100 = vpack.c.b16 %v78, %v76
  %v101 = vpack.c.b16 %v79, %v77
  %v102 = vpack.c.b16 %v82, %v80
  %v103 = vpack.c.b16 %v83, %v81
  %v104 = vpack.c.b16 %v86, %v84
  %v105 = vpack.c.b16 %v87, %v85
  %v106 = vpack.c.b16 %v90, %v88
  %v107 = vpack.c.b16 %v91, %v89
  %124 = vmatprep.subr.bf16.mxu0 %v93
  %125 = vmatpush1.bf16.msra.mxu0 %v92
  %126 = vmatprep.subr.bf16.mxu0 %v95
  %127 = vmatpush1.bf16.msra.mxu0 %v94
  %128 = vmatprep.subr.bf16.mxu0 %v97
  %129 = vmatpush1.bf16.msra.mxu0 %v96
  %130 = vmatprep.subr.bf16.mxu0 %v99
  %131 = vmatpush1.bf16.msra.mxu0 %v98
  %132 = vmatprep.subr.bf16.mxu0 %v101
  %133 = vmatpush1.bf16.msra.mxu0 %v100
  %134 = vmatprep.subr.bf16.mxu0 %v103
  %135 = vmatpush1.bf16.msra.mxu0 %v102
  %136 = vmatprep.subr.bf16.mxu0 %v105
  %137 = vmatpush1.bf16.msra.mxu0 %v104
  %138 = vmatprep.subr.bf16.mxu0 %v107
  %139 = vmatpush1.bf16.msra.mxu0 %v106
  %140 = vmatprep.subr.bf16.mxu0 0
  %141 = vmatpush1.bf16.msra.mxu0 0
  %142 = vmatprep.subr.bf16.mxu0 0
  %143 = vmatpush1.bf16.msra.mxu0 0
  %144 = vmatprep.subr.bf16.mxu0 0
  %145 = vmatpush1.bf16.msra.mxu0 0
  %146 = vmatprep.subr.bf16.mxu0 0
  %147 = vmatpush1.bf16.msra.mxu0 0
  %148 = vmatprep.subr.bf16.mxu0 0
  %149 = vmatpush1.bf16.msra.mxu0 0
  %150 = vmatprep.subr.bf16.mxu0 0
  %151 = vmatpush1.bf16.msra.mxu0 0
  %152 = vmatprep.subr.bf16.mxu0 0
  %153 = vmatpush1.bf16.msra.mxu0 0
  %154 = vmatprep.subr.bf16.mxu0 0
  %155 = vmatpush1.bf16.msra.mxu0 0
  %156 = vmatprep.mubr.bf16.mxu0 0
  %157 = vmatmul.mubr.bf16.gmra.mrb[0].mxu0 %v15
  %v158 = vpop.f32.mrb[0].mxu0
  %v159 = vadd.f32 %v37, %v158
  %v160 = vpop.f32.mrb[0].mxu0
  %v161 = vadd.f32 %v41, %v160
  %v162 = vpop.f32.mrb[0].mxu0
  %v163 = vpop.f32.mrb[0].mxu0
  %164 = vdwg.mxu0
  %vm165 = vcmp.ge.f32.partialorder %v159, 0.0
  %vm166 = vcmp.ge.f32.partialorder %v161, 0.0
  %v167 = vmul.f32 %v159, 0.01
  %v168 = vmul.f32 %v161, 0.01
  %v169 = vsel %vm165, %v159, %v167
  %v170 = vsel %vm166, %v161, %v168
  %v171 = vpack.c.bf16 %v169, %v169
  %v172 = vpack.c.bf16 %v170, %v170
  %v175 = vunpack.c.l.b16 %v171
  %v176 = vunpack.c.l.b16 %v172
  %v177 = vpack.c.b16 %v176, %v175
  %179 = vst [vmem:[%s3] sm:$0xff] %v177
  // Predicated region
  $region14: #{unet_forward.15} parent=0 // pred_check
    _
  $region15: #{unet_forward.15} parent=0 // pred_check_branch
    %181 = sbr.rel (0) target = $region17
  $region16: #{unet_forward.15} parent=0 // pred_region
    _
  $region17: #{unet_forward.15} parent=0 // pred_fallthru
    _
  // Predicated region
  $region18: #{unet_forward.15} parent=0 // pred_check
    _
  $region19: #{unet_forward.15} parent=0 // pred_check_branch
    %183 = sbr.rel (0) target = $region21
  $region20: #{unet_forward.15} parent=0 // pred_region
    _
  $region21: #{unet_forward.15} parent=0 // pred_fallthru
    _

// kernel: tile.38
$region0: #{tile.38}
  #allocation0 [shape = 's32[1]{0}', space=sflag, size = 0x4, scoped, tag = 'scoped memory for tile.38']
  %s0 = inlined_call_operand.vmem [shape: f32[16], index: 0, kind: input, shape index: {}]
  %s1 = inlined_call_operand.vmem [shape: f32[4,16], index: 1, kind: output, shape index: {}]
  // Predicated region
  $region2: #{tile.38} parent=0 // pred_check
    _
  $region3: #{tile.38} parent=0 // pred_check_branch
    %3 = sbr.rel (0) target = $region5
  $region4: #{tile.38} parent=0 // pred_region
    _
  $region5: #{tile.38} parent=0 // pred_fallthru
    _
  %v4 = vld [vmem:[%s0] ss:$0 sm:$0xff]
  %5 = vst [vmem:[%s1] sm:$0xf] %v4

// kernel: tile.39
$region0: #{tile.39}
  %s0 = inlined_call_operand.vmem [shape: f32[4,16], index: 0, kind: input, shape index: {}]
  %s1 = inlined_call_operand.vmem [shape: f32[1,64], index: 1, kind: output, shape index: {}]
  $region1: #{tile.39} parent=0
    #allocation0 [shape = 'u8[4096]{0}', space=vmem, size = 0x1000, scoped, tag = 'scoped mem for output reshape']
    #allocation1 [shape = 'u8[4096]{0}', space=vmem, size = 0x1000, scoped, tag = 'scoped mem for input reshape']
    %s3 = sshllo.u32 0, 4
    %v4 = vld [vmem:[%s0] sm:%s3]
    %5 = vst [vmem:[#allocation1] sm:%s3] %v4
    %v6 = vld [vmem:[#allocation1] sm:$0x1]
    %vm7 = vcmask 130048
    %8 = vst.msk [vmem:[#allocation0] sm:$0x1] %vm7, %v6
    %s9 = scalar_lea.vmem [#allocation1], 3
    %v10 = vld [vmem:[%s9] sm:$0x1]
    %11 = vrot.lane.b32.xlu0 %v10, 48
    %v12 = vpop.permute.xlu0 %11
    %vm13 = vcmask 523648
    %14 = vst.msk [vmem:[#allocation0] sm:$0x1] %vm13, %v12
    %s15 = scalar_lea.vmem [#allocation1], 2
    %v16 = vld [vmem:[%s15] sm:$0x1]
    %17 = vrot.lane.b32.xlu0 %v16, 32
    %v18 = vpop.permute.xlu0 %17
    %vm19 = vcmask 392448
    %20 = vst.msk [vmem:[#allocation0] sm:$0x1] %vm19, %v18
    %s21 = scalar_lea.vmem [#allocation1], 1
    %v22 = vld [vmem:[%s21] sm:$0x1]
    %23 = vrot.lane.b32.xlu0 %v22, 16
    %v24 = vpop.permute.xlu0 %23
    %vm25 = vcmask 261248
    %26 = vst.msk [vmem:[#allocation0] sm:$0x1] %vm25, %v24
    %s28 = sshllo.u32 0, 1
    %v30 = vld [vmem:[#allocation0] sm:%s28]
    %s31 = sshllo.u32 0, 1
    %32 = vst [vmem:[%s1] sm:%s31] %v30

// kernel: tile.43
$region0: #{tile.43}
  #allocation0 [shape = 's32[1]{0}', space=sflag, size = 0x4, scoped, tag = 'scoped memory for tile.43']
  %s0 = inlined_call_operand.vmem [shape: f32[8], index: 0, kind: input, shape index: {}]
  %s1 = inlined_call_operand.vmem [shape: f32[4,8], index: 1, kind: output, shape index: {}]
  // Predicated region
  $region2: #{tile.43} parent=0 // pred_check
    _
  $region3: #{tile.43} parent=0 // pred_check_branch
    %3 = sbr.rel (0) target = $region5
  $region4: #{tile.43} parent=0 // pred_region
    _
  $region5: #{tile.43} parent=0 // pred_fallthru
    _
  %v4 = vld [vmem:[%s0] ss:$0 sm:$0xff]
  %5 = vst [vmem:[%s1] sm:$0xf] %v4

// kernel: tile.44
$region0: #{tile.44}
  %s0 = inlined_call_operand.vmem [shape: f32[4,8], index: 0, kind: input, shape index: {}]
  %s1 = inlined_call_operand.vmem [shape: f32[1,32], index: 1, kind: output, shape index: {}]
  $region1: #{tile.44} parent=0
    #allocation0 [shape = 'u8[4096]{0}', space=vmem, size = 0x1000, scoped, tag = 'scoped mem for output reshape']
    #allocation1 [shape = 'u8[4096]{0}', space=vmem, size = 0x1000, scoped, tag = 'scoped mem for input reshape']
    %s3 = sshllo.u32 0, 4
    %v4 = vld [vmem:[%s0] sm:%s3]
    %5 = vst [vmem:[#allocation1] sm:%s3] %v4
    %v6 = vld [vmem:[#allocation1] sm:$0x1]
    %vm7 = vcmask 64512
    %8 = vst.msk [vmem:[#allocation0] sm:$0x1] %vm7, %v6
    %s9 = scalar_lea.vmem [#allocation1], 3
    %v10 = vld [vmem:[%s9] sm:$0x1]
    %11 = vrot.lane.b32.xlu0 %v10, 24
    %v12 = vpop.permute.xlu0 %11
    %vm13 = vcmask 261312
    %14 = vst.msk [vmem:[#allocation0] sm:$0x1] %vm13, %v12
    %s15 = scalar_lea.vmem [#allocation1], 2
    %v16 = vld [vmem:[%s15] sm:$0x1]
    %17 = vrot.lane.b32.xlu0 %v16, 16
    %v18 = vpop.permute.xlu0 %17
    %vm19 = vcmask 195712
    %20 = vst.msk [vmem:[#allocation0] sm:$0x1] %vm19, %v18
    %s21 = scalar_lea.vmem [#allocation1], 1
    %v22 = vld [vmem:[%s21] sm:$0x1]
    %23 = vrot.lane.b32.xlu0 %v22, 8
    %v24 = vpop.permute.xlu0 %23
    %vm25 = vcmask 130112
    %26 = vst.msk [vmem:[#allocation0] sm:$0x1] %vm25, %v24
    %s28 = sshllo.u32 0, 1
    %v30 = vld [vmem:[#allocation0] sm:%s28]
    %s31 = sshllo.u32 0, 1
    %32 = vst [vmem:[%s1] sm:%s31] %v30

// kernel: unet_forward.16
$region0: #{unet_forward.16}
  #allocation0 [shape = 'u32[]', space=smem, size = 0x4, offset = 0x4, fixed_abs, tag = 'smem constant byte address 0x4 - core index']
  #allocation1 [shape = 'u32[144,128]{1,0:T(1,128)}', space=vmem, size = 0x12000, scoped, tag = 'internal scratch']
  %s0 = inlined_call_operand.vmem [shape: bf16[8,64], index: 0, kind: input, shape index: {}]
  %s1 = inlined_call_operand.vmem [shape: bf16[8,64], index: 1, kind: input, shape index: {}]
  %s2 = inlined_call_operand.vmem [shape: bf16[64,128], index: 2, kind: input, shape index: {}]
  %s3 = inlined_call_operand.vmem [shape: bf16[64,128], index: 3, kind: input, shape index: {}]
  %s4 = inlined_call_operand.vmem [shape: f32[1,128], index: 4, kind: input, shape index: {}]
  %s5 = inlined_call_operand.vmem [shape: bf16[8,128], index: 5, kind: output, shape index: {}]
  %s6 = sld [smem:[#allocation0]]
  $region30: #{unet_forward.16} parent=0
    _
  %s8 = ssub.s32 1, %s6
  %s9 = scalar_select 0, %s8, %s6
  // Predicated region
  $region2: #{unet_forward.16} parent=0 // pred_check
    _
  $region3: #{unet_forward.16} parent=0 // pred_check_branch
    %11 = sbr.rel (0) target = $region5
  $region4: #{unet_forward.16} parent=0 // pred_region
    _
  $region5: #{unet_forward.16} parent=0 // pred_fallthru
    _
  // Predicated region
  $region6: #{unet_forward.16} parent=0 // pred_check
    _
  $region7: #{unet_forward.16} parent=0 // pred_check_branch
    %13 = sbr.rel (0) target = $region9
  $region8: #{unet_forward.16} parent=0 // pred_region
    _
  $region9: #{unet_forward.16} parent=0 // pred_fallthru
    _
  // Predicated region
  $region10: #{unet_forward.16} parent=0 // pred_check
    _
  $region11: #{unet_forward.16} parent=0 // pred_check_branch
    %15 = sbr.rel (0) target = $region13
  $region12: #{unet_forward.16} parent=0 // pred_region
    _
  $region13: #{unet_forward.16} parent=0 // pred_fallthru
    _
  // Predicated region
  $region14: #{unet_forward.16} parent=0 // pred_check
    _
  $region15: #{unet_forward.16} parent=0 // pred_check_branch
    %17 = sbr.rel (0) target = $region17
  $region16: #{unet_forward.16} parent=0 // pred_region
    _
  $region17: #{unet_forward.16} parent=0 // pred_fallthru
    _
  // Predicated region
  $region18: #{unet_forward.16} parent=0 // pred_check
    _
  $region19: #{unet_forward.16} parent=0 // pred_check_branch
    %19 = sbr.rel (0) target = $region21
  $region20: #{unet_forward.16} parent=0 // pred_region
    _
  $region21: #{unet_forward.16} parent=0 // pred_fallthru
    _
  %v21 = vld [vmem:[%s0] sm:$0xf]
  %v22 = vld [vmem:[%s2] sm:$0xf]
  %v23 = vld [vmem:[%s2 + $0x4] sm:$0xf]
  %v24 = vld [vmem:[%s2 + $0x8] sm:$0xf]
  %v25 = vld [vmem:[%s2 + $0xc] sm:$0xf]
  %v26 = vld [vmem:[%s2 + $0x10] sm:$0xf]
  %v27 = vld [vmem:[%s2 + $0x14] sm:$0xf]
  %v28 = vld [vmem:[%s2 + $0x18] sm:$0xf]
  %v29 = vld [vmem:[%s2 + $0x1c] sm:$0xf]
  %v30 = vld [vmem:[%s1] sm:$0xf]
  %v31 = vld [vmem:[%s3] sm:$0xf]
  %v32 = vld [vmem:[%s3 + $0x4] sm:$0xf]
  %v33 = vld [vmem:[%s3 + $0x8] sm:$0xf]
  %v34 = vld [vmem:[%s3 + $0xc] sm:$0xf]
  %v35 = vld [vmem:[%s3 + $0x10] sm:$0xf]
  %v36 = vld [vmem:[%s3 + $0x14] sm:$0xf]
  %v37 = vld [vmem:[%s3 + $0x18] sm:$0xf]
  %v38 = vld [vmem:[%s3 + $0x1c] sm:$0xf]
  %v47 = vunpack.c.l.b16 %v31
  %v48 = vunpack.c.l.b16 %v32
  %v49 = vunpack.c.l.b16 %v33
  %v50 = vunpack.c.l.b16 %v34
  %v51 = vunpack.c.l.b16 %v35
  %v52 = vunpack.c.l.b16 %v36
  %v53 = vunpack.c.l.b16 %v37
  %v54 = vunpack.c.l.b16 %v38
  %v55 = vpack.c.b16 %v48, %v47
  %v56 = vpack.c.b16 %v50, %v49
  %v57 = vpack.c.b16 %v52, %v51
  %v58 = vpack.c.b16 %v54, %v53
  %vm63 = vcmask 523264
  %v65 = vsel %vm63, %v30, 0
  %67 = vmatprep.subr.bf16.mxu0 0
  %68 = vmatpush1.bf16.msra.mxu0 %v55
  %69 = vmatprep.subr.bf16.mxu0 0
  %70 = vmatpush1.bf16.msra.mxu0 %v56
  %71 = vmatprep.subr.bf16.mxu0 0
  %72 = vmatpush1.bf16.msra.mxu0 %v57
  %73 = vmatprep.subr.bf16.mxu0 0
  %74 = vmatpush1.bf16.msra.mxu0 %v58
  %75 = vmatprep.subr.bf16.mxu0 0
  %76 = vmatpush1.bf16.msra.mxu0 0
  %77 = vmatprep.subr.bf16.mxu0 0
  %78 = vmatpush1.bf16.msra.mxu0 0
  %79 = vmatprep.subr.bf16.mxu0 0
  %80 = vmatpush1.bf16.msra.mxu0 0
  %81 = vmatprep.subr.bf16.mxu0 0
  %82 = vmatpush1.bf16.msra.mxu0 0
  %83 = vmatprep.subr.bf16.mxu0 0
  %84 = vmatpush1.bf16.msra.mxu0 0
  %85 = vmatprep.subr.bf16.mxu0 0
  %86 = vmatpush1.bf16.msra.mxu0 0
  %87 = vmatprep.subr.bf16.mxu0 0
  %88 = vmatpush1.bf16.msra.mxu0 0
  %89 = vmatprep.subr.bf16.mxu0 0
  %90 = vmatpush1.bf16.msra.mxu0 0
  %91 = vmatprep.subr.bf16.mxu0 0
  %92 = vmatpush1.bf16.msra.mxu0 0
  %93 = vmatprep.subr.bf16.mxu0 0
  %94 = vmatpush1.bf16.msra.mxu0 0
  %95 = vmatprep.subr.bf16.mxu0 0
  %96 = vmatpush1.bf16.msra.mxu0 0
  %97 = vmatprep.subr.bf16.mxu0 0
  %98 = vmatpush1.bf16.msra.mxu0 0
  %99 = vmatprep.mubr.bf16.mxu0 0
  %100 = vmatmul.mubr.bf16.gmra.mrb[0].mxu0 %v65
  %v101 = vpop.f32.mrb[0].mxu0
  %v102 = vadd.f32 0.0, %v101
  %v103 = vpop.f32.mrb[0].mxu0
  %v104 = vpop.f32.mrb[0].mxu0
  %v105 = vpop.f32.mrb[0].mxu0
  %106 = vdwg.mxu0
  %v115 = vunpack.c.l.b16 %v22
  %v116 = vunpack.c.l.b16 %v23
  %v117 = vunpack.c.l.b16 %v24
  %v118 = vunpack.c.l.b16 %v25
  %v119 = vunpack.c.l.b16 %v26
  %v120 = vunpack.c.l.b16 %v27
  %v121 = vunpack.c.l.b16 %v28
  %v122 = vunpack.c.l.b16 %v29
  %v123 = vpack.c.b16 %v116, %v115
  %v124 = vpack.c.b16 %v118, %v117
  %v125 = vpack.c.b16 %v120, %v119
  %v126 = vpack.c.b16 %v122, %v121
  %v132 = vsel %vm63, %v21, 0
  %134 = vmatprep.subr.bf16.mxu0 0
  %135 = vmatpush1.bf16.msra.mxu0 %v123
  %136 = vmatprep.subr.bf16.mxu0 0
  %137 = vmatpush1.bf16.msra.mxu0 %v124
  %138 = vmatprep.subr.bf16.mxu0 0
  %139 = vmatpush1.bf16.msra.mxu0 %v125
  %140 = vmatprep.subr.bf16.mxu0 0
  %141 = vmatpush1.bf16.msra.mxu0 %v126
  %142 = vmatprep.subr.bf16.mxu0 0
  %143 = vmatpush1.bf16.msra.mxu0 0
  %144 = vmatprep.subr.bf16.mxu0 0
  %145 = vmatpush1.bf16.msra.mxu0 0
  %146 = vmatprep.subr.bf16.mxu0 0
  %147 = vmatpush1.bf16.msra.mxu0 0
  %148 = vmatprep.subr.bf16.mxu0 0
  %149 = vmatpush1.bf16.msra.mxu0 0
  %150 = vmatprep.subr.bf16.mxu0 0
  %151 = vmatpush1.bf16.msra.mxu0 0
  %152 = vmatprep.subr.bf16.mxu0 0
  %153 = vmatpush1.bf16.msra.mxu0 0
  %154 = vmatprep.subr.bf16.mxu0 0
  %155 = vmatpush1.bf16.msra.mxu0 0
  %156 = vmatprep.subr.bf16.mxu0 0
  %157 = vmatpush1.bf16.msra.mxu0 0
  %158 = vmatprep.subr.bf16.mxu0 0
  %159 = vmatpush1.bf16.msra.mxu0 0
  %160 = vmatprep.subr.bf16.mxu0 0
  %161 = vmatpush1.bf16.msra.mxu0 0
  %162 = vmatprep.subr.bf16.mxu0 0
  %163 = vmatpush1.bf16.msra.mxu0 0
  %164 = vmatprep.subr.bf16.mxu0 0
  %165 = vmatpush1.bf16.msra.mxu0 0
  %166 = vmatprep.mubr.bf16.mxu0 0
  %167 = vmatmul.mubr.bf16.gmra.mrb[0].mxu0 %v132
  %v168 = vpop.f32.mrb[0].mxu0
  %v169 = vadd.f32 %v102, %v168
  %v170 = vpop.f32.mrb[0].mxu0
  %v171 = vpop.f32.mrb[0].mxu0
  %v172 = vpop.f32.mrb[0].mxu0
  %173 = vdwg.mxu0
  %v174 = vld [vmem:[%s4] sm:$0x1]
  %v176 = vlaneseq
  %v177 = vshrl.u32 %v176, 7
  %v178 = vsub.s32 0, %v177
  %v179 = vrot.slane %v174, %v178
  %v181 = vadd.f32 %v169, %v179
  %vm182 = vcmp.ge.f32.partialorder %v181, 0.0
  %v183 = vmul.f32 %v181, 0.01
  %v184 = vsel %vm182, %v181, %v183
  %v185 = vpack.c.bf16 %v184, %v184
  %186 = vst [vmem:[%s5] sm:$0xf] %v185
  // Predicated region
  $region22: #{unet_forward.16} parent=0 // pred_check
    _
  $region23: #{unet_forward.16} parent=0 // pred_check_branch
    %188 = sbr.rel (0) target = $region25
  $region24: #{unet_forward.16} parent=0 // pred_region
    _
  $region25: #{unet_forward.16} parent=0 // pred_fallthru
    _
  // Predicated region
  $region26: #{unet_forward.16} parent=0 // pred_check
    _
  $region27: #{unet_forward.16} parent=0 // pred_check_branch
    %190 = sbr.rel (0) target = $region29
  $region28: #{unet_forward.16} parent=0 // pred_region
    _
  $region29: #{unet_forward.16} parent=0 // pred_fallthru
    _

// kernel: unet_forward.17
$region0: #{unet_forward.17}
  #allocation0 [shape = 'u32[]', space=smem, size = 0x4, offset = 0x4, fixed_abs, tag = 'smem constant byte address 0x4 - core index']
  #allocation1 [shape = 'u32[144,128]{1,0:T(1,128)}', space=vmem, size = 0x12000, scoped, tag = 'internal scratch']
  %s0 = inlined_call_operand.vmem [shape: bf16[32,32], index: 0, kind: input, shape index: {}]
  %s1 = inlined_call_operand.vmem [shape: bf16[32,32], index: 1, kind: input, shape index: {}]
  %s2 = inlined_call_operand.vmem [shape: bf16[32,64], index: 2, kind: input, shape index: {}]
  %s3 = inlined_call_operand.vmem [shape: bf16[32,64], index: 3, kind: input, shape index: {}]
  %s4 = inlined_call_operand.vmem [shape: f32[1,64], index: 4, kind: input, shape index: {}]
  %s5 = inlined_call_operand.vmem [shape: bf16[32,64], index: 5, kind: output, shape index: {}]
  %s6 = sld [smem:[#allocation0]]
  $region30: #{unet_forward.17} parent=0
    _
  %s8 = ssub.s32 1, %s6
  %s9 = scalar_select 0, %s8, %s6
  // Predicated region
  $region2: #{unet_forward.17} parent=0 // pred_check
    _
  $region3: #{unet_forward.17} parent=0 // pred_check_branch
    %11 = sbr.rel (0) target = $region5
  $region4: #{unet_forward.17} parent=0 // pred_region
    _
  $region5: #{unet_forward.17} parent=0 // pred_fallthru
    _
  // Predicated region
  $region6: #{unet_forward.17} parent=0 // pred_check
    _
  $region7: #{unet_forward.17} parent=0 // pred_check_branch
    %13 = sbr.rel (0) target = $region9
  $region8: #{unet_forward.17} parent=0 // pred_region
    _
  $region9: #{unet_forward.17} parent=0 // pred_fallthru
    _
  // Predicated region
  $region10: #{unet_forward.17} parent=0 // pred_check
    _
  $region11: #{unet_forward.17} parent=0 // pred_check_branch
    %15 = sbr.rel (0) target = $region13
  $region12: #{unet_forward.17} parent=0 // pred_region
    _
  $region13: #{unet_forward.17} parent=0 // pred_fallthru
    _
  // Predicated region
  $region14: #{unet_forward.17} parent=0 // pred_check
    _
  $region15: #{unet_forward.17} parent=0 // pred_check_branch
    %17 = sbr.rel (0) target = $region17
  $region16: #{unet_forward.17} parent=0 // pred_region
    _
  $region17: #{unet_forward.17} parent=0 // pred_fallthru
    _
  // Predicated region
  $region18: #{unet_forward.17} parent=0 // pred_check
    _
  $region19: #{unet_forward.17} parent=0 // pred_check_branch
    %19 = sbr.rel (0) target = $region21
  $region20: #{unet_forward.17} parent=0 // pred_region
    _
  $region21: #{unet_forward.17} parent=0 // pred_fallthru
    _
  %v21 = vld [vmem:[%s0] sm:$0xf]
  %v22 = vld [vmem:[%s0 + $0x4] sm:$0xf]
  %v23 = vld [vmem:[%s0 + $0x8] sm:$0xf]
  %v24 = vld [vmem:[%s0 + $0xc] sm:$0xf]
  %v25 = vld [vmem:[%s2] sm:$0xf]
  %v26 = vld [vmem:[%s2 + $0x4] sm:$0xf]
  %v27 = vld [vmem:[%s2 + $0x8] sm:$0xf]
  %v28 = vld [vmem:[%s2 + $0xc] sm:$0xf]
  %v29 = vld [vmem:[%s1] sm:$0xf]
  %v30 = vld [vmem:[%s1 + $0x4] sm:$0xf]
  %v31 = vld [vmem:[%s1 + $0x8] sm:$0xf]
  %v32 = vld [vmem:[%s1 + $0xc] sm:$0xf]
  %v33 = vld [vmem:[%s3] sm:$0xf]
  %v34 = vld [vmem:[%s3 + $0x4] sm:$0xf]
  %v35 = vld [vmem:[%s3 + $0x8] sm:$0xf]
  %v36 = vld [vmem:[%s3 + $0xc] sm:$0xf]
  %v41 = vunpack.c.l.b16 %v29
  %v42 = vunpack.c.l.b16 %v30
  %v43 = vunpack.c.l.b16 %v31
  %v44 = vunpack.c.l.b16 %v32
  %v45 = vpack.c.b16 %v42, %v41
  %v46 = vpack.c.b16 %v44, %v43
  %v51 = vunpack.c.l.b16 %v33
  %v52 = vunpack.c.l.b16 %v34
  %v53 = vunpack.c.l.b16 %v35
  %v54 = vunpack.c.l.b16 %v36
  %v55 = vpack.c.b16 %v52, %v51
  %v56 = vpack.c.b16 %v54, %v53
  %vm59 = vcmask 261120
  %v61 = vsel %vm59, %v45, 0
  %v64 = vsel %vm59, %v46, 0
  %66 = vmatprep.subr.bf16.mxu0 0
  %67 = vmatpush1.bf16.msra.mxu0 %v55
  %68 = vmatprep.subr.bf16.mxu0 0
  %69 = vmatpush1.bf16.msra.mxu0 %v56
  %70 = vmatprep.subr.bf16.mxu0 0
  %71 = vmatpush1.bf16.msra.mxu0 0
  %72 = vmatprep.subr.bf16.mxu0 0
  %73 = vmatpush1.bf16.msra.mxu0 0
  %74 = vmatprep.subr.bf16.mxu0 0
  %75 = vmatpush1.bf16.msra.mxu0 0
  %76 = vmatprep.subr.bf16.mxu0 0
  %77 = vmatpush1.bf16.msra.mxu0 0
  %78 = vmatprep.subr.bf16.mxu0 0
  %79 = vmatpush1.bf16.msra.mxu0 0
  %80 = vmatprep.subr.bf16.mxu0 0
  %81 = vmatpush1.bf16.msra.mxu0 0
  %82 = vmatprep.subr.bf16.mxu0 0
  %83 = vmatpush1.bf16.msra.mxu0 0
  %84 = vmatprep.subr.bf16.mxu0 0
  %85 = vmatpush1.bf16.msra.mxu0 0
  %86 = vmatprep.subr.bf16.mxu0 0
  %87 = vmatpush1.bf16.msra.mxu0 0
  %88 = vmatprep.subr.bf16.mxu0 0
  %89 = vmatpush1.bf16.msra.mxu0 0
  %90 = vmatprep.subr.bf16.mxu0 0
  %91 = vmatpush1.bf16.msra.mxu0 0
  %92 = vmatprep.subr.bf16.mxu0 0
  %93 = vmatpush1.bf16.msra.mxu0 0
  %94 = vmatprep.subr.bf16.mxu0 0
  %95 = vmatpush1.bf16.msra.mxu0 0
  %96 = vmatprep.subr.bf16.mxu0 0
  %97 = vmatpush1.bf16.msra.mxu0 0
  %98 = vmatprep.mubr.bf16.mxu0 0
  %99 = vmatmul.mubr.bf16.gmra.mrb[0].mxu0 %v61
  %v100 = vpop.f32.mrb[0].mxu0
  %v101 = vadd.f32 0.0, %v100
  %v102 = vpop.f32.mrb[0].mxu0
  %v103 = vpop.f32.mrb[0].mxu0
  %v104 = vadd.f32 0.0, %v103
  %v105 = vpop.f32.mrb[0].mxu0
  %106 = vmatprep.mubr.bf16.mxu0 0
  %107 = vmatmul.mubr.bf16.gmra.mrb[0].mxu0 %v64
  %v108 = vpop.f32.mrb[0].mxu0
  %v109 = vadd.f32 0.0, %v108
  %v110 = vpop.f32.mrb[0].mxu0
  %v111 = vpop.f32.mrb[0].mxu0
  %v112 = vadd.f32 0.0, %v111
  %v113 = vpop.f32.mrb[0].mxu0
  %114 = vdwg.mxu0
  %v119 = vunpack.c.l.b16 %v21
  %v120 = vunpack.c.l.b16 %v22
  %v121 = vunpack.c.l.b16 %v23
  %v122 = vunpack.c.l.b16 %v24
  %v123 = vpack.c.b16 %v120, %v119
  %v124 = vpack.c.b16 %v122, %v121
  %v129 = vunpack.c.l.b16 %v25
  %v130 = vunpack.c.l.b16 %v26
  %v131 = vunpack.c.l.b16 %v27
  %v132 = vunpack.c.l.b16 %v28
  %v133 = vpack.c.b16 %v130, %v129
  %v134 = vpack.c.b16 %v132, %v131
  %v138 = vsel %vm59, %v123, 0
  %v141 = vsel %vm59, %v124, 0
  %143 = vmatprep.subr.bf16.mxu0 0
  %144 = vmatpush1.bf16.msra.mxu0 %v133
  %145 = vmatprep.subr.bf16.mxu0 0
  %146 = vmatpush1.bf16.msra.mxu0 %v134
  %147 = vmatprep.subr.bf16.mxu0 0
  %148 = vmatpush1.bf16.msra.mxu0 0
  %149 = vmatprep.subr.bf16.mxu0 0
  %150 = vmatpush1.bf16.msra.mxu0 0
  %151 = vmatprep.subr.bf16.mxu0 0
  %152 = vmatpush1.bf16.msra.mxu0 0
  %153 = vmatprep.subr.bf16.mxu0 0
  %154 = vmatpush1.bf16.msra.mxu0 0
  %155 = vmatprep.subr.bf16.mxu0 0
  %156 = vmatpush1.bf16.msra.mxu0 0
  %157 = vmatprep.subr.bf16.mxu0 0
  %158 = vmatpush1.bf16.msra.mxu0 0
  %159 = vmatprep.subr.bf16.mxu0 0
  %160 = vmatpush1.bf16.msra.mxu0 0
  %161 = vmatprep.subr.bf16.mxu0 0
  %162 = vmatpush1.bf16.msra.mxu0 0
  %163 = vmatprep.subr.bf16.mxu0 0
  %164 = vmatpush1.bf16.msra.mxu0 0
  %165 = vmatprep.subr.bf16.mxu0 0
  %166 = vmatpush1.bf16.msra.mxu0 0
  %167 = vmatprep.subr.bf16.mxu0 0
  %168 = vmatpush1.bf16.msra.mxu0 0
  %169 = vmatprep.subr.bf16.mxu0 0
  %170 = vmatpush1.bf16.msra.mxu0 0
  %171 = vmatprep.subr.bf16.mxu0 0
  %172 = vmatpush1.bf16.msra.mxu0 0
  %173 = vmatprep.subr.bf16.mxu0 0
  %174 = vmatpush1.bf16.msra.mxu0 0
  %175 = vmatprep.mubr.bf16.mxu0 0
  %176 = vmatmul.mubr.bf16.gmra.mrb[0].mxu0 %v138
  %v177 = vpop.f32.mrb[0].mxu0
  %v178 = vadd.f32 %v101, %v177
  %v179 = vpop.f32.mrb[0].mxu0
  %v180 = vpop.f32.mrb[0].mxu0
  %v181 = vadd.f32 %v104, %v180
  %v182 = vpop.f32.mrb[0].mxu0
  %183 = vmatprep.mubr.bf16.mxu0 0
  %184 = vmatmul.mubr.bf16.gmra.mrb[0].mxu0 %v141
  %v185 = vpop.f32.mrb[0].mxu0
  %v186 = vadd.f32 %v109, %v185
  %v187 = vpop.f32.mrb[0].mxu0
  %v188 = vpop.f32.mrb[0].mxu0
  %v189 = vadd.f32 %v112, %v188
  %v190 = vpop.f32.mrb[0].mxu0
  %191 = vdwg.mxu0
  %v192 = vld [vmem:[%s4] sm:$0x1]
  %v194 = vlaneseq
  %v195 = vshrl.u32 %v194, 7
  %v196 = vsub.s32 0, %v195
  %v197 = vrot.slane %v192, %v196
  %v199 = vadd.f32 %v178, %v197
  %v200 = vadd.f32 %v181, %v197
  %v201 = vadd.f32 %v186, %v197
  %v202 = vadd.f32 %v189, %v197
  %vm203 = vcmp.ge.f32.partialorder %v199, 0.0
  %vm204 = vcmp.ge.f32.partialorder %v200, 0.0
  %vm205 = vcmp.ge.f32.partialorder %v201, 0.0
  %vm206 = vcmp.ge.f32.partialorder %v202, 0.0
  %v207 = vmul.f32 %v199, 0.01
  %v208 = vmul.f32 %v200, 0.01
  %v209 = vmul.f32 %v201, 0.01
  %v210 = vmul.f32 %v202, 0.01
  %v211 = vsel %vm203, %v199, %v207
  %v212 = vsel %vm204, %v200, %v208
  %v213 = vsel %vm205, %v201, %v209
  %v214 = vsel %vm206, %v202, %v210
  %v215 = vpack.c.bf16 %v212, %v211
  %v216 = vpack.c.bf16 %v214, %v213
  %v219 = vunpack.c.l.b16 %v215
  %v220 = vunpack.c.h.b16 %v215
  %v221 = vunpack.c.l.b16 %v216
  %v222 = vunpack.c.h.b16 %v216
  %v223 = vpack.c.b16 %v219, %v219
  %v224 = vpack.c.b16 %v220, %v220
  %v225 = vpack.c.b16 %v221, %v221
  %v226 = vpack.c.b16 %v222, %v222
  %vm231 = vcmask 519168
  %232 = vst.msk [vmem:[%s5] sm:$0xf] %vm231, %v223
  %233 = vst.msk [vmem:[%s5 + $0x4] sm:$0xf] %vm231, %v224
  %234 = vst.msk [vmem:[%s5 + $0x8] sm:$0xf] %vm231, %v225
  %235 = vst.msk [vmem:[%s5 + $0xc] sm:$0xf] %vm231, %v226
  // Predicated region
  $region22: #{unet_forward.17} parent=0 // pred_check
    _
  $region23: #{unet_forward.17} parent=0 // pred_check_branch
    %237 = sbr.rel (0) target = $region25
  $region24: #{unet_forward.17} parent=0 // pred_region
    _
  $region25: #{unet_forward.17} parent=0 // pred_fallthru
    _
  // Predicated region
  $region26: #{unet_forward.17} parent=0 // pred_check
    _
  $region27: #{unet_forward.17} parent=0 // pred_check_branch
    %239 = sbr.rel (0) target = $region29
  $region28: #{unet_forward.17} parent=0 // pred_region
    _
  $region29: #{unet_forward.17} parent=0 // pred_fallthru
    _

// kernel: tile.48
$region0: #{tile.48}
  #allocation0 [shape = 's32[1]{0}', space=sflag, size = 0x4, scoped, tag = 'scoped memory for tile.48']
  %s0 = inlined_call_operand.vmem [shape: f32[3], index: 0, kind: input, shape index: {}]
  %s1 = inlined_call_operand.vmem [shape: f32[4,3], index: 1, kind: output, shape index: {}]
  // Predicated region
  $region2: #{tile.48} parent=0 // pred_check
    _
  $region3: #{tile.48} parent=0 // pred_check_branch
    %3 = sbr.rel (0) target = $region5
  $region4: #{tile.48} parent=0 // pred_region
    _
  $region5: #{tile.48} parent=0 // pred_fallthru
    _
  %v4 = vld [vmem:[%s0] ss:$0 sm:$0xff]
  %5 = vst [vmem:[%s1] sm:$0xf] %v4

// kernel: tile.49
$region0: #{tile.49}
  %s0 = inlined_call_operand.vmem [shape: f32[4,3], index: 0, kind: input, shape index: {}]
  %s1 = inlined_call_operand.vmem [shape: f32[1,12], index: 1, kind: output, shape index: {}]
  $region1: #{tile.49} parent=0
    #allocation0 [shape = 'u8[4096]{0}', space=vmem, size = 0x1000, scoped, tag = 'scoped mem for output reshape']
    #allocation1 [shape = 'u8[4096]{0}', space=vmem, size = 0x1000, scoped, tag = 'scoped mem for input reshape']
    %s3 = sshllo.u32 0, 4
    %v4 = vld [vmem:[%s0] sm:%s3]
    %5 = vst [vmem:[#allocation1] sm:%s3] %v4
    %v6 = vld [vmem:[#allocation1] sm:$0x1]
    %vm7 = vcmask 23552
    %8 = vst.msk [vmem:[#allocation0] sm:$0x1] %vm7, %v6
    %s9 = scalar_lea.vmem [#allocation1], 3
    %v10 = vld [vmem:[%s9] sm:$0x1]
    %11 = vrot.lane.b32.xlu0 %v10, 9
    %v12 = vpop.permute.xlu0 %11
    %vm13 = vcmask 97352
    %14 = vst.msk [vmem:[#allocation0] sm:$0x1] %vm13, %v12
    %s15 = scalar_lea.vmem [#allocation1], 2
    %v16 = vld [vmem:[%s15] sm:$0x1]
    %17 = vrot.lane.b32.xlu0 %v16, 6
    %v18 = vpop.permute.xlu0 %17
    %vm19 = vcmask 72752
    %20 = vst.msk [vmem:[#allocation0] sm:$0x1] %vm19, %v18
    %s21 = scalar_lea.vmem [#allocation1], 1
    %v22 = vld [vmem:[%s21] sm:$0x1]
    %23 = vrot.lane.b32.xlu0 %v22, 3
    %v24 = vpop.permute.xlu0 %23
    %vm25 = vcmask 48152
    %26 = vst.msk [vmem:[#allocation0] sm:$0x1] %vm25, %v24
    %s28 = sshllo.u32 0, 1
    %v30 = vld [vmem:[#allocation0] sm:%s28]
    %s31 = sshllo.u32 0, 1
    %32 = vst [vmem:[%s1] sm:%s31] %v30

// kernel: unet_forward.18
$region0: #{unet_forward.18}
  #allocation0 [shape = 'u32[]', space=smem, size = 0x4, offset = 0x4, fixed_abs, tag = 'smem constant byte address 0x4 - core index']
  #allocation1 [shape = 'u32[144,128]{1,0:T(1,128)}', space=vmem, size = 0x12000, scoped, tag = 'internal scratch']
  %s0 = inlined_call_operand.vmem [shape: bf16[128,16], index: 0, kind: input, shape index: {}]
  %s1 = inlined_call_operand.vmem [shape: bf16[128,16], index: 1, kind: input, shape index: {}]
  %s2 = inlined_call_operand.vmem [shape: bf16[16,32], index: 2, kind: input, shape index: {}]
  %s3 = inlined_call_operand.vmem [shape: bf16[16,32], index: 3, kind: input, shape index: {}]
  %s4 = inlined_call_operand.vmem [shape: f32[1,32], index: 4, kind: input, shape index: {}]
  %s5 = inlined_call_operand.vmem [shape: bf16[128,32], index: 5, kind: output, shape index: {}]
  %s6 = sld [smem:[#allocation0]]
  $region30: #{unet_forward.18} parent=0
    _
  %s8 = ssub.s32 1, %s6
  %s9 = scalar_select 0, %s8, %s6
  // Predicated region
  $region2: #{unet_forward.18} parent=0 // pred_check
    _
  $region3: #{unet_forward.18} parent=0 // pred_check_branch
    %11 = sbr.rel (0) target = $region5
  $region4: #{unet_forward.18} parent=0 // pred_region
    _
  $region5: #{unet_forward.18} parent=0 // pred_fallthru
    _
  // Predicated region
  $region6: #{unet_forward.18} parent=0 // pred_check
    _
  $region7: #{unet_forward.18} parent=0 // pred_check_branch
    %13 = sbr.rel (0) target = $region9
  $region8: #{unet_forward.18} parent=0 // pred_region
    _
  $region9: #{unet_forward.18} parent=0 // pred_fallthru
    _
  // Predicated region
  $region10: #{unet_forward.18} parent=0 // pred_check
    _
  $region11: #{unet_forward.18} parent=0 // pred_check_branch
    %15 = sbr.rel (0) target = $region13
  $region12: #{unet_forward.18} parent=0 // pred_region
    _
  $region13: #{unet_forward.18} parent=0 // pred_fallthru
    _
  // Predicated region
  $region14: #{unet_forward.18} parent=0 // pred_check
    _
  $region15: #{unet_forward.18} parent=0 // pred_check_branch
    %17 = sbr.rel (0) target = $region17
  $region16: #{unet_forward.18} parent=0 // pred_region
    _
  $region17: #{unet_forward.18} parent=0 // pred_fallthru
    _
  // Predicated region
  $region18: #{unet_forward.18} parent=0 // pred_check
    _
  $region19: #{unet_forward.18} parent=0 // pred_check_branch
    %19 = sbr.rel (0) target = $region21
  $region20: #{unet_forward.18} parent=0 // pred_region
    _
  $region21: #{unet_forward.18} parent=0 // pred_fallthru
    _
  %v21 = vld [vmem:[%s0] sm:$0xf]
  %v22 = vld [vmem:[%s0 + $0x4] sm:$0xf]
  %v23 = vld [vmem:[%s0 + $0x8] sm:$0xf]
  %v24 = vld [vmem:[%s0 + $0xc] sm:$0xf]
  %v25 = vld [vmem:[%s0 + $0x10] sm:$0xf]
  %v26 = vld [vmem:[%s0 + $0x14] sm:$0xf]
  %v27 = vld [vmem:[%s0 + $0x18] sm:$0xf]
  %v28 = vld [vmem:[%s0 + $0x1c] sm:$0xf]
  %v29 = vld [vmem:[%s0 + $0x20] sm:$0xf]
  %v30 = vld [vmem:[%s0 + $0x24] sm:$0xf]
  %v31 = vld [vmem:[%s0 + $0x28] sm:$0xf]
  %v32 = vld [vmem:[%s0 + $0x2c] sm:$0xf]
  %v33 = vld [vmem:[%s0 + $0x30] sm:$0xf]
  %v34 = vld [vmem:[%s0 + $0x34] sm:$0xf]
  %v35 = vld [vmem:[%s0 + $0x38] sm:$0xf]
  %v36 = vld [vmem:[%s0 + $0x3c] sm:$0xf]
  %v37 = vld [vmem:[%s2] sm:$0xf]
  %v38 = vld [vmem:[%s2 + $0x4] sm:$0xf]
  %v39 = vld [vmem:[%s1] sm:$0xf]
  %v40 = vld [vmem:[%s1 + $0x4] sm:$0xf]
  %v41 = vld [vmem:[%s1 + $0x8] sm:$0xf]
  %v42 = vld [vmem:[%s1 + $0xc] sm:$0xf]
  %v43 = vld [vmem:[%s1 + $0x10] sm:$0xf]
  %v44 = vld [vmem:[%s1 + $0x14] sm:$0xf]
  %v45 = vld [vmem:[%s1 + $0x18] sm:$0xf]
  %v46 = vld [vmem:[%s1 + $0x1c] sm:$0xf]
  %v47 = vld [vmem:[%s1 + $0x20] sm:$0xf]
  %v48 = vld [vmem:[%s1 + $0x24] sm:$0xf]
  %v49 = vld [vmem:[%s1 + $0x28] sm:$0xf]
  %v50 = vld [vmem:[%s1 + $0x2c] sm:$0xf]
  %v51 = vld [vmem:[%s1 + $0x30] sm:$0xf]
  %v52 = vld [vmem:[%s1 + $0x34] sm:$0xf]
  %v53 = vld [vmem:[%s1 + $0x38] sm:$0xf]
  %v54 = vld [vmem:[%s1 + $0x3c] sm:$0xf]
  %v55 = vld [vmem:[%s3] sm:$0xf]
  %v56 = vld [vmem:[%s3 + $0x4] sm:$0xf]
  %v73 = vunpack.c.l.b16 %v39
  %v74 = vunpack.c.l.b16 %v40
  %v75 = vunpack.c.l.b16 %v41
  %v76 = vunpack.c.l.b16 %v42
  %v77 = vunpack.c.l.b16 %v43
  %v78 = vunpack.c.l.b16 %v44
  %v79 = vunpack.c.l.b16 %v45
  %v80 = vunpack.c.l.b16 %v46
  %v81 = vunpack.c.l.b16 %v47
  %v82 = vunpack.c.l.b16 %v48
  %v83 = vunpack.c.l.b16 %v49
  %v84 = vunpack.c.l.b16 %v50
  %v85 = vunpack.c.l.b16 %v51
  %v86 = vunpack.c.l.b16 %v52
  %v87 = vunpack.c.l.b16 %v53
  %v88 = vunpack.c.l.b16 %v54
  %v89 = vpack.c.b16 %v74, %v73
  %v90 = vpack.c.b16 %v76, %v75
  %v91 = vpack.c.b16 %v78, %v77
  %v92 = vpack.c.b16 %v80, %v79
  %v93 = vpack.c.b16 %v82, %v81
  %v94 = vpack.c.b16 %v84, %v83
  %v95 = vpack.c.b16 %v86, %v85
  %v96 = vpack.c.b16 %v88, %v87
  %v99 = vunpack.c.l.b16 %v55
  %v100 = vunpack.c.l.b16 %v56
  %v101 = vpack.c.b16 %v100, %v99
  %vm103 = vcmask 130048
  %v105 = vsel %vm103, %v89, 0
  %v108 = vsel %vm103, %v90, 0
  %v111 = vsel %vm103, %v91, 0
  %v114 = vsel %vm103, %v92, 0
  %v117 = vsel %vm103, %v93, 0
  %v120 = vsel %vm103, %v94, 0
  %v123 = vsel %vm103, %v95, 0
  %v126 = vsel %vm103, %v96, 0
  %128 = vmatprep.subr.bf16.mxu0 0
  %129 = vmatpush1.bf16.msra.mxu0 %v101
  %130 = vmatprep.subr.bf16.mxu0 0
  %131 = vmatpush1.bf16.msra.mxu0 0
  %132 = vmatprep.subr.bf16.mxu0 0
  %133 = vmatpush1.bf16.msra.mxu0 0
  %134 = vmatprep.subr.bf16.mxu0 0
  %135 = vmatpush1.bf16.msra.mxu0 0
  %136 = vmatprep.subr.bf16.mxu0 0
  %137 = vmatpush1.bf16.msra.mxu0 0
  %138 = vmatprep.subr.bf16.mxu0 0
  %139 = vmatpush1.bf16.msra.mxu0 0
  %140 = vmatprep.subr.bf16.mxu0 0
  %141 = vmatpush1.bf16.msra.mxu0 0
  %142 = vmatprep.subr.bf16.mxu0 0
  %143 = vmatpush1.bf16.msra.mxu0 0
  %144 = vmatprep.subr.bf16.mxu0 0
  %145 = vmatpush1.bf16.msra.mxu0 0
  %146 = vmatprep.subr.bf16.mxu0 0
  %147 = vmatpush1.bf16.msra.mxu0 0
  %148 = vmatprep.subr.bf16.mxu0 0
  %149 = vmatpush1.bf16.msra.mxu0 0
  %150 = vmatprep.subr.bf16.mxu0 0
  %151 = vmatpush1.bf16.msra.mxu0 0
  %152 = vmatprep.subr.bf16.mxu0 0
  %153 = vmatpush1.bf16.msra.mxu0 0
  %154 = vmatprep.subr.bf16.mxu0 0
  %155 = vmatpush1.bf16.msra.mxu0 0
  %156 = vmatprep.subr.bf16.mxu0 0
  %157 = vmatpush1.bf16.msra.mxu0 0
  %158 = vmatprep.subr.bf16.mxu0 0
  %159 = vmatpush1.bf16.msra.mxu0 0
  %160 = vmatprep.mubr.bf16.mxu0 0
  %161 = vmatmul.mubr.bf16.gmra.mrb[0].mxu0 %v105
  %v162 = vpop.f32.mrb[0].mxu0
  %v163 = vadd.f32 0.0, %v162
  %v164 = vpop.f32.mrb[0].mxu0
  %v165 = vpop.f32.mrb[0].mxu0
  %v166 = vadd.f32 0.0, %v165
  %v167 = vpop.f32.mrb[0].mxu0
  %168 = vmatprep.mubr.bf16.mxu0 0
  %169 = vmatmul.mubr.bf16.gmra.mrb[0].mxu0 %v108
  %v170 = vpop.f32.mrb[0].mxu0
  %v171 = vadd.f32 0.0, %v170
  %v172 = vpop.f32.mrb[0].mxu0
  %v173 = vpop.f32.mrb[0].mxu0
  %v174 = vadd.f32 0.0, %v173
  %v175 = vpop.f32.mrb[0].mxu0
  %176 = vmatprep.mubr.bf16.mxu0 0
  %177 = vmatmul.mubr.bf16.gmra.mrb[0].mxu0 %v111
  %v178 = vpop.f32.mrb[0].mxu0
  %v179 = vadd.f32 0.0, %v178
  %v180 = vpop.f32.mrb[0].mxu0
  %v181 = vpop.f32.mrb[0].mxu0
  %v182 = vadd.f32 0.0, %v181
  %v183 = vpop.f32.mrb[0].mxu0
  %184 = vmatprep.mubr.bf16.mxu0 0
  %185 = vmatmul.mubr.bf16.gmra.mrb[0].mxu0 %v114
  %v186 = vpop.f32.mrb[0].mxu0
  %v187 = vadd.f32 0.0, %v186
  %v188 = vpop.f32.mrb[0].mxu0
  %v189 = vpop.f32.mrb[0].mxu0
  %v190 = vadd.f32 0.0, %v189
  %v191 = vpop.f32.mrb[0].mxu0
  %192 = vmatprep.mubr.bf16.mxu0 0
  %193 = vmatmul.mubr.bf16.gmra.mrb[0].mxu0 %v117
  %v194 = vpop.f32.mrb[0].mxu0
  %v195 = vadd.f32 0.0, %v194
  %v196 = vpop.f32.mrb[0].mxu0
  %v197 = vpop.f32.mrb[0].mxu0
  %v198 = vadd.f32 0.0, %v197
  %v199 = vpop.f32.mrb[0].mxu0
  %200 = vmatprep.mubr.bf16.mxu0 0
  %201 = vmatmul.mubr.bf16.gmra.mrb[0].mxu0 %v120
  %v202 = vpop.f32.mrb[0].mxu0
  %v203 = vadd.f32 0.0, %v202
  %v204 = vpop.f32.mrb[0].mxu0
  %v205 = vpop.f32.mrb[0].mxu0
  %v206 = vadd.f32 0.0, %v205
  %v207 = vpop.f32.mrb[0].mxu0
  %208 = vmatprep.mubr.bf16.mxu0 0
  %209 = vmatmul.mubr.bf16.gmra.mrb[0].mxu0 %v123
  %v210 = vpop.f32.mrb[0].mxu0
  %v211 = vadd.f32 0.0, %v210
  %v212 = vpop.f32.mrb[0].mxu0
  %v213 = vpop.f32.mrb[0].mxu0
  %v214 = vadd.f32 0.0, %v213
  %v215 = vpop.f32.mrb[0].mxu0
  %216 = vmatprep.mubr.bf16.mxu0 0
  %217 = vmatmul.mubr.bf16.gmra.mrb[0].mxu0 %v126
  %v218 = vpop.f32.mrb[0].mxu0
  %v219 = vadd.f32 0.0, %v218
  %v220 = vpop.f32.mrb[0].mxu0
  %v221 = vpop.f32.mrb[0].mxu0
  %v222 = vadd.f32 0.0, %v221
  %v223 = vpop.f32.mrb[0].mxu0
  %224 = vdwg.mxu0
  %v241 = vunpack.c.l.b16 %v21
  %v242 = vunpack.c.l.b16 %v22
  %v243 = vunpack.c.l.b16 %v23
  %v244 = vunpack.c.l.b16 %v24
  %v245 = vunpack.c.l.b16 %v25
  %v246 = vunpack.c.l.b16 %v26
  %v247 = vunpack.c.l.b16 %v27
  %v248 = vunpack.c.l.b16 %v28
  %v249 = vunpack.c.l.b16 %v29
  %v250 = vunpack.c.l.b16 %v30
  %v251 = vunpack.c.l.b16 %v31
  %v252 = vunpack.c.l.b16 %v32
  %v253 = vunpack.c.l.b16 %v33
  %v254 = vunpack.c.l.b16 %v34
  %v255 = vunpack.c.l.b16 %v35
  %v256 = vunpack.c.l.b16 %v36
  %v257 = vpack.c.b16 %v242, %v241
  %v258 = vpack.c.b16 %v244, %v243
  %v259 = vpack.c.b16 %v246, %v245
  %v260 = vpack.c.b16 %v248, %v247
  %v261 = vpack.c.b16 %v250, %v249
  %v262 = vpack.c.b16 %v252, %v251
  %v263 = vpack.c.b16 %v254, %v253
  %v264 = vpack.c.b16 %v256, %v255
  %v267 = vunpack.c.l.b16 %v37
  %v268 = vunpack.c.l.b16 %v38
  %v269 = vpack.c.b16 %v268, %v267
  %v272 = vsel %vm103, %v257, 0
  %v275 = vsel %vm103, %v258, 0
  %v278 = vsel %vm103, %v259, 0
  %v281 = vsel %vm103, %v260, 0
  %v284 = vsel %vm103, %v261, 0
  %v287 = vsel %vm103, %v262, 0
  %v290 = vsel %vm103, %v263, 0
  %v293 = vsel %vm103, %v264, 0
  %295 = vmatprep.subr.bf16.mxu0 0
  %296 = vmatpush1.bf16.msra.mxu0 %v269
  %297 = vmatprep.subr.bf16.mxu0 0
  %298 = vmatpush1.bf16.msra.mxu0 0
  %299 = vmatprep.subr.bf16.mxu0 0
  %300 = vmatpush1.bf16.msra.mxu0 0
  %301 = vmatprep.subr.bf16.mxu0 0
  %302 = vmatpush1.bf16.msra.mxu0 0
  %303 = vmatprep.subr.bf16.mxu0 0
  %304 = vmatpush1.bf16.msra.mxu0 0
  %305 = vmatprep.subr.bf16.mxu0 0
  %306 = vmatpush1.bf16.msra.mxu0 0
  %307 = vmatprep.subr.bf16.mxu0 0
  %308 = vmatpush1.bf16.msra.mxu0 0
  %309 = vmatprep.subr.bf16.mxu0 0
  %310 = vmatpush1.bf16.msra.mxu0 0
  %311 = vmatprep.subr.bf16.mxu0 0
  %312 = vmatpush1.bf16.msra.mxu0 0
  %313 = vmatprep.subr.bf16.mxu0 0
  %314 = vmatpush1.bf16.msra.mxu0 0
  %315 = vmatprep.subr.bf16.mxu0 0
  %316 = vmatpush1.bf16.msra.mxu0 0
  %317 = vmatprep.subr.bf16.mxu0 0
  %318 = vmatpush1.bf16.msra.mxu0 0
  %319 = vmatprep.subr.bf16.mxu0 0
  %320 = vmatpush1.bf16.msra.mxu0 0
  %321 = vmatprep.subr.bf16.mxu0 0
  %322 = vmatpush1.bf16.msra.mxu0 0
  %323 = vmatprep.subr.bf16.mxu0 0
  %324 = vmatpush1.bf16.msra.mxu0 0
  %325 = vmatprep.subr.bf16.mxu0 0
  %326 = vmatpush1.bf16.msra.mxu0 0
  %327 = vmatprep.mubr.bf16.mxu0 0
  %328 = vmatmul.mubr.bf16.gmra.mrb[0].mxu0 %v272
  %v329 = vpop.f32.mrb[0].mxu0
  %v330 = vadd.f32 %v163, %v329
  %v331 = vpop.f32.mrb[0].mxu0
  %v332 = vpop.f32.mrb[0].mxu0
  %v333 = vadd.f32 %v166, %v332
  %v334 = vpop.f32.mrb[0].mxu0
  %335 = vmatprep.mubr.bf16.mxu0 0
  %336 = vmatmul.mubr.bf16.gmra.mrb[0].mxu0 %v275
  %v337 = vpop.f32.mrb[0].mxu0
  %v338 = vadd.f32 %v171, %v337
  %v339 = vpop.f32.mrb[0].mxu0
  %v340 = vpop.f32.mrb[0].mxu0
  %v341 = vadd.f32 %v174, %v340
  %v342 = vpop.f32.mrb[0].mxu0
  %343 = vmatprep.mubr.bf16.mxu0 0
  %344 = vmatmul.mubr.bf16.gmra.mrb[0].mxu0 %v278
  %v345 = vpop.f32.mrb[0].mxu0
  %v346 = vadd.f32 %v179, %v345
  %v347 = vpop.f32.mrb[0].mxu0
  %v348 = vpop.f32.mrb[0].mxu0
  %v349 = vadd.f32 %v182, %v348
  %v350 = vpop.f32.mrb[0].mxu0
  %351 = vmatprep.mubr.bf16.mxu0 0
  %352 = vmatmul.mubr.bf16.gmra.mrb[0].mxu0 %v281
  %v353 = vpop.f32.mrb[0].mxu0
  %v354 = vadd.f32 %v187, %v353
  %v355 = vpop.f32.mrb[0].mxu0
  %v356 = vpop.f32.mrb[0].mxu0
  %v357 = vadd.f32 %v190, %v356
  %v358 = vpop.f32.mrb[0].mxu0
  %359 = vmatprep.mubr.bf16.mxu0 0
  %360 = vmatmul.mubr.bf16.gmra.mrb[0].mxu0 %v284
  %v361 = vpop.f32.mrb[0].mxu0
  %v362 = vadd.f32 %v195, %v361
  %v363 = vpop.f32.mrb[0].mxu0
  %v364 = vpop.f32.mrb[0].mxu0
  %v365 = vadd.f32 %v198, %v364
  %v366 = vpop.f32.mrb[0].mxu0
  %367 = vmatprep.mubr.bf16.mxu0 0
  %368 = vmatmul.mubr.bf16.gmra.mrb[0].mxu0 %v287
  %v369 = vpop.f32.mrb[0].mxu0
  %v370 = vadd.f32 %v203, %v369
  %v371 = vpop.f32.mrb[0].mxu0
  %v372 = vpop.f32.mrb[0].mxu0
  %v373 = vadd.f32 %v206, %v372
  %v374 = vpop.f32.mrb[0].mxu0
  %375 = vmatprep.mubr.bf16.mxu0 0
  %376 = vmatmul.mubr.bf16.gmra.mrb[0].mxu0 %v290
  %v377 = vpop.f32.mrb[0].mxu0
  %v378 = vadd.f32 %v211, %v377
  %v379 = vpop.f32.mrb[0].mxu0
  %v380 = vpop.f32.mrb[0].mxu0
  %v381 = vadd.f32 %v214, %v380
  %v382 = vpop.f32.mrb[0].mxu0
  %383 = vmatprep.mubr.bf16.mxu0 0
  %384 = vmatmul.mubr.bf16.gmra.mrb[0].mxu0 %v293
  %v385 = vpop.f32.mrb[0].mxu0
  %v386 = vadd.f32 %v219, %v385
  %v387 = vpop.f32.mrb[0].mxu0
  %v388 = vpop.f32.mrb[0].mxu0
  %v389 = vadd.f32 %v222, %v388
  %v390 = vpop.f32.mrb[0].mxu0
  %391 = vdwg.mxu0
  %v392 = vld [vmem:[%s4] sm:$0x1]
  %v394 = vlaneseq
  %v395 = vshrl.u32 %v394, 7
  %v396 = vsub.s32 0, %v395
  %v397 = vrot.slane %v392, %v396
  %v399 = vadd.f32 %v330, %v397
  %v400 = vadd.f32 %v333, %v397
  %v401 = vadd.f32 %v338, %v397
  %v402 = vadd.f32 %v341, %v397
  %v403 = vadd.f32 %v346, %v397
  %v404 = vadd.f32 %v349, %v397
  %v405 = vadd.f32 %v354, %v397
  %v406 = vadd.f32 %v357, %v397
  %v407 = vadd.f32 %v362, %v397
  %v408 = vadd.f32 %v365, %v397
  %v409 = vadd.f32 %v370, %v397
  %v410 = vadd.f32 %v373, %v397
  %v411 = vadd.f32 %v378, %v397
  %v412 = vadd.f32 %v381, %v397
  %v413 = vadd.f32 %v386, %v397
  %v414 = vadd.f32 %v389, %v397
  %vm415 = vcmp.ge.f32.partialorder %v399, 0.0
  %vm416 = vcmp.ge.f32.partialorder %v400, 0.0
  %vm417 = vcmp.ge.f32.partialorder %v401, 0.0
  %vm418 = vcmp.ge.f32.partialorder %v402, 0.0
  %vm419 = vcmp.ge.f32.partialorder %v403, 0.0
  %vm420 = vcmp.ge.f32.partialorder %v404, 0.0
  %vm421 = vcmp.ge.f32.partialorder %v405, 0.0
  %vm422 = vcmp.ge.f32.partialorder %v406, 0.0
  %vm423 = vcmp.ge.f32.partialorder %v407, 0.0
  %vm424 = vcmp.ge.f32.partialorder %v408, 0.0
  %vm425 = vcmp.ge.f32.partialorder %v409, 0.0
  %vm426 = vcmp.ge.f32.partialorder %v410, 0.0
  %vm427 = vcmp.ge.f32.partialorder %v411, 0.0
  %vm428 = vcmp.ge.f32.partialorder %v412, 0.0
  %vm429 = vcmp.ge.f32.partialorder %v413, 0.0
  %vm430 = vcmp.ge.f32.partialorder %v414, 0.0
  %v431 = vmul.f32 %v399, 0.01
  %v432 = vmul.f32 %v400, 0.01
  %v433 = vmul.f32 %v401, 0.01
  %v434 = vmul.f32 %v402, 0.01
  %v435 = vmul.f32 %v403, 0.01
  %v436 = vmul.f32 %v404, 0.01
  %v437 = vmul.f32 %v405, 0.01
  %v438 = vmul.f32 %v406, 0.01
  %v439 = vmul.f32 %v407, 0.01
  %v440 = vmul.f32 %v408, 0.01
  %v441 = vmul.f32 %v409, 0.01
  %v442 = vmul.f32 %v410, 0.01
  %v443 = vmul.f32 %v411, 0.01
  %v444 = vmul.f32 %v412, 0.01
  %v445 = vmul.f32 %v413, 0.01
  %v446 = vmul.f32 %v414, 0.01
  %v447 = vsel %vm415, %v399, %v431
  %v448 = vsel %vm416, %v400, %v432
  %v449 = vsel %vm417, %v401, %v433
  %v450 = vsel %vm418, %v402, %v434
  %v451 = vsel %vm419, %v403, %v435
  %v452 = vsel %vm420, %v404, %v436
  %v453 = vsel %vm421, %v405, %v437
  %v454 = vsel %vm422, %v406, %v438
  %v455 = vsel %vm423, %v407, %v439
  %v456 = vsel %vm424, %v408, %v440
  %v457 = vsel %vm425, %v409, %v441
  %v458 = vsel %vm426, %v410, %v442
  %v459 = vsel %vm427, %v411, %v443
  %v460 = vsel %vm428, %v412, %v444
  %v461 = vsel %vm429, %v413, %v445
  %v462 = vsel %vm430, %v414, %v446
  %v463 = vpack.c.bf16 %v448, %v447
  %v464 = vpack.c.bf16 %v450, %v449
  %v465 = vpack.c.bf16 %v452, %v451
  %v466 = vpack.c.bf16 %v454, %v453
  %v467 = vpack.c.bf16 %v456, %v455
  %v468 = vpack.c.bf16 %v458, %v457
  %v469 = vpack.c.bf16 %v460, %v459
  %v470 = vpack.c.bf16 %v462, %v461
  %v479 = vunpack.c.l.b16 %v463
  %v480 = vunpack.c.h.b16 %v463
  %v481 = vunpack.c.l.b16 %v464
  %v482 = vunpack.c.h.b16 %v464
  %v483 = vunpack.c.l.b16 %v465
  %v484 = vunpack.c.h.b16 %v465
  %v485 = vunpack.c.l.b16 %v466
  %v486 = vunpack.c.h.b16 %v466
  %v487 = vunpack.c.l.b16 %v467
  %v488 = vunpack.c.h.b16 %v467
  %v489 = vunpack.c.l.b16 %v468
  %v490 = vunpack.c.h.b16 %v468
  %v491 = vunpack.c.l.b16 %v469
  %v492 = vunpack.c.h.b16 %v469
  %v493 = vunpack.c.l.b16 %v470
  %v494 = vunpack.c.h.b16 %v470
  %v495 = vpack.c.b16 %v479, %v479
  %v496 = vpack.c.b16 %v480, %v480
  %v497 = vpack.c.b16 %v481, %v481
  %v498 = vpack.c.b16 %v482, %v482
  %v499 = vpack.c.b16 %v483, %v483
  %v500 = vpack.c.b16 %v484, %v484
  %v501 = vpack.c.b16 %v485, %v485
  %v502 = vpack.c.b16 %v486, %v486
  %v503 = vpack.c.b16 %v487, %v487
  %v504 = vpack.c.b16 %v488, %v488
  %v505 = vpack.c.b16 %v489, %v489
  %v506 = vpack.c.b16 %v490, %v490
  %v507 = vpack.c.b16 %v491, %v491
  %v508 = vpack.c.b16 %v492, %v492
  %v509 = vpack.c.b16 %v493, %v493
  %v510 = vpack.c.b16 %v494, %v494
  %vm527 = vcmask 257024
  %528 = vst.msk [vmem:[%s5] sm:$0xf] %vm527, %v495
  %529 = vst.msk [vmem:[%s5 + $0x4] sm:$0xf] %vm527, %v496
  %530 = vst.msk [vmem:[%s5 + $0x8] sm:$0xf] %vm527, %v497
  %531 = vst.msk [vmem:[%s5 + $0xc] sm:$0xf] %vm527, %v498
  %532 = vst.msk [vmem:[%s5 + $0x10] sm:$0xf] %vm527, %v499
  %533 = vst.msk [vmem:[%s5 + $0x14] sm:$0xf] %vm527, %v500
  %534 = vst.msk [vmem:[%s5 + $0x18] sm:$0xf] %vm527, %v501
  %535 = vst.msk [vmem:[%s5 + $0x1c] sm:$0xf] %vm527, %v502
  %536 = vst.msk [vmem:[%s5 + $0x20] sm:$0xf] %vm527, %v503
  %537 = vst.msk [vmem:[%s5 + $0x24] sm:$0xf] %vm527, %v504
  %538 = vst.msk [vmem:[%s5 + $0x28] sm:$0xf] %vm527, %v505
  %539 = vst.msk [vmem:[%s5 + $0x2c] sm:$0xf] %vm527, %v506
  %540 = vst.msk [vmem:[%s5 + $0x30] sm:$0xf] %vm527, %v507
  %541 = vst.msk [vmem:[%s5 + $0x34] sm:$0xf] %vm527, %v508
  %542 = vst.msk [vmem:[%s5 + $0x38] sm:$0xf] %vm527, %v509
  %543 = vst.msk [vmem:[%s5 + $0x3c] sm:$0xf] %vm527, %v510
  // Predicated region
  $region22: #{unet_forward.18} parent=0 // pred_check
    _
  $region23: #{unet_forward.18} parent=0 // pred_check_branch
    %545 = sbr.rel (0) target = $region25
  $region24: #{unet_forward.18} parent=0 // pred_region
    _
  $region25: #{unet_forward.18} parent=0 // pred_fallthru
    _
  // Predicated region
  $region26: #{unet_forward.18} parent=0 // pred_check
    _
  $region27: #{unet_forward.18} parent=0 // pred_check_branch
    %547 = sbr.rel (0) target = $region29
  $region28: #{unet_forward.18} parent=0 // pred_region
    _
  $region29: #{unet_forward.18} parent=0 // pred_fallthru
    _

// kernel: unet_forward.19
$region0: #{unet_forward.19}
  #allocation0 [shape = 'u32[]', space=smem, size = 0x4, offset = 0x4, fixed_abs, tag = 'smem constant byte address 0x4 - core index']
  #allocation1 [shape = 'u32[144,128]{1,0:T(1,128)}', space=vmem, size = 0x12000, scoped, tag = 'internal scratch']
  %s0 = inlined_call_operand.vmem [shape: bf16[512,8], index: 0, kind: input, shape index: {}]
  %s1 = inlined_call_operand.vmem [shape: bf16[512,8], index: 1, kind: input, shape index: {}]
  %s2 = inlined_call_operand.vmem [shape: bf16[8,12], index: 2, kind: input, shape index: {}]
  %s3 = inlined_call_operand.vmem [shape: bf16[8,12], index: 3, kind: input, shape index: {}]
  %s4 = inlined_call_operand.vmem [shape: f32[1,12], index: 4, kind: input, shape index: {}]
  %s5 = inlined_call_operand.vmem [shape: f32[512,12], index: 5, kind: output, shape index: {}]
  %s6 = sld [smem:[#allocation0]]
  $region53: #{unet_forward.19} parent=0
    _
  %s8 = ssub.s32 1, %s6
  %s9 = scalar_select 0, %s8, %s6
  loop: start=0, step=1, limit=4
  $region2: #{unet_forward.19} parent=0 // loop_pre_header
    _
  $region3: #{unet_forward.19} parent=0 // loop_header
    %s11 = sphi 0, %s15
    %p12 = scmp.ge.s32.totalorder %s11, 4
    %s21 = sphi 0, %s23
    %s24 = sphi 0, %s21
    %s25 = sphi 0, %s24
    %s41 = sphi 0, %s25
    %s47 = sphi 0, %s49
    %s50 = sphi 0, %s47
    %s51 = sphi 0, %s50
    %s67 = sphi 0, %s51
    %s71 = sphi 0, %s71
    %s73 = sphi 0, %s71
    %s74 = sphi 0, %s73
    %s88 = sphi 0, %s74
    %s92 = sphi 0, %s92
    %s94 = sphi 0, %s92
    %s95 = sphi 0, %s94
    %s109 = sphi 0, %s95
    %s113 = sphi 0, %s113
    %s115 = sphi 0, %s113
    %s116 = sphi 0, %s115
    %s130 = sphi 0, %s116
    %s136 = sphi 0, %s138
    %s139 = sphi 0, %s136
    %s140 = sphi 0, %s139
    %s156 = sphi 0, %s140
  $region4: #{unet_forward.19} parent=0 // loop_header_branch
    %14 = sbr.rel (%p12) target = $region8
  $region5: #{unet_forward.19} parent=0 // loop_body
    %s16 = ssub.s32 %s11, 1
    %s17 = ssub.s32 %s11, 2
    %s18 = sadd.s32 %s11, 1
    %s19 = ssub.s32 %s11, %s18
    %p20 = scmp.eq.s32.totalorder %s19, 0
    %s22 = sadd.s32 %s21, 1
    %s23 = scalar_select %p20, %s21, %s22
    %p26 = pneg %p20
    %p27 = scmp.eq.s32.totalorder %s11, 1
    %p28 = por %p26, %p27
    %p29 = scmp.ne.s32.totalorder %s21, %s24
    %p30 = scmp.eq.s32.totalorder %s11, 0
    %p31 = por %p29, %p30
    %p32 = scmp.ne.s32.totalorder %s21, %s24
    %p33 = scmp.eq.s32.totalorder %s16, 1
    %p34 = por %p32, %p33
    %p35 = scmp.ne.s32.totalorder %s24, %s25
    %p36 = scmp.eq.s32.totalorder %s16, 0
    %p37 = por %p35, %p36
    %p38 = scmp.ne.s32.totalorder %s24, %s25
    %p39 = scmp.eq.s32.totalorder %s17, 1
    %p40 = por %p38, %p39
    %p42 = scmp.ne.s32.totalorder %s25, %s41
    %p43 = scmp.eq.s32.totalorder %s17, 0
    %p44 = por %p42, %p43
    %s45 = ssub.s32 %s11, %s18
    %p46 = scmp.eq.s32.totalorder %s45, 0
    %s48 = sadd.s32 %s47, 1
    %s49 = scalar_select %p46, %s47, %s48
    %p52 = pneg %p46
    %p53 = scmp.eq.s32.totalorder %s11, 1
    %p54 = por %p52, %p53
    %p55 = scmp.ne.s32.totalorder %s47, %s50
    %p56 = scmp.eq.s32.totalorder %s11, 0
    %p57 = por %p55, %p56
    %p58 = scmp.ne.s32.totalorder %s47, %s50
    %p59 = scmp.eq.s32.totalorder %s16, 1
    %p60 = por %p58, %p59
    %p61 = scmp.ne.s32.totalorder %s50, %s51
    %p62 = scmp.eq.s32.totalorder %s16, 0
    %p63 = por %p61, %p62
    %p64 = scmp.ne.s32.totalorder %s50, %s51
    %p65 = scmp.eq.s32.totalorder %s17, 1
    %p66 = por %p64, %p65
    %p68 = scmp.ne.s32.totalorder %s51, %s67
    %p69 = scmp.eq.s32.totalorder %s17, 0
    %p70 = por %p68, %p69
    %s72 = sadd.s32 %s71, 1
    %p75 = scmp.eq.s32.totalorder %s11, 1
    %p76 = scmp.ne.s32.totalorder %s71, %s73
    %p77 = scmp.eq.s32.totalorder %s11, 0
    %p78 = por %p76, %p77
    %p79 = scmp.ne.s32.totalorder %s71, %s73
    %p80 = scmp.eq.s32.totalorder %s16, 1
    %p81 = por %p79, %p80
    %p82 = scmp.ne.s32.totalorder %s73, %s74
    %p83 = scmp.eq.s32.totalorder %s16, 0
    %p84 = por %p82, %p83
    %p85 = scmp.ne.s32.totalorder %s73, %s74
    %p86 = scmp.eq.s32.totalorder %s17, 1
    %p87 = por %p85, %p86
    %p89 = scmp.ne.s32.totalorder %s74, %s88
    %p90 = scmp.eq.s32.totalorder %s17, 0
    %p91 = por %p89, %p90
    %s93 = sadd.s32 %s92, 1
    %p96 = scmp.eq.s32.totalorder %s11, 1
    %p97 = scmp.ne.s32.totalorder %s92, %s94
    %p98 = scmp.eq.s32.totalorder %s11, 0
    %p99 = por %p97, %p98
    %p100 = scmp.ne.s32.totalorder %s92, %s94
    %p101 = scmp.eq.s32.totalorder %s16, 1
    %p102 = por %p100, %p101
    %p103 = scmp.ne.s32.totalorder %s94, %s95
    %p104 = scmp.eq.s32.totalorder %s16, 0
    %p105 = por %p103, %p104
    %p106 = scmp.ne.s32.totalorder %s94, %s95
    %p107 = scmp.eq.s32.totalorder %s17, 1
    %p108 = por %p106, %p107
    %p110 = scmp.ne.s32.totalorder %s95, %s109
    %p111 = scmp.eq.s32.totalorder %s17, 0
    %p112 = por %p110, %p111
    %s114 = sadd.s32 %s113, 1
    %p117 = scmp.eq.s32.totalorder %s11, 1
    %p118 = scmp.ne.s32.totalorder %s113, %s115
    %p119 = scmp.eq.s32.totalorder %s11, 0
    %p120 = por %p118, %p119
    %p121 = scmp.ne.s32.totalorder %s113, %s115
    %p122 = scmp.eq.s32.totalorder %s16, 1
    %p123 = por %p121, %p122
    %p124 = scmp.ne.s32.totalorder %s115, %s116
    %p125 = scmp.eq.s32.totalorder %s16, 0
    %p126 = por %p124, %p125
    %p127 = scmp.ne.s32.totalorder %s115, %s116
    %p128 = scmp.eq.s32.totalorder %s17, 1
    %p129 = por %p127, %p128
    %p131 = scmp.ne.s32.totalorder %s116, %s130
    %p132 = scmp.eq.s32.totalorder %s17, 0
    %p133 = por %p131, %p132
    %s134 = ssub.s32 %s11, %s18
    %p135 = scmp.eq.s32.totalorder %s134, 0
    %s137 = sadd.s32 %s136, 1
    %s138 = scalar_select %p135, %s136, %s137
    %p141 = pneg %p135
    %p142 = scmp.eq.s32.totalorder %s11, 1
    %p143 = por %p141, %p142
    %p144 = scmp.ne.s32.totalorder %s136, %s139
    %p145 = scmp.eq.s32.totalorder %s11, 0
    %p146 = por %p144, %p145
    %p147 = scmp.ne.s32.totalorder %s136, %s139
    %p148 = scmp.eq.s32.totalorder %s16, 1
    %p149 = por %p147, %p148
    %p150 = scmp.ne.s32.totalorder %s139, %s140
    %p151 = scmp.eq.s32.totalorder %s16, 0
    %p152 = por %p150, %p151
    %p153 = scmp.ne.s32.totalorder %s139, %s140
    %p154 = scmp.eq.s32.totalorder %s17, 1
    %p155 = por %p153, %p154
    %p157 = scmp.ne.s32.totalorder %s140, %s156
    %p158 = scmp.eq.s32.totalorder %s17, 0
    %p159 = por %p157, %p158
    %p160 = scmp.le.s32.totalorder 1, %s11
    %p161 = scmp.lt.s32.totalorder %s11, 3
    %p162 = pnand %p160, %p161
    %p163 = pneg %p162
    // Predicated region
    $region9: #{unet_forward.19} parent=5 // pred_check
      _
    $region10: #{unet_forward.19} parent=5 // pred_check_branch
      %165 = sbr.rel (%p162) target = $region12
    $region11: #{unet_forward.19} parent=5 // pred_region
      %s166 = ssub.s32 %s11, 1
      // Predicated region
      $region13: #{unet_forward.19} parent=11 // pred_check
        %p167 = pneg %p84
      $region14: #{unet_forward.19} parent=11 // pred_check_branch
        %169 = sbr.rel (%p167) target = $region16
      $region15: #{unet_forward.19} parent=11 // pred_region
        _
      $region16: #{unet_forward.19} parent=11 // pred_fallthru
        _
      // Predicated region
      $region17: #{unet_forward.19} parent=11 // pred_check
        %p170 = pneg %p105
      $region18: #{unet_forward.19} parent=11 // pred_check_branch
        %172 = sbr.rel (%p170) target = $region20
      $region19: #{unet_forward.19} parent=11 // pred_region
        _
      $region20: #{unet_forward.19} parent=11 // pred_fallthru
        _
      // Predicated region
      $region21: #{unet_forward.19} parent=11 // pred_check
        %p173 = pneg %p126
      $region22: #{unet_forward.19} parent=11 // pred_check_branch
        %175 = sbr.rel (%p173) target = $region24
      $region23: #{unet_forward.19} parent=11 // pred_region
        _
      $region24: #{unet_forward.19} parent=11 // pred_fallthru
        _
    $region12: #{unet_forward.19} parent=5 // pred_fallthru
      _
    %p176 = scmp.lt.s32.totalorder %s11, 2
    // Predicated region
    $region25: #{unet_forward.19} parent=5 // pred_check
      %p177 = pneg %p176
    $region26: #{unet_forward.19} parent=5 // pred_check_branch
      %179 = sbr.rel (%p177) target = $region28
    $region27: #{unet_forward.19} parent=5 // pred_region
      // Predicated region
      $region29: #{unet_forward.19} parent=27 // pred_check
        %p180 = pneg %p31
      $region30: #{unet_forward.19} parent=27 // pred_check_branch
        %182 = sbr.rel (%p180) target = $region32
      $region31: #{unet_forward.19} parent=27 // pred_region
        %s183 = smul.u32 32, %s11
        %p184 = scmp.lt.s32.totalorder %s183, 63
        %s185 = scalar_select %p184, %s183, 63
        %s186 = smul.addr %s185, 4
        %s187 = scalar_lea.vmem %s0, %s186
        %s188 = smul.u32 32, %s11
      $region32: #{unet_forward.19} parent=27 // pred_fallthru
        _
      // Predicated region
      $region33: #{unet_forward.19} parent=27 // pred_check
        %p189 = pneg %p57
      $region34: #{unet_forward.19} parent=27 // pred_check_branch
        %191 = sbr.rel (%p189) target = $region36
      $region35: #{unet_forward.19} parent=27 // pred_region
        %s192 = smul.u32 32, %s11
        %p193 = scmp.lt.s32.totalorder %s192, 63
        %s194 = scalar_select %p193, %s192, 63
        %s195 = smul.addr %s194, 4
        %s196 = scalar_lea.vmem %s1, %s195
        %s197 = smul.u32 32, %s11
      $region36: #{unet_forward.19} parent=27 // pred_fallthru
        _
    $region28: #{unet_forward.19} parent=5 // pred_fallthru
      _
    %p198 = scmp.le.s32.totalorder 1, %s11
    %p199 = scmp.lt.s32.totalorder %s11, 3
    %p200 = pnand %p198, %p199
    %p201 = pneg %p200
    // Predicated region
    $region37: #{unet_forward.19} parent=5 // pred_check
      _
    $region38: #{unet_forward.19} parent=5 // pred_check_branch
      %203 = sbr.rel (%p200) target = $region40
    $region39: #{unet_forward.19} parent=5 // pred_region
      %s204 = ssub.s32 %s11, 1
      %s205 = smul.u32 32, %s16
      %p206 = scmp.lt.s32.totalorder %s205, 63
      %s207 = scalar_select %p206, %s205, 63
      %s208 = smul.addr %s207, 4
      %s209 = scalar_lea.vmem %s0, %s208
      %p210 = pneg %p37
      %p211 = pneg %p34
      %s212 = smul.u32 32, %s16
      %p213 = scmp.lt.s32.totalorder %s212, 63
      %s214 = scalar_select %p213, %s212, 63
      %s215 = smul.addr %s214, 4
      %s216 = scalar_lea.vmem %s1, %s215
      %p217 = pneg %p63
      %p218 = pneg %p60
      %p219 = pneg %p84
      %p220 = pneg %p81
      %p221 = pneg %p105
      %p222 = pneg %p102
      %p223 = pneg %p126
      %p224 = pneg %p123
      %p225 = pneg %p152
      %p226 = pneg %p149
      %s227 = smul.u32 32, %s16
      %p228 = scmp.lt.s32.totalorder %s227, 63
      %s229 = scalar_select %p228, %s227, 63
      %s230 = smul.addr %s229, 8
      %s231 = scalar_lea.vmem %s5, %s230
      %s232 = smul.u32 32, %s16
      %p233 = scmp.lt.s32.totalorder %s232, 63
      %s234 = scalar_select %p233, %s232, 63
      %s235 = smul.addr %s234, 4
      %s236 = scalar_lea.vmem %s0, %s235
      %s237 = smul.u32 32, %s16
      %s238 = smul.u32 32, %s16
      %p239 = scmp.lt.s32.totalorder %s238, 63
      %s240 = scalar_select %p239, %s238, 63
      %s241 = smul.addr %s240, 4
      %s242 = scalar_lea.vmem %s1, %s241
      %s243 = smul.u32 32, %s16
      %s244 = smul.u32 32, %s16
      %p245 = scmp.lt.s32.totalorder %s244, 63
      %s246 = scalar_select %p245, %s244, 63
      %s247 = smul.addr %s246, 8
      %s248 = scalar_lea.vmem %s5, %s247
      %s249 = smul.u32 32, %s16
      %v251 = vld [vmem:[%s236] sm:$0xf]
      %v252 = vld [vmem:[%s236 + $0x4] sm:$0xf]
      %v253 = vld [vmem:[%s236 + $0x8] sm:$0xf]
      %v254 = vld [vmem:[%s236 + $0xc] sm:$0xf]
      %v255 = vld [vmem:[%s236 + $0x10] sm:$0xf]
      %v256 = vld [vmem:[%s236 + $0x14] sm:$0xf]
      %v257 = vld [vmem:[%s236 + $0x18] sm:$0xf]
      %v258 = vld [vmem:[%s236 + $0x1c] sm:$0xf]
      %v259 = vld [vmem:[%s236 + $0x20] sm:$0xf]
      %v260 = vld [vmem:[%s236 + $0x24] sm:$0xf]
      %v261 = vld [vmem:[%s236 + $0x28] sm:$0xf]
      %v262 = vld [vmem:[%s236 + $0x2c] sm:$0xf]
      %v263 = vld [vmem:[%s236 + $0x30] sm:$0xf]
      %v264 = vld [vmem:[%s236 + $0x34] sm:$0xf]
      %v265 = vld [vmem:[%s236 + $0x38] sm:$0xf]
      %v266 = vld [vmem:[%s236 + $0x3c] sm:$0xf]
      %v267 = vld [vmem:[%s236 + $0x40] sm:$0xf]
      %v268 = vld [vmem:[%s236 + $0x44] sm:$0xf]
      %v269 = vld [vmem:[%s236 + $0x48] sm:$0xf]
      %v270 = vld [vmem:[%s236 + $0x4c] sm:$0xf]
      %v271 = vld [vmem:[%s236 + $0x50] sm:$0xf]
      %v272 = vld [vmem:[%s236 + $0x54] sm:$0xf]
      %v273 = vld [vmem:[%s236 + $0x58] sm:$0xf]
      %v274 = vld [vmem:[%s236 + $0x5c] sm:$0xf]
      %v275 = vld [vmem:[%s236 + $0x60] sm:$0xf]
      %v276 = vld [vmem:[%s236 + $0x64] sm:$0xf]
      %v277 = vld [vmem:[%s236 + $0x68] sm:$0xf]
      %v278 = vld [vmem:[%s236 + $0x6c] sm:$0xf]
      %v279 = vld [vmem:[%s236 + $0x70] sm:$0xf]
      %v280 = vld [vmem:[%s236 + $0x74] sm:$0xf]
      %v281 = vld [vmem:[%s236 + $0x78] sm:$0xf]
      %v282 = vld [vmem:[%s236 + $0x7c] sm:$0xf]
      %v283 = vld [vmem:[%s2] sm:$0xf]
      %v284 = vld [vmem:[%s242] sm:$0xf]
      %v285 = vld [vmem:[%s242 + $0x4] sm:$0xf]
      %v286 = vld [vmem:[%s242 + $0x8] sm:$0xf]
      %v287 = vld [vmem:[%s242 + $0xc] sm:$0xf]
      %v288 = vld [vmem:[%s242 + $0x10] sm:$0xf]
      %v289 = vld [vmem:[%s242 + $0x14] sm:$0xf]
      %v290 = vld [vmem:[%s242 + $0x18] sm:$0xf]
      %v291 = vld [vmem:[%s242 + $0x1c] sm:$0xf]
      %v292 = vld [vmem:[%s242 + $0x20] sm:$0xf]
      %v293 = vld [vmem:[%s242 + $0x24] sm:$0xf]
      %v294 = vld [vmem:[%s242 + $0x28] sm:$0xf]
      %v295 = vld [vmem:[%s242 + $0x2c] sm:$0xf]
      %v296 = vld [vmem:[%s242 + $0x30] sm:$0xf]
      %v297 = vld [vmem:[%s242 + $0x34] sm:$0xf]
      %v298 = vld [vmem:[%s242 + $0x38] sm:$0xf]
      %v299 = vld [vmem:[%s242 + $0x3c] sm:$0xf]
      %v300 = vld [vmem:[%s242 + $0x40] sm:$0xf]
      %v301 = vld [vmem:[%s242 + $0x44] sm:$0xf]
      %v302 = vld [vmem:[%s242 + $0x48] sm:$0xf]
      %v303 = vld [vmem:[%s242 + $0x4c] sm:$0xf]
      %v304 = vld [vmem:[%s242 + $0x50] sm:$0xf]
      %v305 = vld [vmem:[%s242 + $0x54] sm:$0xf]
      %v306 = vld [vmem:[%s242 + $0x58] sm:$0xf]
      %v307 = vld [vmem:[%s242 + $0x5c] sm:$0xf]
      %v308 = vld [vmem:[%s242 + $0x60] sm:$0xf]
      %v309 = vld [vmem:[%s242 + $0x64] sm:$0xf]
      %v310 = vld [vmem:[%s242 + $0x68] sm:$0xf]
      %v311 = vld [vmem:[%s242 + $0x6c] sm:$0xf]
      %v312 = vld [vmem:[%s242 + $0x70] sm:$0xf]
      %v313 = vld [vmem:[%s242 + $0x74] sm:$0xf]
      %v314 = vld [vmem:[%s242 + $0x78] sm:$0xf]
      %v315 = vld [vmem:[%s242 + $0x7c] sm:$0xf]
      %v316 = vld [vmem:[%s3] sm:$0xf]
      %v349 = vunpack.c.l.b16 %v284
      %v350 = vunpack.c.l.b16 %v285
      %v351 = vunpack.c.l.b16 %v286
      %v352 = vunpack.c.l.b16 %v287
      %v353 = vunpack.c.l.b16 %v288
      %v354 = vunpack.c.l.b16 %v289
      %v355 = vunpack.c.l.b16 %v290
      %v356 = vunpack.c.l.b16 %v291
      %v357 = vunpack.c.l.b16 %v292
      %v358 = vunpack.c.l.b16 %v293
      %v359 = vunpack.c.l.b16 %v294
      %v360 = vunpack.c.l.b16 %v295
      %v361 = vunpack.c.l.b16 %v296
      %v362 = vunpack.c.l.b16 %v297
      %v363 = vunpack.c.l.b16 %v298
      %v364 = vunpack.c.l.b16 %v299
      %v365 = vunpack.c.l.b16 %v300
      %v366 = vunpack.c.l.b16 %v301
      %v367 = vunpack.c.l.b16 %v302
      %v368 = vunpack.c.l.b16 %v303
      %v369 = vunpack.c.l.b16 %v304
      %v370 = vunpack.c.l.b16 %v305
      %v371 = vunpack.c.l.b16 %v306
      %v372 = vunpack.c.l.b16 %v307
      %v373 = vunpack.c.l.b16 %v308
      %v374 = vunpack.c.l.b16 %v309
      %v375 = vunpack.c.l.b16 %v310
      %v376 = vunpack.c.l.b16 %v311
      %v377 = vunpack.c.l.b16 %v312
      %v378 = vunpack.c.l.b16 %v313
      %v379 = vunpack.c.l.b16 %v314
      %v380 = vunpack.c.l.b16 %v315
      %v381 = vpack.c.b16 %v350, %v349
      %v382 = vpack.c.b16 %v352, %v351
      %v383 = vpack.c.b16 %v354, %v353
      %v384 = vpack.c.b16 %v356, %v355
      %v385 = vpack.c.b16 %v358, %v357
      %v386 = vpack.c.b16 %v360, %v359
      %v387 = vpack.c.b16 %v362, %v361
      %v388 = vpack.c.b16 %v364, %v363
      %v389 = vpack.c.b16 %v366, %v365
      %v390 = vpack.c.b16 %v368, %v367
      %v391 = vpack.c.b16 %v370, %v369
      %v392 = vpack.c.b16 %v372, %v371
      %v393 = vpack.c.b16 %v374, %v373
      %v394 = vpack.c.b16 %v376, %v375
      %v395 = vpack.c.b16 %v378, %v377
      %v396 = vpack.c.b16 %v380, %v379
      %vm397 = vcmask 64512
      %v399 = vsel %vm397, %v381, 0
      %v402 = vsel %vm397, %v382, 0
      %v405 = vsel %vm397, %v383, 0
      %v408 = vsel %vm397, %v384, 0
      %v411 = vsel %vm397, %v385, 0
      %v414 = vsel %vm397, %v386, 0
      %v417 = vsel %vm397, %v387, 0
      %v420 = vsel %vm397, %v388, 0
      %v423 = vsel %vm397, %v389, 0
      %v426 = vsel %vm397, %v390, 0
      %v429 = vsel %vm397, %v391, 0
      %v432 = vsel %vm397, %v392, 0
      %v435 = vsel %vm397, %v393, 0
      %v438 = vsel %vm397, %v394, 0
      %v441 = vsel %vm397, %v395, 0
      %v444 = vsel %vm397, %v396, 0
      %vm446 = vcmask 1043456
      %v448 = vsel %vm446, %v316, 0
      %450 = vmatprep.subr.bf16.mxu0 0
      %451 = vmatpush1.bf16.msra.mxu0 %v448
      %452 = vmatprep.subr.bf16.mxu0 0
      %453 = vmatpush1.bf16.msra.mxu0 0
      %454 = vmatprep.subr.bf16.mxu0 0
      %455 = vmatpush1.bf16.msra.mxu0 0
      %456 = vmatprep.subr.bf16.mxu0 0
      %457 = vmatpush1.bf16.msra.mxu0 0
      %458 = vmatprep.subr.bf16.mxu0 0
      %459 = vmatpush1.bf16.msra.mxu0 0
      %460 = vmatprep.subr.bf16.mxu0 0
      %461 = vmatpush1.bf16.msra.mxu0 0
      %462 = vmatprep.subr.bf16.mxu0 0
      %463 = vmatpush1.bf16.msra.mxu0 0
      %464 = vmatprep.subr.bf16.mxu0 0
      %465 = vmatpush1.bf16.msra.mxu0 0
      %466 = vmatprep.subr.bf16.mxu0 0
      %467 = vmatpush1.bf16.msra.mxu0 0
      %468 = vmatprep.subr.bf16.mxu0 0
      %469 = vmatpush1.bf16.msra.mxu0 0
      %470 = vmatprep.subr.bf16.mxu0 0
      %471 = vmatpush1.bf16.msra.mxu0 0
      %472 = vmatprep.subr.bf16.mxu0 0
      %473 = vmatpush1.bf16.msra.mxu0 0
      %474 = vmatprep.subr.bf16.mxu0 0
      %475 = vmatpush1.bf16.msra.mxu0 0
      %476 = vmatprep.subr.bf16.mxu0 0
      %477 = vmatpush1.bf16.msra.mxu0 0
      %478 = vmatprep.subr.bf16.mxu0 0
      %479 = vmatpush1.bf16.msra.mxu0 0
      %480 = vmatprep.subr.bf16.mxu0 0
      %481 = vmatpush1.bf16.msra.mxu0 0
      %482 = vmatprep.mubr.bf16.mxu0 0
      %483 = vmatmul.mubr.bf16.gmra.mrb[0].mxu0 %v399
      %v484 = vpop.f32.mrb[0].mxu0
      %v485 = vadd.f32 0.0, %v484
      %v486 = vpop.f32.mrb[0].mxu0
      %v487 = vpop.f32.mrb[0].mxu0
      %v488 = vadd.f32 0.0, %v487
      %v489 = vpop.f32.mrb[0].mxu0
      %490 = vmatprep.mubr.bf16.mxu0 0
      %491 = vmatmul.mubr.bf16.gmra.mrb[0].mxu0 %v402
      %v492 = vpop.f32.mrb[0].mxu0
      %v493 = vadd.f32 0.0, %v492
      %v494 = vpop.f32.mrb[0].mxu0
      %v495 = vpop.f32.mrb[0].mxu0
      %v496 = vadd.f32 0.0, %v495
      %v497 = vpop.f32.mrb[0].mxu0
      %498 = vmatprep.mubr.bf16.mxu0 0
      %499 = vmatmul.mubr.bf16.gmra.mrb[0].mxu0 %v405
      %v500 = vpop.f32.mrb[0].mxu0
      %v501 = vadd.f32 0.0, %v500
      %v502 = vpop.f32.mrb[0].mxu0
      %v503 = vpop.f32.mrb[0].mxu0
      %v504 = vadd.f32 0.0, %v503
      %v505 = vpop.f32.mrb[0].mxu0
      %506 = vmatprep.mubr.bf16.mxu0 0
      %507 = vmatmul.mubr.bf16.gmra.mrb[0].mxu0 %v408
      %v508 = vpop.f32.mrb[0].mxu0
      %v509 = vadd.f32 0.0, %v508
      %v510 = vpop.f32.mrb[0].mxu0
      %v511 = vpop.f32.mrb[0].mxu0
      %v512 = vadd.f32 0.0, %v511
      %v513 = vpop.f32.mrb[0].mxu0
      %514 = vmatprep.mubr.bf16.mxu0 0
      %515 = vmatmul.mubr.bf16.gmra.mrb[0].mxu0 %v411
      %v516 = vpop.f32.mrb[0].mxu0
      %v517 = vadd.f32 0.0, %v516
      %v518 = vpop.f32.mrb[0].mxu0
      %v519 = vpop.f32.mrb[0].mxu0
      %v520 = vadd.f32 0.0, %v519
      %v521 = vpop.f32.mrb[0].mxu0
      %522 = vmatprep.mubr.bf16.mxu0 0
      %523 = vmatmul.mubr.bf16.gmra.mrb[0].mxu0 %v414
      %v524 = vpop.f32.mrb[0].mxu0
      %v525 = vadd.f32 0.0, %v524
      %v526 = vpop.f32.mrb[0].mxu0
      %v527 = vpop.f32.mrb[0].mxu0
      %v528 = vadd.f32 0.0, %v527
      %v529 = vpop.f32.mrb[0].mxu0
      %530 = vmatprep.mubr.bf16.mxu0 0
      %531 = vmatmul.mubr.bf16.gmra.mrb[0].mxu0 %v417
      %v532 = vpop.f32.mrb[0].mxu0
      %v533 = vadd.f32 0.0, %v532
      %v534 = vpop.f32.mrb[0].mxu0
      %v535 = vpop.f32.mrb[0].mxu0
      %v536 = vadd.f32 0.0, %v535
      %v537 = vpop.f32.mrb[0].mxu0
      %538 = vmatprep.mubr.bf16.mxu0 0
      %539 = vmatmul.mubr.bf16.gmra.mrb[0].mxu0 %v420
      %v540 = vpop.f32.mrb[0].mxu0
      %v541 = vadd.f32 0.0, %v540
      %v542 = vpop.f32.mrb[0].mxu0
      %v543 = vpop.f32.mrb[0].mxu0
      %v544 = vadd.f32 0.0, %v543
      %v545 = vpop.f32.mrb[0].mxu0
      %546 = vmatprep.mubr.bf16.mxu0 0
      %547 = vmatmul.mubr.bf16.gmra.mrb[0].mxu0 %v423
      %v548 = vpop.f32.mrb[0].mxu0
      %v549 = vadd.f32 0.0, %v548
      %v550 = vpop.f32.mrb[0].mxu0
      %v551 = vpop.f32.mrb[0].mxu0
      %v552 = vadd.f32 0.0, %v551
      %v553 = vpop.f32.mrb[0].mxu0
      %554 = vmatprep.mubr.bf16.mxu0 0
      %555 = vmatmul.mubr.bf16.gmra.mrb[0].mxu0 %v426
      %v556 = vpop.f32.mrb[0].mxu0
      %v557 = vadd.f32 0.0, %v556
      %v558 = vpop.f32.mrb[0].mxu0
      %v559 = vpop.f32.mrb[0].mxu0
      %v560 = vadd.f32 0.0, %v559
      %v561 = vpop.f32.mrb[0].mxu0
      %562 = vmatprep.mubr.bf16.mxu0 0
      %563 = vmatmul.mubr.bf16.gmra.mrb[0].mxu0 %v429
      %v564 = vpop.f32.mrb[0].mxu0
      %v565 = vadd.f32 0.0, %v564
      %v566 = vpop.f32.mrb[0].mxu0
      %v567 = vpop.f32.mrb[0].mxu0
      %v568 = vadd.f32 0.0, %v567
      %v569 = vpop.f32.mrb[0].mxu0
      %570 = vmatprep.mubr.bf16.mxu0 0
      %571 = vmatmul.mubr.bf16.gmra.mrb[0].mxu0 %v432
      %v572 = vpop.f32.mrb[0].mxu0
      %v573 = vadd.f32 0.0, %v572
      %v574 = vpop.f32.mrb[0].mxu0
      %v575 = vpop.f32.mrb[0].mxu0
      %v576 = vadd.f32 0.0, %v575
      %v577 = vpop.f32.mrb[0].mxu0
      %578 = vmatprep.mubr.bf16.mxu0 0
      %579 = vmatmul.mubr.bf16.gmra.mrb[0].mxu0 %v435
      %v580 = vpop.f32.mrb[0].mxu0
      %v581 = vadd.f32 0.0, %v580
      %v582 = vpop.f32.mrb[0].mxu0
      %v583 = vpop.f32.mrb[0].mxu0
      %v584 = vadd.f32 0.0, %v583
      %v585 = vpop.f32.mrb[0].mxu0
      %586 = vmatprep.mubr.bf16.mxu0 0
      %587 = vmatmul.mubr.bf16.gmra.mrb[0].mxu0 %v438
      %v588 = vpop.f32.mrb[0].mxu0
      %v589 = vadd.f32 0.0, %v588
      %v590 = vpop.f32.mrb[0].mxu0
      %v591 = vpop.f32.mrb[0].mxu0
      %v592 = vadd.f32 0.0, %v591
      %v593 = vpop.f32.mrb[0].mxu0
      %594 = vmatprep.mubr.bf16.mxu0 0
      %595 = vmatmul.mubr.bf16.gmra.mrb[0].mxu0 %v441
      %v596 = vpop.f32.mrb[0].mxu0
      %v597 = vadd.f32 0.0, %v596
      %v598 = vpop.f32.mrb[0].mxu0
      %v599 = vpop.f32.mrb[0].mxu0
      %v600 = vadd.f32 0.0, %v599
      %v601 = vpop.f32.mrb[0].mxu0
      %602 = vmatprep.mubr.bf16.mxu0 0
      %603 = vmatmul.mubr.bf16.gmra.mrb[0].mxu0 %v444
      %v604 = vpop.f32.mrb[0].mxu0
      %v605 = vadd.f32 0.0, %v604
      %v606 = vpop.f32.mrb[0].mxu0
      %v607 = vpop.f32.mrb[0].mxu0
      %v608 = vadd.f32 0.0, %v607
      %v609 = vpop.f32.mrb[0].mxu0
      %610 = vdwg.mxu0
      %v643 = vunpack.c.l.b16 %v251
      %v644 = vunpack.c.l.b16 %v252
      %v645 = vunpack.c.l.b16 %v253
      %v646 = vunpack.c.l.b16 %v254
      %v647 = vunpack.c.l.b16 %v255
      %v648 = vunpack.c.l.b16 %v256
      %v649 = vunpack.c.l.b16 %v257
      %v650 = vunpack.c.l.b16 %v258
      %v651 = vunpack.c.l.b16 %v259
      %v652 = vunpack.c.l.b16 %v260
      %v653 = vunpack.c.l.b16 %v261
      %v654 = vunpack.c.l.b16 %v262
      %v655 = vunpack.c.l.b16 %v263
      %v656 = vunpack.c.l.b16 %v264
      %v657 = vunpack.c.l.b16 %v265
      %v658 = vunpack.c.l.b16 %v266
      %v659 = vunpack.c.l.b16 %v267
      %v660 = vunpack.c.l.b16 %v268
      %v661 = vunpack.c.l.b16 %v269
      %v662 = vunpack.c.l.b16 %v270
      %v663 = vunpack.c.l.b16 %v271
      %v664 = vunpack.c.l.b16 %v272
      %v665 = vunpack.c.l.b16 %v273
      %v666 = vunpack.c.l.b16 %v274
      %v667 = vunpack.c.l.b16 %v275
      %v668 = vunpack.c.l.b16 %v276
      %v669 = vunpack.c.l.b16 %v277
      %v670 = vunpack.c.l.b16 %v278
      %v671 = vunpack.c.l.b16 %v279
      %v672 = vunpack.c.l.b16 %v280
      %v673 = vunpack.c.l.b16 %v281
      %v674 = vunpack.c.l.b16 %v282
      %v675 = vpack.c.b16 %v644, %v643
      %v676 = vpack.c.b16 %v646, %v645
      %v677 = vpack.c.b16 %v648, %v647
      %v678 = vpack.c.b16 %v650, %v649
      %v679 = vpack.c.b16 %v652, %v651
      %v680 = vpack.c.b16 %v654, %v653
      %v681 = vpack.c.b16 %v656, %v655
      %v682 = vpack.c.b16 %v658, %v657
      %v683 = vpack.c.b16 %v660, %v659
      %v684 = vpack.c.b16 %v662, %v661
      %v685 = vpack.c.b16 %v664, %v663
      %v686 = vpack.c.b16 %v666, %v665
      %v687 = vpack.c.b16 %v668, %v667
      %v688 = vpack.c.b16 %v670, %v669
      %v689 = vpack.c.b16 %v672, %v671
      %v690 = vpack.c.b16 %v674, %v673
      %v692 = vsel %vm397, %v675, 0
      %v695 = vsel %vm397, %v676, 0
      %v698 = vsel %vm397, %v677, 0
      %v701 = vsel %vm397, %v678, 0
      %v704 = vsel %vm397, %v679, 0
      %v707 = vsel %vm397, %v680, 0
      %v710 = vsel %vm397, %v681, 0
      %v713 = vsel %vm397, %v682, 0
      %v716 = vsel %vm397, %v683, 0
      %v719 = vsel %vm397, %v684, 0
      %v722 = vsel %vm397, %v685, 0
      %v725 = vsel %vm397, %v686, 0
      %v728 = vsel %vm397, %v687, 0
      %v731 = vsel %vm397, %v688, 0
      %v734 = vsel %vm397, %v689, 0
      %v737 = vsel %vm397, %v690, 0
      %v740 = vsel %vm446, %v283, 0
      %742 = vmatprep.subr.bf16.mxu0 0
      %743 = vmatpush1.bf16.msra.mxu0 %v740
      %744 = vmatprep.subr.bf16.mxu0 0
      %745 = vmatpush1.bf16.msra.mxu0 0
      %746 = vmatprep.subr.bf16.mxu0 0
      %747 = vmatpush1.bf16.msra.mxu0 0
      %748 = vmatprep.subr.bf16.mxu0 0
      %749 = vmatpush1.bf16.msra.mxu0 0
      %750 = vmatprep.subr.bf16.mxu0 0
      %751 = vmatpush1.bf16.msra.mxu0 0
      %752 = vmatprep.subr.bf16.mxu0 0
      %753 = vmatpush1.bf16.msra.mxu0 0
      %754 = vmatprep.subr.bf16.mxu0 0
      %755 = vmatpush1.bf16.msra.mxu0 0
      %756 = vmatprep.subr.bf16.mxu0 0
      %757 = vmatpush1.bf16.msra.mxu0 0
      %758 = vmatprep.subr.bf16.mxu0 0
      %759 = vmatpush1.bf16.msra.mxu0 0
      %760 = vmatprep.subr.bf16.mxu0 0
      %761 = vmatpush1.bf16.msra.mxu0 0
      %762 = vmatprep.subr.bf16.mxu0 0
      %763 = vmatpush1.bf16.msra.mxu0 0
      %764 = vmatprep.subr.bf16.mxu0 0
      %765 = vmatpush1.bf16.msra.mxu0 0
      %766 = vmatprep.subr.bf16.mxu0 0
      %767 = vmatpush1.bf16.msra.mxu0 0
      %768 = vmatprep.subr.bf16.mxu0 0
      %769 = vmatpush1.bf16.msra.mxu0 0
      %770 = vmatprep.subr.bf16.mxu0 0
      %771 = vmatpush1.bf16.msra.mxu0 0
      %772 = vmatprep.subr.bf16.mxu0 0
      %773 = vmatpush1.bf16.msra.mxu0 0
      %774 = vmatprep.mubr.bf16.mxu0 0
      %775 = vmatmul.mubr.bf16.gmra.mrb[0].mxu0 %v692
      %v776 = vpop.f32.mrb[0].mxu0
      %v777 = vadd.f32 %v485, %v776
      %v778 = vpop.f32.mrb[0].mxu0
      %v779 = vpop.f32.mrb[0].mxu0
      %v780 = vadd.f32 %v488, %v779
      %v781 = vpop.f32.mrb[0].mxu0
      %782 = vmatprep.mubr.bf16.mxu0 0
      %783 = vmatmul.mubr.bf16.gmra.mrb[0].mxu0 %v695
      %v784 = vpop.f32.mrb[0].mxu0
      %v785 = vadd.f32 %v493, %v784
      %v786 = vpop.f32.mrb[0].mxu0
      %v787 = vpop.f32.mrb[0].mxu0
      %v788 = vadd.f32 %v496, %v787
      %v789 = vpop.f32.mrb[0].mxu0
      %790 = vmatprep.mubr.bf16.mxu0 0
      %791 = vmatmul.mubr.bf16.gmra.mrb[0].mxu0 %v698
      %v792 = vpop.f32.mrb[0].mxu0
      %v793 = vadd.f32 %v501, %v792
      %v794 = vpop.f32.mrb[0].mxu0
      %v795 = vpop.f32.mrb[0].mxu0
      %v796 = vadd.f32 %v504, %v795
      %v797 = vpop.f32.mrb[0].mxu0
      %798 = vmatprep.mubr.bf16.mxu0 0
      %799 = vmatmul.mubr.bf16.gmra.mrb[0].mxu0 %v701
      %v800 = vpop.f32.mrb[0].mxu0
      %v801 = vadd.f32 %v509, %v800
      %v802 = vpop.f32.mrb[0].mxu0
      %v803 = vpop.f32.mrb[0].mxu0
      %v804 = vadd.f32 %v512, %v803
      %v805 = vpop.f32.mrb[0].mxu0
      %806 = vmatprep.mubr.bf16.mxu0 0
      %807 = vmatmul.mubr.bf16.gmra.mrb[0].mxu0 %v704
      %v808 = vpop.f32.mrb[0].mxu0
      %v809 = vadd.f32 %v517, %v808
      %v810 = vpop.f32.mrb[0].mxu0
      %v811 = vpop.f32.mrb[0].mxu0
      %v812 = vadd.f32 %v520, %v811
      %v813 = vpop.f32.mrb[0].mxu0
      %814 = vmatprep.mubr.bf16.mxu0 0
      %815 = vmatmul.mubr.bf16.gmra.mrb[0].mxu0 %v707
      %v816 = vpop.f32.mrb[0].mxu0
      %v817 = vadd.f32 %v525, %v816
      %v818 = vpop.f32.mrb[0].mxu0
      %v819 = vpop.f32.mrb[0].mxu0
      %v820 = vadd.f32 %v528, %v819
      %v821 = vpop.f32.mrb[0].mxu0
      %822 = vmatprep.mubr.bf16.mxu0 0
      %823 = vmatmul.mubr.bf16.gmra.mrb[0].mxu0 %v710
      %v824 = vpop.f32.mrb[0].mxu0
      %v825 = vadd.f32 %v533, %v824
      %v826 = vpop.f32.mrb[0].mxu0
      %v827 = vpop.f32.mrb[0].mxu0
      %v828 = vadd.f32 %v536, %v827
      %v829 = vpop.f32.mrb[0].mxu0
      %830 = vmatprep.mubr.bf16.mxu0 0
      %831 = vmatmul.mubr.bf16.gmra.mrb[0].mxu0 %v713
      %v832 = vpop.f32.mrb[0].mxu0
      %v833 = vadd.f32 %v541, %v832
      %v834 = vpop.f32.mrb[0].mxu0
      %v835 = vpop.f32.mrb[0].mxu0
      %v836 = vadd.f32 %v544, %v835
      %v837 = vpop.f32.mrb[0].mxu0
      %838 = vmatprep.mubr.bf16.mxu0 0
      %839 = vmatmul.mubr.bf16.gmra.mrb[0].mxu0 %v716
      %v840 = vpop.f32.mrb[0].mxu0
      %v841 = vadd.f32 %v549, %v840
      %v842 = vpop.f32.mrb[0].mxu0
      %v843 = vpop.f32.mrb[0].mxu0
      %v844 = vadd.f32 %v552, %v843
      %v845 = vpop.f32.mrb[0].mxu0
      %846 = vmatprep.mubr.bf16.mxu0 0
      %847 = vmatmul.mubr.bf16.gmra.mrb[0].mxu0 %v719
      %v848 = vpop.f32.mrb[0].mxu0
      %v849 = vadd.f32 %v557, %v848
      %v850 = vpop.f32.mrb[0].mxu0
      %v851 = vpop.f32.mrb[0].mxu0
      %v852 = vadd.f32 %v560, %v851
      %v853 = vpop.f32.mrb[0].mxu0
      %854 = vmatprep.mubr.bf16.mxu0 0
      %855 = vmatmul.mubr.bf16.gmra.mrb[0].mxu0 %v722
      %v856 = vpop.f32.mrb[0].mxu0
      %v857 = vadd.f32 %v565, %v856
      %v858 = vpop.f32.mrb[0].mxu0
      %v859 = vpop.f32.mrb[0].mxu0
      %v860 = vadd.f32 %v568, %v859
      %v861 = vpop.f32.mrb[0].mxu0
      %862 = vmatprep.mubr.bf16.mxu0 0
      %863 = vmatmul.mubr.bf16.gmra.mrb[0].mxu0 %v725
      %v864 = vpop.f32.mrb[0].mxu0
      %v865 = vadd.f32 %v573, %v864
      %v866 = vpop.f32.mrb[0].mxu0
      %v867 = vpop.f32.mrb[0].mxu0
      %v868 = vadd.f32 %v576, %v867
      %v869 = vpop.f32.mrb[0].mxu0
      %870 = vmatprep.mubr.bf16.mxu0 0
      %871 = vmatmul.mubr.bf16.gmra.mrb[0].mxu0 %v728
      %v872 = vpop.f32.mrb[0].mxu0
      %v873 = vadd.f32 %v581, %v872
      %v874 = vpop.f32.mrb[0].mxu0
      %v875 = vpop.f32.mrb[0].mxu0
      %v876 = vadd.f32 %v584, %v875
      %v877 = vpop.f32.mrb[0].mxu0
      %878 = vmatprep.mubr.bf16.mxu0 0
      %879 = vmatmul.mubr.bf16.gmra.mrb[0].mxu0 %v731
      %v880 = vpop.f32.mrb[0].mxu0
      %v881 = vadd.f32 %v589, %v880
      %v882 = vpop.f32.mrb[0].mxu0
      %v883 = vpop.f32.mrb[0].mxu0
      %v884 = vadd.f32 %v592, %v883
      %v885 = vpop.f32.mrb[0].mxu0
      %886 = vmatprep.mubr.bf16.mxu0 0
      %887 = vmatmul.mubr.bf16.gmra.mrb[0].mxu0 %v734
      %v888 = vpop.f32.mrb[0].mxu0
      %v889 = vadd.f32 %v597, %v888
      %v890 = vpop.f32.mrb[0].mxu0
      %v891 = vpop.f32.mrb[0].mxu0
      %v892 = vadd.f32 %v600, %v891
      %v893 = vpop.f32.mrb[0].mxu0
      %894 = vmatprep.mubr.bf16.mxu0 0
      %895 = vmatmul.mubr.bf16.gmra.mrb[0].mxu0 %v737
      %v896 = vpop.f32.mrb[0].mxu0
      %v897 = vadd.f32 %v605, %v896
      %v898 = vpop.f32.mrb[0].mxu0
      %v899 = vpop.f32.mrb[0].mxu0
      %v900 = vadd.f32 %v608, %v899
      %v901 = vpop.f32.mrb[0].mxu0
      %902 = vdwg.mxu0
      %v903 = vld [vmem:[%s4] sm:$0x1]
      %v905 = vlaneseq
      %v906 = vshrl.u32 %v905, 7
      %v907 = vsub.s32 0, %v906
      %v908 = vrot.slane %v903, %v907
      %v910 = vadd.f32 %v777, %v908
      %v911 = vadd.f32 %v780, %v908
      %v912 = vadd.f32 %v785, %v908
      %v913 = vadd.f32 %v788, %v908
      %v914 = vadd.f32 %v793, %v908
      %v915 = vadd.f32 %v796, %v908
      %v916 = vadd.f32 %v801, %v908
      %v917 = vadd.f32 %v804, %v908
      %v918 = vadd.f32 %v809, %v908
      %v919 = vadd.f32 %v812, %v908
      %v920 = vadd.f32 %v817, %v908
      %v921 = vadd.f32 %v820, %v908
      %v922 = vadd.f32 %v825, %v908
      %v923 = vadd.f32 %v828, %v908
      %v924 = vadd.f32 %v833, %v908
      %v925 = vadd.f32 %v836, %v908
      %v926 = vadd.f32 %v841, %v908
      %v927 = vadd.f32 %v844, %v908
      %v928 = vadd.f32 %v849, %v908
      %v929 = vadd.f32 %v852, %v908
      %v930 = vadd.f32 %v857, %v908
      %v931 = vadd.f32 %v860, %v908
      %v932 = vadd.f32 %v865, %v908
      %v933 = vadd.f32 %v868, %v908
      %v934 = vadd.f32 %v873, %v908
      %v935 = vadd.f32 %v876, %v908
      %v936 = vadd.f32 %v881, %v908
      %v937 = vadd.f32 %v884, %v908
      %v938 = vadd.f32 %v889, %v908
      %v939 = vadd.f32 %v892, %v908
      %v940 = vadd.f32 %v897, %v908
      %v941 = vadd.f32 %v900, %v908
      %v942 = vsub.f32 0.0, %v910
      %v943 = vsub.f32 0.0, %v911
      %v944 = vsub.f32 0.0, %v912
      %v945 = vsub.f32 0.0, %v913
      %v946 = vsub.f32 0.0, %v914
      %v947 = vsub.f32 0.0, %v915
      %v948 = vsub.f32 0.0, %v916
      %v949 = vsub.f32 0.0, %v917
      %v950 = vsub.f32 0.0, %v918
      %v951 = vsub.f32 0.0, %v919
      %v952 = vsub.f32 0.0, %v920
      %v953 = vsub.f32 0.0, %v921
      %v954 = vsub.f32 0.0, %v922
      %v955 = vsub.f32 0.0, %v923
      %v956 = vsub.f32 0.0, %v924
      %v957 = vsub.f32 0.0, %v925
      %v958 = vsub.f32 0.0, %v926
      %v959 = vsub.f32 0.0, %v927
      %v960 = vsub.f32 0.0, %v928
      %v961 = vsub.f32 0.0, %v929
      %v962 = vsub.f32 0.0, %v930
      %v963 = vsub.f32 0.0, %v931
      %v964 = vsub.f32 0.0, %v932
      %v965 = vsub.f32 0.0, %v933
      %v966 = vsub.f32 0.0, %v934
      %v967 = vsub.f32 0.0, %v935
      %v968 = vsub.f32 0.0, %v936
      %v969 = vsub.f32 0.0, %v937
      %v970 = vsub.f32 0.0, %v938
      %v971 = vsub.f32 0.0, %v939
      %v972 = vsub.f32 0.0, %v940
      %v973 = vsub.f32 0.0, %v941
      %v974 = vmul.f32 %v942, 1.442695
      %v975 = vpow.pop %v974
      %v976 = vmul.f32 %v943, 1.442695
      %v977 = vpow.pop %v976
      %v978 = vmul.f32 %v944, 1.442695
      %v979 = vpow.pop %v978
      %v980 = vmul.f32 %v945, 1.442695
      %v981 = vpow.pop %v980
      %v982 = vmul.f32 %v946, 1.442695
      %v983 = vpow.pop %v982
      %v984 = vmul.f32 %v947, 1.442695
      %v985 = vpow.pop %v984
      %v986 = vmul.f32 %v948, 1.442695
      %v987 = vpow.pop %v986
      %v988 = vmul.f32 %v949, 1.442695
      %v989 = vpow.pop %v988
      %v990 = vmul.f32 %v950, 1.442695
      %v991 = vpow.pop %v990
      %v992 = vmul.f32 %v951, 1.442695
      %v993 = vpow.pop %v992
      %v994 = vmul.f32 %v952, 1.442695
      %v995 = vpow.pop %v994
      %v996 = vmul.f32 %v953, 1.442695
      %v997 = vpow.pop %v996
      %v998 = vmul.f32 %v954, 1.442695
      %v999 = vpow.pop %v998
      %v1000 = vmul.f32 %v955, 1.442695
      %v1001 = vpow.pop %v1000
      %v1002 = vmul.f32 %v956, 1.442695
      %v1003 = vpow.pop %v1002
      %v1004 = vmul.f32 %v957, 1.442695
      %v1005 = vpow.pop %v1004
      %v1006 = vmul.f32 %v958, 1.442695
      %v1007 = vpow.pop %v1006
      %v1008 = vmul.f32 %v959, 1.442695
      %v1009 = vpow.pop %v1008
      %v1010 = vmul.f32 %v960, 1.442695
      %v1011 = vpow.pop %v1010
      %v1012 = vmul.f32 %v961, 1.442695
      %v1013 = vpow.pop %v1012
      %v1014 = vmul.f32 %v962, 1.442695
      %v1015 = vpow.pop %v1014
      %v1016 = vmul.f32 %v963, 1.442695
      %v1017 = vpow.pop %v1016
      %v1018 = vmul.f32 %v964, 1.442695
      %v1019 = vpow.pop %v1018
      %v1020 = vmul.f32 %v965, 1.442695
      %v1021 = vpow.pop %v1020
      %v1022 = vmul.f32 %v966, 1.442695
      %v1023 = vpow.pop %v1022
      %v1024 = vmul.f32 %v967, 1.442695
      %v1025 = vpow.pop %v1024
      %v1026 = vmul.f32 %v968, 1.442695
      %v1027 = vpow.pop %v1026
      %v1028 = vmul.f32 %v969, 1.442695
      %v1029 = vpow.pop %v1028
      %v1030 = vmul.f32 %v970, 1.442695
      %v1031 = vpow.pop %v1030
      %v1032 = vmul.f32 %v971, 1.442695
      %v1033 = vpow.pop %v1032
      %v1034 = vmul.f32 %v972, 1.442695
      %v1035 = vpow.pop %v1034
      %v1036 = vmul.f32 %v973, 1.442695
      %v1037 = vpow.pop %v1036
      %v1038 = vadd.f32 %v975, 1.0
      %v1039 = vadd.f32 %v977, 1.0
      %v1040 = vadd.f32 %v979, 1.0
      %v1041 = vadd.f32 %v981, 1.0
      %v1042 = vadd.f32 %v983, 1.0
      %v1043 = vadd.f32 %v985, 1.0
      %v1044 = vadd.f32 %v987, 1.0
      %v1045 = vadd.f32 %v989, 1.0
      %v1046 = vadd.f32 %v991, 1.0
      %v1047 = vadd.f32 %v993, 1.0
      %v1048 = vadd.f32 %v995, 1.0
      %v1049 = vadd.f32 %v997, 1.0
      %v1050 = vadd.f32 %v999, 1.0
      %v1051 = vadd.f32 %v1001, 1.0
      %v1052 = vadd.f32 %v1003, 1.0
      %v1053 = vadd.f32 %v1005, 1.0
      %v1054 = vadd.f32 %v1007, 1.0
      %v1055 = vadd.f32 %v1009, 1.0
      %v1056 = vadd.f32 %v1011, 1.0
      %v1057 = vadd.f32 %v1013, 1.0
      %v1058 = vadd.f32 %v1015, 1.0
      %v1059 = vadd.f32 %v1017, 1.0
      %v1060 = vadd.f32 %v1019, 1.0
      %v1061 = vadd.f32 %v1021, 1.0
      %v1062 = vadd.f32 %v1023, 1.0
      %v1063 = vadd.f32 %v1025, 1.0
      %v1064 = vadd.f32 %v1027, 1.0
      %v1065 = vadd.f32 %v1029, 1.0
      %v1066 = vadd.f32 %v1031, 1.0
      %v1067 = vadd.f32 %v1033, 1.0
      %v1068 = vadd.f32 %v1035, 1.0
      %v1069 = vadd.f32 %v1037, 1.0
      %v1070 = vrcp.pop %v1038
      %v1071 = vmul.f32 1.0, %v1070
      %v1072 = vrcp.pop %v1039
      %v1073 = vmul.f32 1.0, %v1072
      %v1074 = vrcp.pop %v1040
      %v1075 = vmul.f32 1.0, %v1074
      %v1076 = vrcp.pop %v1041
      %v1077 = vmul.f32 1.0, %v1076
      %v1078 = vrcp.pop %v1042
      %v1079 = vmul.f32 1.0, %v1078
      %v1080 = vrcp.pop %v1043
      %v1081 = vmul.f32 1.0, %v1080
      %v1082 = vrcp.pop %v1044
      %v1083 = vmul.f32 1.0, %v1082
      %v1084 = vrcp.pop %v1045
      %v1085 = vmul.f32 1.0, %v1084
      %v1086 = vrcp.pop %v1046
      %v1087 = vmul.f32 1.0, %v1086
      %v1088 = vrcp.pop %v1047
      %v1089 = vmul.f32 1.0, %v1088
      %v1090 = vrcp.pop %v1048
      %v1091 = vmul.f32 1.0, %v1090
      %v1092 = vrcp.pop %v1049
      %v1093 = vmul.f32 1.0, %v1092
      %v1094 = vrcp.pop %v1050
      %v1095 = vmul.f32 1.0, %v1094
      %v1096 = vrcp.pop %v1051
      %v1097 = vmul.f32 1.0, %v1096
      %v1098 = vrcp.pop %v1052
      %v1099 = vmul.f32 1.0, %v1098
      %v1100 = vrcp.pop %v1053
      %v1101 = vmul.f32 1.0, %v1100
      %v1102 = vrcp.pop %v1054
      %v1103 = vmul.f32 1.0, %v1102
      %v1104 = vrcp.pop %v1055
      %v1105 = vmul.f32 1.0, %v1104
      %v1106 = vrcp.pop %v1056
      %v1107 = vmul.f32 1.0, %v1106
      %v1108 = vrcp.pop %v1057
      %v1109 = vmul.f32 1.0, %v1108
      %v1110 = vrcp.pop %v1058
      %v1111 = vmul.f32 1.0, %v1110
      %v1112 = vrcp.pop %v1059
      %v1113 = vmul.f32 1.0, %v1112
      %v1114 = vrcp.pop %v1060
      %v1115 = vmul.f32 1.0, %v1114
      %v1116 = vrcp.pop %v1061
      %v1117 = vmul.f32 1.0, %v1116
      %v1118 = vrcp.pop %v1062
      %v1119 = vmul.f32 1.0, %v1118
      %v1120 = vrcp.pop %v1063
      %v1121 = vmul.f32 1.0, %v1120
      %v1122 = vrcp.pop %v1064
      %v1123 = vmul.f32 1.0, %v1122
      %v1124 = vrcp.pop %v1065
      %v1125 = vmul.f32 1.0, %v1124
      %v1126 = vrcp.pop %v1066
      %v1127 = vmul.f32 1.0, %v1126
      %v1128 = vrcp.pop %v1067
      %v1129 = vmul.f32 1.0, %v1128
      %v1130 = vrcp.pop %v1068
      %v1131 = vmul.f32 1.0, %v1130
      %v1132 = vrcp.pop %v1069
      %v1133 = vmul.f32 1.0, %v1132
      %vm1134 = vcmask 97280
      %1135 = vst.msk [vmem:[%s248] sm:$0xff] %vm1134, %v1071
      %1136 = vst.msk [vmem:[%s248 + $0x8] sm:$0xff] %vm1134, %v1073
      %1137 = vst.msk [vmem:[%s248 + $0x10] sm:$0xff] %vm1134, %v1075
      %1138 = vst.msk [vmem:[%s248 + $0x18] sm:$0xff] %vm1134, %v1077
      %1139 = vst.msk [vmem:[%s248 + $0x20] sm:$0xff] %vm1134, %v1079
      %1140 = vst.msk [vmem:[%s248 + $0x28] sm:$0xff] %vm1134, %v1081
      %1141 = vst.msk [vmem:[%s248 + $0x30] sm:$0xff] %vm1134, %v1083
      %1142 = vst.msk [vmem:[%s248 + $0x38] sm:$0xff] %vm1134, %v1085
      %1143 = vst.msk [vmem:[%s248 + $0x40] sm:$0xff] %vm1134, %v1087
      %1144 = vst.msk [vmem:[%s248 + $0x48] sm:$0xff] %vm1134, %v1089
      %1145 = vst.msk [vmem:[%s248 + $0x50] sm:$0xff] %vm1134, %v1091
      %1146 = vst.msk [vmem:[%s248 + $0x58] sm:$0xff] %vm1134, %v1093
      %1147 = vst.msk [vmem:[%s248 + $0x60] sm:$0xff] %vm1134, %v1095
      %1148 = vst.msk [vmem:[%s248 + $0x68] sm:$0xff] %vm1134, %v1097
      %1149 = vst.msk [vmem:[%s248 + $0x70] sm:$0xff] %vm1134, %v1099
      %1150 = vst.msk [vmem:[%s248 + $0x78] sm:$0xff] %vm1134, %v1101
      %1151 = vst.msk [vmem:[%s248 + $0x80] sm:$0xff] %vm1134, %v1103
      %1152 = vst.msk [vmem:[%s248 + $0x88] sm:$0xff] %vm1134, %v1105
      %1153 = vst.msk [vmem:[%s248 + $0x90] sm:$0xff] %vm1134, %v1107
      %1154 = vst.msk [vmem:[%s248 + $0x98] sm:$0xff] %vm1134, %v1109
      %1155 = vst.msk [vmem:[%s248 + $0xa0] sm:$0xff] %vm1134, %v1111
      %1156 = vst.msk [vmem:[%s248 + $0xa8] sm:$0xff] %vm1134, %v1113
      %1157 = vst.msk [vmem:[%s248 + $0xb0] sm:$0xff] %vm1134, %v1115
      %1158 = vst.msk [vmem:[%s248 + $0xb8] sm:$0xff] %vm1134, %v1117
      %1159 = vst.msk [vmem:[%s248 + $0xc0] sm:$0xff] %vm1134, %v1119
      %1160 = vst.msk [vmem:[%s248 + $0xc8] sm:$0xff] %vm1134, %v1121
      %1161 = vst.msk [vmem:[%s248 + $0xd0] sm:$0xff] %vm1134, %v1123
      %1162 = vst.msk [vmem:[%s248 + $0xd8] sm:$0xff] %vm1134, %v1125
      %1163 = vst.msk [vmem:[%s248 + $0xe0] sm:$0xff] %vm1134, %v1127
      %1164 = vst.msk [vmem:[%s248 + $0xe8] sm:$0xff] %vm1134, %v1129
      %1165 = vst.msk [vmem:[%s248 + $0xf0] sm:$0xff] %vm1134, %v1131
      %1166 = vst.msk [vmem:[%s248 + $0xf8] sm:$0xff] %vm1134, %v1133
      %s1167 = smul.u32 32, %s16
      %p1168 = scmp.lt.s32.totalorder %s1167, 63
      %s1169 = scalar_select %p1168, %s1167, 63
      %s1170 = smul.addr %s1169, 8
      %s1171 = scalar_lea.vmem %s5, %s1170
      // Predicated region
      $region41: #{unet_forward.19} parent=39 // pred_check
        %p1172 = pneg %p149
      $region42: #{unet_forward.19} parent=39 // pred_check_branch
        %1174 = sbr.rel (%p1172) target = $region44
      $region43: #{unet_forward.19} parent=39 // pred_region
        %s1175 = smul.u32 32, %s16
      $region44: #{unet_forward.19} parent=39 // pred_fallthru
        _
    $region40: #{unet_forward.19} parent=5 // pred_fallthru
      _
    %p1176 = scmp.le.s32.totalorder 2, %s11
    // Predicated region
    $region45: #{unet_forward.19} parent=5 // pred_check
      %p1177 = pneg %p1176
    $region46: #{unet_forward.19} parent=5 // pred_check_branch
      %1179 = sbr.rel (%p1177) target = $region48
    $region47: #{unet_forward.19} parent=5 // pred_region
      %s1180 = ssub.s32 %s11, 2
      // Predicated region
      $region49: #{unet_forward.19} parent=47 // pred_check
        %p1181 = pneg %p155
      $region50: #{unet_forward.19} parent=47 // pred_check_branch
        %1183 = sbr.rel (%p1181) target = $region52
      $region51: #{unet_forward.19} parent=47 // pred_region
        %s1184 = smul.u32 32, %s17
        %p1185 = scmp.lt.s32.totalorder %s1184, 63
        %s1186 = scalar_select %p1185, %s1184, 63
        %s1187 = smul.addr %s1186, 8
        %s1188 = scalar_lea.vmem %s5, %s1187
      $region52: #{unet_forward.19} parent=47 // pred_fallthru
        _
    $region48: #{unet_forward.19} parent=5 // pred_fallthru
      _
  $region6: #{unet_forward.19} parent=0 // loop_footer
    %s15 = sadd.s32 1, %s11
  $region7: #{unet_forward.19} parent=0 // loop_footer_branch
    %10 = sbr.rel target = $region3
  $region8: #{unet_forward.19} parent=0 // loop_exit
    _

</llo_original>
